<compile_context>
chip_gen: v7x
topology: tpu7x:2x2x1
jax: 0.10.0
libtpu: 0.0.40
codegen_flags: <defaults>
</compile_context>

<pallas_src>
import functools

import jax
import jax.numpy as jnp
from jax.experimental import pallas as pl
from jax.experimental.pallas import tpu as pltpu


_SQRT_HALF = 0.7071067811865476
_VMEM_LIMIT = 32 * 1024 * 1024   # >= scoped default everywhere, safe on v7x (64 MiB)


def _row_tile(n, target):
    """Whole axis when small (always legal), else a multiple-of-8 target tile."""
    return n if n <= target else target


# ----------------------------------------------------------------------------
# In-kernel helpers
# ----------------------------------------------------------------------------
def _gelu_exact(x):
    # Exact (erf) GELU via the Abramowitz-Stegun 7.1.26 rational approximation
    # (|err| < 1.5e-7 ~= f32 eps).  exp lands on the otherwise idle EUP.
    z = x * _SQRT_HALF
    a = jnp.abs(z)
    t = 1.0 / (1.0 + 0.3275911 * a)
    poly = t * (0.254829592 + t * (-0.284496736 + t * (1.421413741
                + t * (-1.453152027 + t * 1.061405429))))
    erf_abs = 1.0 - poly * jnp.exp(-a * a)
    erf = jnp.where(z < 0.0, -erf_abs, erf_abs)
    return 0.5 * x * (1.0 + erf)


def _layernorm_math(x, g, b, eps):
    mu = jnp.mean(x, axis=-1, keepdims=True)
    xc = x - mu
    var = jnp.mean(xc * xc, axis=-1, keepdims=True)   # biased var (PyTorch LN)
    return xc * jax.lax.rsqrt(var + eps) * g + b


# ----------------------------------------------------------------------------
# LayerNorm kernel (norm1)
# ----------------------------------------------------------------------------
def _layernorm_kernel(x_ref, g_ref, b_ref, o_ref, *, eps):
    o_ref[...] = _layernorm_math(x_ref[...], g_ref[...], b_ref[...], eps)


def layernorm(x2d, g, b, eps=1e-5, row_tile=1024):
    M, C = x2d.shape
    tm = _row_tile(M, row_tile)
    return pl.pallas_call(
        functools.partial(_layernorm_kernel, eps=eps),
        out_shape=jax.ShapeDtypeStruct((M, C), jnp.float32),
        grid=(pl.cdiv(M, tm),),
        in_specs=[
            pl.BlockSpec((tm, C), lambda i: (i, 0)),
            pl.BlockSpec((1, C), lambda i: (0, 0)),
            pl.BlockSpec((1, C), lambda i: (0, 0)),
        ],
        out_specs=pl.BlockSpec((tm, C), lambda i: (i, 0)),
        compiler_params=pltpu.CompilerParams(
            dimension_semantics=("parallel",), vmem_limit_bytes=_VMEM_LIMIT),
        cost_estimate=pl.CostEstimate(flops=8 * M * C, transcendentals=M,
                                      bytes_accessed=2 * M * C * 4 + 2 * C * 4),
    )(x2d, g.reshape(1, C), b.reshape(1, C))


# ----------------------------------------------------------------------------
# dw-conv 3x3 + folded BN + q/k/v Linear, fused
# ----------------------------------------------------------------------------
def _qkv_conv_proj_kernel(p_ref, dw_ref, s_ref, t_ref, w_ref, o_ref):
    # p_ref : (9, tm, C)  bf16 tap-major im2col patches (each tap contiguous)
    # dw_ref: (27, 1, C)  f32 depthwise 3x3 weights for q/k/v (proj-major, tap-minor)
    # s_ref : (3, 1, C)   f32 folded eval-mode BatchNorm scale
    # t_ref : (3, 1, C)   f32 folded eval-mode BatchNorm shift
    # w_ref : (3, C, C)   bf16 proj_q / proj_k / proj_v weights (qkv_bias=False)
    # o_ref : (tm, 3C)    bf16 [q | k | v] along lanes, stored once (lane-dense)
    outs = []
    for i in range(3):                        # static unroll over q / k / v
        acc = p_ref[0].astype(jnp.float32) * dw_ref[i * 9]
        for tap in range(1, 9):               # static unroll of the 9-tap FMA chain
            acc = acc + p_ref[tap].astype(jnp.float32) * dw_ref[i * 9 + tap]
        conv = acc * s_ref[i] + t_ref[i]      # folded eval-mode BatchNorm (f32)
        outs.append(jnp.dot(conv.astype(jnp.bfloat16), w_ref[i],
                            preferred_element_type=jnp.float32))
    o_ref[...] = jnp.concatenate(outs, axis=-1).astype(o_ref.dtype)


def qkv_conv_proj(patches, dw_w, bn_scale, bn_shift, qkv_w, row_tile=512):
    """patches:(9,N,C) bf16 tap-major, dw_w:(3,9,C), bn_*:(3,1,C), qkv_w:(3,C,C)."""
    K9, N, C = patches.shape
    assert K9 == 9
    tm = _row_tile(N, row_tile)
    flops = 3 * (18 * N * C + 2 * N * C * C)
    bytes_acc = 9 * N * C * 2 + N * 3 * C * 2 + 3 * C * C * 2 + 33 * C * 4
    return pl.pallas_call(
        _qkv_conv_proj_kernel,
        out_shape=jax.ShapeDtypeStruct((N, 3 * C), jnp.bfloat16),
        grid=(pl.cdiv(N, tm),),
        in_specs=[
            pl.BlockSpec((9, tm, C), lambda i: (0, i, 0)),
            pl.BlockSpec((27, 1, C), lambda i: (0, 0, 0)),
            pl.BlockSpec((3, 1, C), lambda i: (0, 0, 0)),
            pl.BlockSpec((3, 1, C), lambda i: (0, 0, 0)),
            pl.BlockSpec((3, C, C), lambda i: (0, 0, 0)),
        ],
        out_specs=pl.BlockSpec((tm, 3 * C), lambda i: (i, 0)),
        compiler_params=pltpu.CompilerParams(
            dimension_semantics=("parallel",), vmem_limit_bytes=_VMEM_LIMIT),
        cost_estimate=pl.CostEstimate(flops=flops, transcendentals=0,
                                      bytes_accessed=bytes_acc),
    )(patches, dw_w.reshape(27, 1, C).astype(jnp.float32),
      bn_scale, bn_shift, qkv_w.astype(jnp.bfloat16))


# ----------------------------------------------------------------------------
# Attention (+ output projection + residual), grid over (batch, query tiles)
# ----------------------------------------------------------------------------
def _attn_kernel(qkvq_ref, kv_ref, res_ref, wo_ref, bo_ref, o_ref, *, heads, scale):
    # qkvq_ref: (1, tq, 3C) bf16 query-row tile (only the first C lanes used)
    # kv_ref  : (1, T, 3C)  bf16 full sequence for this batch (k/v lanes used)
    # res_ref : (1, tq, C)  f32 residual rows (pre-norm x)
    # wo_ref  : (C, C) bf16 ; bo_ref: (1, C) f32
    # o_ref   : (1, tq, C)  f32
    C = res_ref.shape[-1]
    D = C // heads
    qrows = qkvq_ref[0]
    kv = kv_ref[0]
    ctx_heads = []
    # TODO(synk): for production C (multiple of 128) the per-head lane slices below
    # should become a head-major leading-axis layout and the KV axis should be tiled
    # flash-style (online softmax); at demo scale (D=8, T=17) this is sub-vreg work.
    for hd in range(heads):                    # static unroll; head split in-VMEM
        q = qrows[:, hd * D:(hd + 1) * D]
        k = kv[:, C + hd * D:C + (hd + 1) * D]
        v = kv[:, 2 * C + hd * D:2 * C + (hd + 1) * D]
        s = jax.lax.dot_general(q, k, (((1,), (1,)), ((), ())),
                                preferred_element_type=jnp.float32) * scale
        m = jnp.max(s, axis=-1, keepdims=True)
        e = jnp.exp(s - m)
        p = e * pl.reciprocal(jnp.sum(e, axis=-1, keepdims=True), approx=True)
        ctx_heads.append(jnp.dot(p.astype(jnp.bfloat16), v,
                                 preferred_element_type=jnp.float32))
    ctx = jnp.concatenate(ctx_heads, axis=-1)                  # (tq, C) f32
    proj = jnp.dot(ctx.astype(jnp.bfloat16), wo_ref[...],      # single full-width
                   preferred_element_type=jnp.float32)         # projection matmul
    o_ref[...] = (res_ref[0] + bo_ref[...] + proj)[None]


def attention(qkv, x_res, wo, bo, heads, scale, q_tile=512):
    """qkv:(B,T,3C) bf16, x_res:(B,T,C) f32 -> x_res + proj(attention(qkv))."""
    B, T, C = x_res.shape
    tq = _row_tile(T, q_tile)
    D = C // heads
    flops = B * (heads * 4 * T * T * D + 2 * T * C * C + 4 * T * C)
    bytes_acc = B * (2 * T * 3 * C * 2 + 2 * T * C * 4) + C * C * 2 + C * 4
    return pl.pallas_call(
        functools.partial(_attn_kernel, heads=heads, scale=scale),
        out_shape=jax.ShapeDtypeStruct((B, T, C), jnp.float32),
        grid=(B, pl.cdiv(T, tq)),
        in_specs=[
            pl.BlockSpec((1, tq, 3 * C), lambda b, i: (b, i, 0)),   # q rows
            pl.BlockSpec((1, T, 3 * C), lambda b, i: (b, 0, 0)),    # full k/v
            pl.BlockSpec((1, tq, C), lambda b, i: (b, i, 0)),       # residual rows
            pl.BlockSpec((C, C), lambda b, i: (0, 0)),
            pl.BlockSpec((1, C), lambda b, i: (0, 0)),
        ],
        out_specs=pl.BlockSpec((1, tq, C), lambda b, i: (b, i, 0)),
        compiler_params=pltpu.CompilerParams(
            dimension_semantics=("parallel", "parallel"),
            vmem_limit_bytes=_VMEM_LIMIT),
        cost_estimate=pl.CostEstimate(flops=flops,
                                      transcendentals=B * heads * T * T,
                                      bytes_accessed=bytes_acc),
    )(qkv, qkv, x_res, wo.astype(jnp.bfloat16), bo.reshape(1, C))


# ----------------------------------------------------------------------------
# norm2 + fc1 + GELU + fc2 + residual, fused and row-tiled
# ----------------------------------------------------------------------------
def _mlp_block_kernel(x_ref, g_ref, b_ref, w1_ref, b1_ref, w2_ref, b2_ref, o_ref,
                      *, eps):
    x = x_ref[...]
    xn = _layernorm_math(x, g_ref[...], b_ref[...], eps)
    h = jnp.dot(xn.astype(jnp.bfloat16), w1_ref[...],
                preferred_element_type=jnp.float32) + b1_ref[...]
    h = _gelu_exact(h)
    y = jnp.dot(h.astype(jnp.bfloat16), w2_ref[...],
                preferred_element_type=jnp.float32) + b2_ref[...]
    o_ref[...] = x + y                        # residual fused in-kernel (f32)


def mlp_block(x2d, g, b, w1, b1, w2, b2, eps=1e-5, row_tile=512):
    M, C = x2d.shape
    Hd = w1.shape[1]
    tm = _row_tile(M, row_tile)
    flops = 4 * M * C * Hd + 12 * M * C
    bytes_acc = 2 * M * C * 4 + 2 * C * Hd * 2 + (3 * C + Hd) * 4
    return pl.pallas_call(
        functools.partial(_mlp_block_kernel, eps=eps),
        out_shape=jax.ShapeDtypeStruct((M, C), jnp.float32),
        grid=(pl.cdiv(M, tm),),
        in_specs=[
            pl.BlockSpec((tm, C), lambda i: (i, 0)),
            pl.BlockSpec((1, C), lambda i: (0, 0)),
            pl.BlockSpec((1, C), lambda i: (0, 0)),
            pl.BlockSpec((C, Hd), lambda i: (0, 0)),
            pl.BlockSpec((1, Hd), lambda i: (0, 0)),
            pl.BlockSpec((Hd, C), lambda i: (0, 0)),
            pl.BlockSpec((1, C), lambda i: (0, 0)),
        ],
        out_specs=pl.BlockSpec((tm, C), lambda i: (i, 0)),
        compiler_params=pltpu.CompilerParams(
            dimension_semantics=("parallel",), vmem_limit_bytes=_VMEM_LIMIT),
        cost_estimate=pl.CostEstimate(flops=flops, transcendentals=M * Hd + M,
                                      bytes_accessed=bytes_acc),
    )(x2d, g.reshape(1, C), b.reshape(1, C),
      w1.astype(jnp.bfloat16), b1.reshape(1, Hd),
      w2.astype(jnp.bfloat16), b2.reshape(1, C))


# ----------------------------------------------------------------------------
# Plain-JAX glue (patch extraction + tiny cls-token path)
# ----------------------------------------------------------------------------
def im2col_3x3_tapmajor(x_img):
    """x_img:(B,H,W,C) -> (9, B*H*W, C), 'same' zero padding, stride 1."""
    B, H, W, C = x_img.shape
    xp = jnp.pad(x_img, ((0, 0), (1, 1), (1, 1), (0, 0)))
    taps = [xp[:, kh:kh + H, kw:kw + W, :].reshape(B * H * W, C)
            for kh in range(3) for kw in range(3)]
    return jnp.stack(taps, axis=0)


def block_forward(p, x, h, w, cfg):
    """CvT Block.forward(x, h, w): x:(B, 1+h*w, C) with cls token first."""
    B, T, C = x.shape
    heads = cfg["num_heads"]
    assert C % heads == 0 and T == h * w + 1
    scale = float(C) ** (-0.5)                 # dim_out ** -0.5 (CvT convention)
    M = B * T
    a = p["attn"]

    # ---- attention branch ---------------------------------------------------
    xn = layernorm(x.reshape(M, C), p["ln1_g"], p["ln1_b"]).reshape(B, T, C)
    cls_n = xn[:, :1, :]                                       # (B, 1, C)
    sp_n = xn[:, 1:, :].reshape(B, h, w, C)
    # bf16 patches halve the dominant HBM traffic of the conv-projection path.
    # TODO(synk): a halo'd in-kernel tap construction would cut the 9x im2col
    # reads to ~1x; kept in XLA here for robust lowering at arbitrary H/W.
    patches = im2col_3x3_tapmajor(sp_n).astype(jnp.bfloat16)   # (9, B*h*w, C)

    # fused dw-conv + BN + q/k/v linear for the spatial tokens (one kernel)
    qkv_sp = qkv_conv_proj(patches, a["dw_w"], a["bn_scale"], a["bn_shift"],
                           a["qkv_w"]).reshape(B, h * w, 3 * C)
    # cls token bypasses the conv projections; its q/k/v linear is a tiny
    # (B,1,C)@(C,3C) glue matmul kept in XLA.
    cls_qkv = (cls_n @ a["qkv_w_cat"]).astype(jnp.bfloat16)    # (B, 1, 3C)
    qkv = jnp.concatenate([cls_qkv, qkv_sp], axis=1)           # (B, T, 3C) bf16

    # attention + output projection + residual, all in-kernel
    x = attention(qkv, x, a["wo"], a["bo"], heads, scale)

    # ---- MLP branch: norm2 + fc1 + GELU + fc2 + residual, one kernel --------
    y = mlp_block(x.reshape(M, C), p["ln2_g"], p["ln2_b"],
                  p["fc1_w"], p["fc1_b"], p["fc2_w"], p["fc2_b"])
    return y.reshape(B, T, C)


# ----------------------------------------------------------------------------
# Pure-JAX reference (f32) for correctness check
# ----------------------------------------------------------------------------
def block_forward_ref(p, x, h, w, cfg):
    B, T, C = x.shape
    heads = cfg["num_heads"]
    D = C // heads
    scale = float(C) ** (-0.5)
    a = p["attn"]

    def ln(t, g, b, eps=1e-5):
        mu = t.mean(-1, keepdims=True)
        var = ((t - mu) ** 2).mean(-1, keepdims=True)
        return (t - mu) * jax.lax.rsqrt(var + eps) * g + b

    xn = ln(x, p["ln1_g"], p["ln1_b"])
    cls_n = xn[:, :1, :]
    sp_n = xn[:, 1:, :].reshape(B, h, w, C)
    xp = jnp.pad(sp_n, ((0, 0), (1, 1), (1, 1), (0, 0)))
    taps = jnp.stack([xp[:, kh:kh + h, kw:kw + w, :]
                      for kh in range(3) for kw in range(3)], axis=0)  # (9,B,h,w,C)
    qkv = []
    for i in range(3):
        conv = (taps * a["dw_w"][i].reshape(9, 1, 1, 1, C)).sum(0)     # (B,h,w,C)
        conv = conv * a["bn_scale"][i] + a["bn_shift"][i]
        tok = jnp.concatenate([cls_n, conv.reshape(B, h * w, C)], axis=1)
        qkv.append(tok @ a["qkv_w"][i])
    q, k, v = [t.reshape(B, T, heads, D).transpose(0, 2, 1, 3) for t in qkv]
    s = jnp.einsum("bhld,bhtd->bhlt", q, k) * scale
    attn = jax.nn.softmax(s, axis=-1)
    ctx = jnp.einsum("bhlt,bhtd->bhld", attn, v)
    ctx = ctx.transpose(0, 2, 1, 3).reshape(B, T, C)
    x = x + ctx @ a["wo"] + a["bo"]
    xn2 = ln(x, p["ln2_g"], p["ln2_b"])
    hdn = jax.nn.gelu(xn2 @ p["fc1_w"] + p["fc1_b"], approximate=False)
    return x + hdn @ p["fc2_w"] + p["fc2_b"]


# ----------------------------------------------------------------------------
# Deterministic synthetic parameters (shapes from the module __init__)
# ----------------------------------------------------------------------------
def init_params(key, cfg):
    C = cfg["dim"]
    hid = int(C * cfg["mlp_ratio"])
    keys = iter(jax.random.split(key, 16))

    def nrm(shape, std=0.02):
        # TODO(synk): trunc_normal_ approximated with a plain normal * std.
        return (std * jax.random.normal(next(keys), shape)).astype(jnp.float32)

    bn_eps = 1e-5
    # eval-mode BatchNorm2d (gamma=1, beta=0, running_mean=0, running_var=1)
    gamma = jnp.ones((3, 1, C), jnp.float32)
    beta = jnp.zeros((3, 1, C), jnp.float32)
    rmean = jnp.zeros((3, 1, C), jnp.float32)
    rvar = jnp.ones((3, 1, C), jnp.float32)
    bn_scale = gamma / jnp.sqrt(rvar + bn_eps)
    bn_shift = beta - rmean * bn_scale

    qkv_w = nrm((3, C, C))                       # proj_q / proj_k / proj_v (no bias)
    attn = {
        "dw_w": nrm((3, 9, C)),                  # depthwise 3x3, tap-major
        "bn_scale": bn_scale, "bn_shift": bn_shift,
        "qkv_w": qkv_w,
        "qkv_w_cat": jnp.concatenate([qkv_w[0], qkv_w[1], qkv_w[2]], axis=1),
        "wo": nrm((C, C)), "bo": jnp.zeros((C,), jnp.float32),
    }
    return {
        "ln1_g": jnp.ones((C,), jnp.float32), "ln1_b": jnp.zeros((C,), jnp.float32),
        "ln2_g": jnp.ones((C,), jnp.float32), "ln2_b": jnp.zeros((C,), jnp.float32),
        "fc1_w": nrm((C, hid)), "fc1_b": jnp.zeros((hid,), jnp.float32),
        "fc2_w": nrm((hid, C)), "fc2_b": jnp.zeros((C,), jnp.float32),
        "attn": attn,
    }


# ----------------------------------------------------------------------------
# Main
# ----------------------------------------------------------------------------
if __name__ == "__main__":
    cfg = dict(dim=32, num_heads=4, mlp_ratio=4.0, with_cls_token=True)
    hh, ww = 4, 4
    B = 2
    T = hh * ww + 1

    key = jax.random.PRNGKey(0)
    kx, kp = jax.random.split(key)
    x = jax.random.normal(kx, (B, T, cfg["dim"]), jnp.float32)
    params = init_params(kp, cfg)

    fwd = jax.jit(functools.partial(block_forward, h=hh, w=ww, cfg=cfg))
    x_out = fwd(params, x)
    jax.block_until_ready(x_out)

    assert x_out.shape == (B, T, cfg["dim"]), x_out.shape
    assert bool(jnp.all(jnp.isfinite(x_out)))

    # correctness check against a pure-f32 JAX reference; tolerance sized for the
    # bf16 MXU operands used inside the kernels (values are O(1), err << 2e-2).
    with jax.default_matmul_precision("float32"):
        ref = jax.jit(functools.partial(block_forward_ref, h=hh, w=ww, cfg=cfg))(
            params, x)
    jax.block_until_ready(ref)
    err = float(jnp.max(jnp.abs(x_out - ref)))
    assert err < 2e-2, f"max abs err vs reference = {err}"

    print("KERNEL_OK")
</pallas_src>

<mosaic_0001>
module attributes {stable_mosaic.version = 11 : i64} {
  func.func @_layernorm_kernel(%arg0: i32, %arg1: memref<34x32xf32, #tpu.memory_space<vmem>>, %arg2: memref<1x32xf32, #tpu.memory_space<vmem>>, %arg3: memref<1x32xf32, #tpu.memory_space<vmem>>, %arg4: memref<34x32xf32, #tpu.memory_space<vmem>>) attributes {dimension_semantics = [#tpu.dimension_semantics<parallel>], iteration_bounds = array<i64: 1>, scalar_prefetch = 0 : i64, scratch_operands = 0 : i64, tpu.core_type = #tpu.core_type<tc>, window_params = [{transform_indices = @transform_0, window_bounds = array<i64: 34, 32>}, {pipeline_mode = #tpu.pipeline_mode<synchronous>, transform_indices = @transform_1, window_bounds = array<i64: 1, 32>}, {pipeline_mode = #tpu.pipeline_mode<synchronous>, transform_indices = @transform_2, window_bounds = array<i64: 1, 32>}, {transform_indices = @transform_3, window_bounds = array<i64: 34, 32>}]} {
    %c0 = arith.constant 0 : index
    %c0_0 = arith.constant 0 : index
    %0 = vector.load %arg1[%c0, %c0_0] : memref<34x32xf32, #tpu.memory_space<vmem>>, vector<34x32xf32>
    %c0_1 = arith.constant 0 : index
    %c0_2 = arith.constant 0 : index
    %1 = vector.load %arg2[%c0_1, %c0_2] : memref<1x32xf32, #tpu.memory_space<vmem>>, vector<1x32xf32>
    %c0_3 = arith.constant 0 : index
    %c0_4 = arith.constant 0 : index
    %2 = vector.load %arg3[%c0_3, %c0_4] : memref<1x32xf32, #tpu.memory_space<vmem>>, vector<1x32xf32>
    %cst = arith.constant dense<0.000000e+00> : vector<34xf32>
    %3 = vector.multi_reduction <add>, %0, %cst [1] : vector<34x32xf32> to vector<34xf32>
    %4 = vector.shape_cast %3 : vector<34xf32> to vector<34x1xf32>
    %cst_5 = arith.constant 3.200000e+01 : f32
    %5 = vector.broadcast %cst_5 : f32 to vector<34x1xf32>
    %6 = arith.divf %4, %5 : vector<34x1xf32>
    %7 = vector.broadcast %6 : vector<34x1xf32> to vector<34x32xf32>
    %8 = arith.subf %0, %7 : vector<34x32xf32>
    %9 = arith.mulf %8, %8 : vector<34x32xf32>
    %cst_6 = arith.constant dense<0.000000e+00> : vector<34xf32>
    %10 = vector.multi_reduction <add>, %9, %cst_6 [1] : vector<34x32xf32> to vector<34xf32>
    %11 = vector.shape_cast %10 : vector<34xf32> to vector<34x1xf32>
    %cst_7 = arith.constant 3.200000e+01 : f32
    %12 = vector.broadcast %cst_7 : f32 to vector<34x1xf32>
    %13 = arith.divf %11, %12 : vector<34x1xf32>
    %cst_8 = arith.constant 9.99999974E-6 : f32
    %14 = vector.broadcast %cst_8 : f32 to vector<34x1xf32>
    %15 = arith.addf %13, %14 : vector<34x1xf32>
    %16 = math.rsqrt %15 : vector<34x1xf32>
    %17 = vector.broadcast %16 : vector<34x1xf32> to vector<34x32xf32>
    %18 = arith.mulf %8, %17 : vector<34x32xf32>
    %19 = vector.broadcast %1 : vector<1x32xf32> to vector<34x32xf32>
    %20 = arith.mulf %18, %19 : vector<34x32xf32>
    %21 = vector.broadcast %2 : vector<1x32xf32> to vector<34x32xf32>
    %22 = arith.addf %20, %21 : vector<34x32xf32>
    %c0_9 = arith.constant 0 : index
    %c0_10 = arith.constant 0 : index
    %23 = vector.load %arg4[%c0_9, %c0_10] : memref<34x32xf32, #tpu.memory_space<vmem>>, vector<34x32xf32>
    tpu.vector_store %arg4[%c0_9, %c0_10], %22 {strides = array<i32>} : memref<34x32xf32, #tpu.memory_space<vmem>>, vector<34x32xf32>,
    return
  }
  func.func @transform_0(%arg0: i32) -> (i32, i32) {
    %c0_i32 = arith.constant 0 : i32
    %c0_i32_0 = arith.constant 0 : i32
    return %arg0, %c0_i32 : i32, i32
  }
  func.func @transform_1(%arg0: i32) -> (i32, i32) {
    %c0_i32 = arith.constant 0 : i32
    %c0_i32_0 = arith.constant 0 : i32
    %c0_i32_1 = arith.constant 0 : i32
    return %c0_i32, %c0_i32_0 : i32, i32
  }
  func.func @transform_2(%arg0: i32) -> (i32, i32) {
    %c0_i32 = arith.constant 0 : i32
    %c0_i32_0 = arith.constant 0 : i32
    %c0_i32_1 = arith.constant 0 : i32
    return %c0_i32, %c0_i32_0 : i32, i32
  }
  func.func @transform_3(%arg0: i32) -> (i32, i32) {
    %c0_i32 = arith.constant 0 : i32
    %c0_i32_0 = arith.constant 0 : i32
    return %arg0, %c0_i32 : i32, i32
  }
}

module attributes {stable_mosaic.version = 11 : i64} {
  func.func @_qkv_conv_proj_kernel(%arg0: i32, %arg1: memref<9x32x32xbf16, #tpu.memory_space<vmem>>, %arg2: memref<27x1x32xf32, #tpu.memory_space<vmem>>, %arg3: memref<3x1x32xf32, #tpu.memory_space<vmem>>, %arg4: memref<3x1x32xf32, #tpu.memory_space<vmem>>, %arg5: memref<3x32x32xbf16, #tpu.memory_space<vmem>>, %arg6: memref<32x96xbf16, #tpu.memory_space<vmem>>) attributes {dimension_semantics = [#tpu.dimension_semantics<parallel>], iteration_bounds = array<i64: 1>, scalar_prefetch = 0 : i64, scratch_operands = 0 : i64, tpu.core_type = #tpu.core_type<tc>, window_params = [{transform_indices = @transform_0, window_bounds = array<i64: 9, 32, 32>}, {pipeline_mode = #tpu.pipeline_mode<synchronous>, transform_indices = @transform_1, window_bounds = array<i64: 27, 1, 32>}, {pipeline_mode = #tpu.pipeline_mode<synchronous>, transform_indices = @transform_2, window_bounds = array<i64: 3, 1, 32>}, {pipeline_mode = #tpu.pipeline_mode<synchronous>, transform_indices = @transform_3, window_bounds = array<i64: 3, 1, 32>}, {pipeline_mode = #tpu.pipeline_mode<synchronous>, transform_indices = @transform_4, window_bounds = array<i64: 3, 32, 32>}, {transform_indices = @transform_5, window_bounds = array<i64: 32, 96>}]} {
    %c0 = arith.constant 0 : index
    %c0_0 = arith.constant 0 : index
    %c0_1 = arith.constant 0 : index
    %0 = vector.load %arg1[%c0, %c0_0, %c0_1] : memref<9x32x32xbf16, #tpu.memory_space<vmem>>, vector<1x32x32xbf16>
    %1 = vector.shape_cast %0 : vector<1x32x32xbf16> to vector<32x32xbf16>
    %2 = arith.extf %1 : vector<32x32xbf16> to vector<32x32xf32>
    %c0_2 = arith.constant 0 : index
    %c0_3 = arith.constant 0 : index
    %c0_4 = arith.constant 0 : index
    %3 = vector.load %arg2[%c0_2, %c0_3, %c0_4] : memref<27x1x32xf32, #tpu.memory_space<vmem>>, vector<1x1x32xf32>
    %4 = vector.shape_cast %3 : vector<1x1x32xf32> to vector<1x32xf32>
    %5 = vector.broadcast %4 : vector<1x32xf32> to vector<32x32xf32>
    %6 = arith.mulf %2, %5 : vector<32x32xf32>
    %c1 = arith.constant 1 : index
    %c0_5 = arith.constant 0 : index
    %c0_6 = arith.constant 0 : index
    %7 = vector.load %arg1[%c1, %c0_5, %c0_6] : memref<9x32x32xbf16, #tpu.memory_space<vmem>>, vector<1x32x32xbf16>
    %8 = vector.shape_cast %7 : vector<1x32x32xbf16> to vector<32x32xbf16>
    %9 = arith.extf %8 : vector<32x32xbf16> to vector<32x32xf32>
    %c1_7 = arith.constant 1 : index
    %c0_8 = arith.constant 0 : index
    %c0_9 = arith.constant 0 : index
    %10 = vector.load %arg2[%c1_7, %c0_8, %c0_9] : memref<27x1x32xf32, #tpu.memory_space<vmem>>, vector<1x1x32xf32>
    %11 = vector.shape_cast %10 : vector<1x1x32xf32> to vector<1x32xf32>
    %12 = vector.broadcast %11 : vector<1x32xf32> to vector<32x32xf32>
    %13 = arith.mulf %9, %12 : vector<32x32xf32>
    %14 = arith.addf %6, %13 : vector<32x32xf32>
    %c2 = arith.constant 2 : index
    %c0_10 = arith.constant 0 : index
    %c0_11 = arith.constant 0 : index
    %15 = vector.load %arg1[%c2, %c0_10, %c0_11] : memref<9x32x32xbf16, #tpu.memory_space<vmem>>, vector<1x32x32xbf16>
    %16 = vector.shape_cast %15 : vector<1x32x32xbf16> to vector<32x32xbf16>
    %17 = arith.extf %16 : vector<32x32xbf16> to vector<32x32xf32>
    %c2_12 = arith.constant 2 : index
    %c0_13 = arith.constant 0 : index
    %c0_14 = arith.constant 0 : index
    %18 = vector.load %arg2[%c2_12, %c0_13, %c0_14] : memref<27x1x32xf32, #tpu.memory_space<vmem>>, vector<1x1x32xf32>
    %19 = vector.shape_cast %18 : vector<1x1x32xf32> to vector<1x32xf32>
    %20 = vector.broadcast %19 : vector<1x32xf32> to vector<32x32xf32>
    %21 = arith.mulf %17, %20 : vector<32x32xf32>
    %22 = arith.addf %14, %21 : vector<32x32xf32>
    %c3 = arith.constant 3 : index
    %c0_15 = arith.constant 0 : index
    %c0_16 = arith.constant 0 : index
    %23 = vector.load %arg1[%c3, %c0_15, %c0_16] : memref<9x32x32xbf16, #tpu.memory_space<vmem>>, vector<1x32x32xbf16>
    %24 = vector.shape_cast %23 : vector<1x32x32xbf16> to vector<32x32xbf16>
    %25 = arith.extf %24 : vector<32x32xbf16> to vector<32x32xf32>
    %c3_17 = arith.constant 3 : index
    %c0_18 = arith.constant 0 : index
    %c0_19 = arith.constant 0 : index
    %26 = vector.load %arg2[%c3_17, %c0_18, %c0_19] : memref<27x1x32xf32, #tpu.memory_space<vmem>>, vector<1x1x32xf32>
    %27 = vector.shape_cast %26 : vector<1x1x32xf32> to vector<1x32xf32>
    %28 = vector.broadcast %27 : vector<1x32xf32> to vector<32x32xf32>
    %29 = arith.mulf %25, %28 : vector<32x32xf32>
    %30 = arith.addf %22, %29 : vector<32x32xf32>
    %c4 = arith.constant 4 : index
    %c0_20 = arith.constant 0 : index
    %c0_21 = arith.constant 0 : index
    %31 = vector.load %arg1[%c4, %c0_20, %c0_21] : memref<9x32x32xbf16, #tpu.memory_space<vmem>>, vector<1x32x32xbf16>
    %32 = vector.shape_cast %31 : vector<1x32x32xbf16> to vector<32x32xbf16>
    %33 = arith.extf %32 : vector<32x32xbf16> to vector<32x32xf32>
    %c4_22 = arith.constant 4 : index
    %c0_23 = arith.constant 0 : index
    %c0_24 = arith.constant 0 : index
    %34 = vector.load %arg2[%c4_22, %c0_23, %c0_24] : memref<27x1x32xf32, #tpu.memory_space<vmem>>, vector<1x1x32xf32>
    %35 = vector.shape_cast %34 : vector<1x1x32xf32> to vector<1x32xf32>
    %36 = vector.broadcast %35 : vector<1x32xf32> to vector<32x32xf32>
    %37 = arith.mulf %33, %36 : vector<32x32xf32>
    %38 = arith.addf %30, %37 : vector<32x32xf32>
    %c5 = arith.constant 5 : index
    %c0_25 = arith.constant 0 : index
    %c0_26 = arith.constant 0 : index
    %39 = vector.load %arg1[%c5, %c0_25, %c0_26] : memref<9x32x32xbf16, #tpu.memory_space<vmem>>, vector<1x32x32xbf16>
    %40 = vector.shape_cast %39 : vector<1x32x32xbf16> to vector<32x32xbf16>
    %41 = arith.extf %40 : vector<32x32xbf16> to vector<32x32xf32>
    %c5_27 = arith.constant 5 : index
    %c0_28 = arith.constant 0 : index
    %c0_29 = arith.constant 0 : index
    %42 = vector.load %arg2[%c5_27, %c0_28, %c0_29] : memref<27x1x32xf32, #tpu.memory_space<vmem>>, vector<1x1x32xf32>
    %43 = vector.shape_cast %42 : vector<1x1x32xf32> to vector<1x32xf32>
    %44 = vector.broadcast %43 : vector<1x32xf32> to vector<32x32xf32>
    %45 = arith.mulf %41, %44 : vector<32x32xf32>
    %46 = arith.addf %38, %45 : vector<32x32xf32>
    %c6 = arith.constant 6 : index
    %c0_30 = arith.constant 0 : index
    %c0_31 = arith.constant 0 : index
    %47 = vector.load %arg1[%c6, %c0_30, %c0_31] : memref<9x32x32xbf16, #tpu.memory_space<vmem>>, vector<1x32x32xbf16>
    %48 = vector.shape_cast %47 : vector<1x32x32xbf16> to vector<32x32xbf16>
    %49 = arith.extf %48 : vector<32x32xbf16> to vector<32x32xf32>
    %c6_32 = arith.constant 6 : index
    %c0_33 = arith.constant 0 : index
    %c0_34 = arith.constant 0 : index
    %50 = vector.load %arg2[%c6_32, %c0_33, %c0_34] : memref<27x1x32xf32, #tpu.memory_space<vmem>>, vector<1x1x32xf32>
    %51 = vector.shape_cast %50 : vector<1x1x32xf32> to vector<1x32xf32>
    %52 = vector.broadcast %51 : vector<1x32xf32> to vector<32x32xf32>
    %53 = arith.mulf %49, %52 : vector<32x32xf32>
    %54 = arith.addf %46, %53 : vector<32x32xf32>
    %c7 = arith.constant 7 : index
    %c0_35 = arith.constant 0 : index
    %c0_36 = arith.constant 0 : index
    %55 = vector.load %arg1[%c7, %c0_35, %c0_36] : memref<9x32x32xbf16, #tpu.memory_space<vmem>>, vector<1x32x32xbf16>
    %56 = vector.shape_cast %55 : vector<1x32x32xbf16> to vector<32x32xbf16>
    %57 = arith.extf %56 : vector<32x32xbf16> to vector<32x32xf32>
    %c7_37 = arith.constant 7 : index
    %c0_38 = arith.constant 0 : index
    %c0_39 = arith.constant 0 : index
    %58 = vector.load %arg2[%c7_37, %c0_38, %c0_39] : memref<27x1x32xf32, #tpu.memory_space<vmem>>, vector<1x1x32xf32>
    %59 = vector.shape_cast %58 : vector<1x1x32xf32> to vector<1x32xf32>
    %60 = vector.broadcast %59 : vector<1x32xf32> to vector<32x32xf32>
    %61 = arith.mulf %57, %60 : vector<32x32xf32>
    %62 = arith.addf %54, %61 : vector<32x32xf32>
    %c8 = arith.constant 8 : index
    %c0_40 = arith.constant 0 : index
    %c0_41 = arith.constant 0 : index
    %63 = vector.load %arg1[%c8, %c0_40, %c0_41] : memref<9x32x32xbf16, #tpu.memory_space<vmem>>, vector<1x32x32xbf16>
    %64 = vector.shape_cast %63 : vector<1x32x32xbf16> to vector<32x32xbf16>
    %65 = arith.extf %64 : vector<32x32xbf16> to vector<32x32xf32>
    %c8_42 = arith.constant 8 : index
    %c0_43 = arith.constant 0 : index
    %c0_44 = arith.constant 0 : index
    %66 = vector.load %arg2[%c8_42, %c0_43, %c0_44] : memref<27x1x32xf32, #tpu.memory_space<vmem>>, vector<1x1x32xf32>
    %67 = vector.shape_cast %66 : vector<1x1x32xf32> to vector<1x32xf32>
    %68 = vector.broadcast %67 : vector<1x32xf32> to vector<32x32xf32>
    %69 = arith.mulf %65, %68 : vector<32x32xf32>
    %70 = arith.addf %62, %69 : vector<32x32xf32>
    %c0_45 = arith.constant 0 : index
    %c0_46 = arith.constant 0 : index
    %c0_47 = arith.constant 0 : index
    %71 = vector.load %arg3[%c0_45, %c0_46, %c0_47] : memref<3x1x32xf32, #tpu.memory_space<vmem>>, vector<1x1x32xf32>
    %72 = vector.shape_cast %71 : vector<1x1x32xf32> to vector<1x32xf32>
    %73 = vector.broadcast %72 : vector<1x32xf32> to vector<32x32xf32>
    %74 = arith.mulf %70, %73 : vector<32x32xf32>
    %c0_48 = arith.constant 0 : index
    %c0_49 = arith.constant 0 : index
    %c0_50 = arith.constant 0 : index
    %75 = vector.load %arg4[%c0_48, %c0_49, %c0_50] : memref<3x1x32xf32, #tpu.memory_space<vmem>>, vector<1x1x32xf32>
    %76 = vector.shape_cast %75 : vector<1x1x32xf32> to vector<1x32xf32>
    %77 = vector.broadcast %76 : vector<1x32xf32> to vector<32x32xf32>
    %78 = arith.addf %74, %77 : vector<32x32xf32>
    %79 = arith.truncf %78 : vector<32x32xf32> to vector<32x32xbf16>
    %c0_51 = arith.constant 0 : index
    %c0_52 = arith.constant 0 : index
    %c0_53 = arith.constant 0 : index
    %80 = vector.load %arg5[%c0_51, %c0_52, %c0_53] : memref<3x32x32xbf16, #tpu.memory_space<vmem>>, vector<1x32x32xbf16>
    %81 = vector.shape_cast %80 : vector<1x32x32xbf16> to vector<32x32xbf16>
    %cst = arith.constant dense<0.000000e+00> : vector<32x32xf32>
    %82 = tpu.matmul %79, %81, %cst {dimension_numbers = #tpu.dot_dimension_numbers<[1], [0], [0], [1], [0, 0, 1, 1], [], []>} : vector<32x32xbf16>, vector<32x32xbf16>, vector<32x32xf32> -> vector<32x32xf32>
    %c0_54 = arith.constant 0 : index
    %c0_55 = arith.constant 0 : index
    %c0_56 = arith.constant 0 : index
    %83 = vector.load %arg1[%c0_54, %c0_55, %c0_56] : memref<9x32x32xbf16, #tpu.memory_space<vmem>>, vector<1x32x32xbf16>
    %84 = vector.shape_cast %83 : vector<1x32x32xbf16> to vector<32x32xbf16>
    %85 = arith.extf %84 : vector<32x32xbf16> to vector<32x32xf32>
    %c9 = arith.constant 9 : index
    %c0_57 = arith.constant 0 : index
    %c0_58 = arith.constant 0 : index
    %86 = vector.load %arg2[%c9, %c0_57, %c0_58] : memref<27x1x32xf32, #tpu.memory_space<vmem>>, vector<1x1x32xf32>
    %87 = vector.shape_cast %86 : vector<1x1x32xf32> to vector<1x32xf32>
    %88 = vector.broadcast %87 : vector<1x32xf32> to vector<32x32xf32>
    %89 = arith.mulf %85, %88 : vector<32x32xf32>
    %c1_59 = arith.constant 1 : index
    %c0_60 = arith.constant 0 : index
    %c0_61 = arith.constant 0 : index
    %90 = vector.load %arg1[%c1_59, %c0_60, %c0_61] : memref<9x32x32xbf16, #tpu.memory_space<vmem>>, vector<1x32x32xbf16>
    %91 = vector.shape_cast %90 : vector<1x32x32xbf16> to vector<32x32xbf16>
    %92 = arith.extf %91 : vector<32x32xbf16> to vector<32x32xf32>
    %c10 = arith.constant 10 : index
    %c0_62 = arith.constant 0 : index
    %c0_63 = arith.constant 0 : index
    %93 = vector.load %arg2[%c10, %c0_62, %c0_63] : memref<27x1x32xf32, #tpu.memory_space<vmem>>, vector<1x1x32xf32>
    %94 = vector.shape_cast %93 : vector<1x1x32xf32> to vector<1x32xf32>
    %95 = vector.broadcast %94 : vector<1x32xf32> to vector<32x32xf32>
    %96 = arith.mulf %92, %95 : vector<32x32xf32>
    %97 = arith.addf %89, %96 : vector<32x32xf32>
    %c2_64 = arith.constant 2 : index
    %c0_65 = arith.constant 0 : index
    %c0_66 = arith.constant 0 : index
    %98 = vector.load %arg1[%c2_64, %c0_65, %c0_66] : memref<9x32x32xbf16, #tpu.memory_space<vmem>>, vector<1x32x32xbf16>
    %99 = vector.shape_cast %98 : vector<1x32x32xbf16> to vector<32x32xbf16>
    %100 = arith.extf %99 : vector<32x32xbf16> to vector<32x32xf32>
    %c11 = arith.constant 11 : index
    %c0_67 = arith.constant 0 : index
    %c0_68 = arith.constant 0 : index
    %101 = vector.load %arg2[%c11, %c0_67, %c0_68] : memref<27x1x32xf32, #tpu.memory_space<vmem>>, vector<1x1x32xf32>
    %102 = vector.shape_cast %101 : vector<1x1x32xf32> to vector<1x32xf32>
    %103 = vector.broadcast %102 : vector<1x32xf32> to vector<32x32xf32>
    %104 = arith.mulf %100, %103 : vector<32x32xf32>
    %105 = arith.addf %97, %104 : vector<32x32xf32>
    %c3_69 = arith.constant 3 : index
    %c0_70 = arith.constant 0 : index
    %c0_71 = arith.constant 0 : index
    %106 = vector.load %arg1[%c3_69, %c0_70, %c0_71] : memref<9x32x32xbf16, #tpu.memory_space<vmem>>, vector<1x32x32xbf16>
    %107 = vector.shape_cast %106 : vector<1x32x32xbf16> to vector<32x32xbf16>
    %108 = arith.extf %107 : vector<32x32xbf16> to vector<32x32xf32>
    %c12 = arith.constant 12 : index
    %c0_72 = arith.constant 0 : index
    %c0_73 = arith.constant 0 : index
    %109 = vector.load %arg2[%c12, %c0_72, %c0_73] : memref<27x1x32xf32, #tpu.memory_space<vmem>>, vector<1x1x32xf32>
    %110 = vector.shape_cast %109 : vector<1x1x32xf32> to vector<1x32xf32>
    %111 = vector.broadcast %110 : vector<1x32xf32> to vector<32x32xf32>
    %112 = arith.mulf %108, %111 : vector<32x32xf32>
    %113 = arith.addf %105, %112 : vector<32x32xf32>
    %c4_74 = arith.constant 4 : index
    %c0_75 = arith.constant 0 : index
    %c0_76 = arith.constant 0 : index
    %114 = vector.load %arg1[%c4_74, %c0_75, %c0_76] : memref<9x32x32xbf16, #tpu.memory_space<vmem>>, vector<1x32x32xbf16>
    %115 = vector.shape_cast %114 : vector<1x32x32xbf16> to vector<32x32xbf16>
    %116 = arith.extf %115 : vector<32x32xbf16> to vector<32x32xf32>
    %c13 = arith.constant 13 : index
    %c0_77 = arith.constant 0 : index
    %c0_78 = arith.constant 0 : index
    %117 = vector.load %arg2[%c13, %c0_77, %c0_78] : memref<27x1x32xf32, #tpu.memory_space<vmem>>, vector<1x1x32xf32>
    %118 = vector.shape_cast %117 : vector<1x1x32xf32> to vector<1x32xf32>
    %119 = vector.broadcast %118 : vector<1x32xf32> to vector<32x32xf32>
    %120 = arith.mulf %116, %119 : vector<32x32xf32>
    %121 = arith.addf %113, %120 : vector<32x32xf32>
    %c5_79 = arith.constant 5 : index
    %c0_80 = arith.constant 0 : index
    %c0_81 = arith.constant 0 : index
    %122 = vector.load %arg1[%c5_79, %c0_80, %c0_81] : memref<9x32x32xbf16, #tpu.memory_space<vmem>>, vector<1x32x32xbf16>
    %123 = vector.shape_cast %122 : vector<1x32x32xbf16> to vector<32x32xbf16>
    %124 = arith.extf %123 : vector<32x32xbf16> to vector<32x32xf32>
    %c14 = arith.constant 14 : index
    %c0_82 = arith.constant 0 : index
    %c0_83 = arith.constant 0 : index
    %125 = vector.load %arg2[%c14, %c0_82, %c0_83] : memref<27x1x32xf32, #tpu.memory_space<vmem>>, vector<1x1x32xf32>
    %126 = vector.shape_cast %125 : vector<1x1x32xf32> to vector<1x32xf32>
    %127 = vector.broadcast %126 : vector<1x32xf32> to vector<32x32xf32>
    %128 = arith.mulf %124, %127 : vector<32x32xf32>
    %129 = arith.addf %121, %128 : vector<32x32xf32>
    %c6_84 = arith.constant 6 : index
    %c0_85 = arith.constant 0 : index
    %c0_86 = arith.constant 0 : index
    %130 = vector.load %arg1[%c6_84, %c0_85, %c0_86] : memref<9x32x32xbf16, #tpu.memory_space<vmem>>, vector<1x32x32xbf16>
    %131 = vector.shape_cast %130 : vector<1x32x32xbf16> to vector<32x32xbf16>
    %132 = arith.extf %131 : vector<32x32xbf16> to vector<32x32xf32>
    %c15 = arith.constant 15 : index
    %c0_87 = arith.constant 0 : index
    %c0_88 = arith.constant 0 : index
    %133 = vector.load %arg2[%c15, %c0_87, %c0_88] : memref<27x1x32xf32, #tpu.memory_space<vmem>>, vector<1x1x32xf32>
    %134 = vector.shape_cast %133 : vector<1x1x32xf32> to vector<1x32xf32>
    %135 = vector.broadcast %134 : vector<1x32xf32> to vector<32x32xf32>
    %136 = arith.mulf %132, %135 : vector<32x32xf32>
    %137 = arith.addf %129, %136 : vector<32x32xf32>
    %c7_89 = arith.constant 7 : index
    %c0_90 = arith.constant 0 : index
    %c0_91 = arith.constant 0 : index
    %138 = vector.load %arg1[%c7_89, %c0_90, %c0_91] : memref<9x32x32xbf16, #tpu.memory_space<vmem>>, vector<1x32x32xbf16>
    %139 = vector.shape_cast %138 : vector<1x32x32xbf16> to vector<32x32xbf16>
    %140 = arith.extf %139 : vector<32x32xbf16> to vector<32x32xf32>
    %c16 = arith.constant 16 : index
    %c0_92 = arith.constant 0 : index
    %c0_93 = arith.constant 0 : index
    %141 = vector.load %arg2[%c16, %c0_92, %c0_93] : memref<27x1x32xf32, #tpu.memory_space<vmem>>, vector<1x1x32xf32>
    %142 = vector.shape_cast %141 : vector<1x1x32xf32> to vector<1x32xf32>
    %143 = vector.broadcast %142 : vector<1x32xf32> to vector<32x32xf32>
    %144 = arith.mulf %140, %143 : vector<32x32xf32>
    %145 = arith.addf %137, %144 : vector<32x32xf32>
    %c8_94 = arith.constant 8 : index
    %c0_95 = arith.constant 0 : index
    %c0_96 = arith.constant 0 : index
    %146 = vector.load %arg1[%c8_94, %c0_95, %c0_96] : memref<9x32x32xbf16, #tpu.memory_space<vmem>>, vector<1x32x32xbf16>
    %147 = vector.shape_cast %146 : vector<1x32x32xbf16> to vector<32x32xbf16>
    %148 = arith.extf %147 : vector<32x32xbf16> to vector<32x32xf32>
    %c17 = arith.constant 17 : index
    %c0_97 = arith.constant 0 : index
    %c0_98 = arith.constant 0 : index
    %149 = vector.load %arg2[%c17, %c0_97, %c0_98] : memref<27x1x32xf32, #tpu.memory_space<vmem>>, vector<1x1x32xf32>
    %150 = vector.shape_cast %149 : vector<1x1x32xf32> to vector<1x32xf32>
    %151 = vector.broadcast %150 : vector<1x32xf32> to vector<32x32xf32>
    %152 = arith.mulf %148, %151 : vector<32x32xf32>
    %153 = arith.addf %145, %152 : vector<32x32xf32>
    %c1_99 = arith.constant 1 : index
    %c0_100 = arith.constant 0 : index
    %c0_101 = arith.constant 0 : index
    %154 = vector.load %arg3[%c1_99, %c0_100, %c0_101] : memref<3x1x32xf32, #tpu.memory_space<vmem>>, vector<1x1x32xf32>
    %155 = vector.shape_cast %154 : vector<1x1x32xf32> to vector<1x32xf32>
    %156 = vector.broadcast %155 : vector<1x32xf32> to vector<32x32xf32>
    %157 = arith.mulf %153, %156 : vector<32x32xf32>
    %c1_102 = arith.constant 1 : index
    %c0_103 = arith.constant 0 : index
    %c0_104 = arith.constant 0 : index
    %158 = vector.load %arg4[%c1_102, %c0_103, %c0_104] : memref<3x1x32xf32, #tpu.memory_space<vmem>>, vector<1x1x32xf32>
    %159 = vector.shape_cast %158 : vector<1x1x32xf32> to vector<1x32xf32>
    %160 = vector.broadcast %159 : vector<1x32xf32> to vector<32x32xf32>
    %161 = arith.addf %157, %160 : vector<32x32xf32>
    %162 = arith.truncf %161 : vector<32x32xf32> to vector<32x32xbf16>
    %c1_105 = arith.constant 1 : index
    %c0_106 = arith.constant 0 : index
    %c0_107 = arith.constant 0 : index
    %163 = vector.load %arg5[%c1_105, %c0_106, %c0_107] : memref<3x32x32xbf16, #tpu.memory_space<vmem>>, vector<1x32x32xbf16>
    %164 = vector.shape_cast %163 : vector<1x32x32xbf16> to vector<32x32xbf16>
    %cst_108 = arith.constant dense<0.000000e+00> : vector<32x32xf32>
    %165 = tpu.matmul %162, %164, %cst_108 {dimension_numbers = #tpu.dot_dimension_numbers<[1], [0], [0], [1], [0, 0, 1, 1], [], []>} : vector<32x32xbf16>, vector<32x32xbf16>, vector<32x32xf32> -> vector<32x32xf32>
    %c0_109 = arith.constant 0 : index
    %c0_110 = arith.constant 0 : index
    %c0_111 = arith.constant 0 : index
    %166 = vector.load %arg1[%c0_109, %c0_110, %c0_111] : memref<9x32x32xbf16, #tpu.memory_space<vmem>>, vector<1x32x32xbf16>
    %167 = vector.shape_cast %166 : vector<1x32x32xbf16> to vector<32x32xbf16>
    %168 = arith.extf %167 : vector<32x32xbf16> to vector<32x32xf32>
    %c18 = arith.constant 18 : index
    %c0_112 = arith.constant 0 : index
    %c0_113 = arith.constant 0 : index
    %169 = vector.load %arg2[%c18, %c0_112, %c0_113] : memref<27x1x32xf32, #tpu.memory_space<vmem>>, vector<1x1x32xf32>
    %170 = vector.shape_cast %169 : vector<1x1x32xf32> to vector<1x32xf32>
    %171 = vector.broadcast %170 : vector<1x32xf32> to vector<32x32xf32>
    %172 = arith.mulf %168, %171 : vector<32x32xf32>
    %c1_114 = arith.constant 1 : index
    %c0_115 = arith.constant 0 : index
    %c0_116 = arith.constant 0 : index
    %173 = vector.load %arg1[%c1_114, %c0_115, %c0_116] : memref<9x32x32xbf16, #tpu.memory_space<vmem>>, vector<1x32x32xbf16>
    %174 = vector.shape_cast %173 : vector<1x32x32xbf16> to vector<32x32xbf16>
    %175 = arith.extf %174 : vector<32x32xbf16> to vector<32x32xf32>
    %c19 = arith.constant 19 : index
    %c0_117 = arith.constant 0 : index
    %c0_118 = arith.constant 0 : index
    %176 = vector.load %arg2[%c19, %c0_117, %c0_118] : memref<27x1x32xf32, #tpu.memory_space<vmem>>, vector<1x1x32xf32>
    %177 = vector.shape_cast %176 : vector<1x1x32xf32> to vector<1x32xf32>
    %178 = vector.broadcast %177 : vector<1x32xf32> to vector<32x32xf32>
    %179 = arith.mulf %175, %178 : vector<32x32xf32>
    %180 = arith.addf %172, %179 : vector<32x32xf32>
    %c2_119 = arith.constant 2 : index
    %c0_120 = arith.constant 0 : index
    %c0_121 = arith.constant 0 : index
    %181 = vector.load %arg1[%c2_119, %c0_120, %c0_121] : memref<9x32x32xbf16, #tpu.memory_space<vmem>>, vector<1x32x32xbf16>
    %182 = vector.shape_cast %181 : vector<1x32x32xbf16> to vector<32x32xbf16>
    %183 = arith.extf %182 : vector<32x32xbf16> to vector<32x32xf32>
    %c20 = arith.constant 20 : index
    %c0_122 = arith.constant 0 : index
    %c0_123 = arith.constant 0 : index
    %184 = vector.load %arg2[%c20, %c0_122, %c0_123] : memref<27x1x32xf32, #tpu.memory_space<vmem>>, vector<1x1x32xf32>
    %185 = vector.shape_cast %184 : vector<1x1x32xf32> to vector<1x32xf32>
    %186 = vector.broadcast %185 : vector<1x32xf32> to vector<32x32xf32>
    %187 = arith.mulf %183, %186 : vector<32x32xf32>
    %188 = arith.addf %180, %187 : vector<32x32xf32>
    %c3_124 = arith.constant 3 : index
    %c0_125 = arith.constant 0 : index
    %c0_126 = arith.constant 0 : index
    %189 = vector.load %arg1[%c3_124, %c0_125, %c0_126] : memref<9x32x32xbf16, #tpu.memory_space<vmem>>, vector<1x32x32xbf16>
    %190 = vector.shape_cast %189 : vector<1x32x32xbf16> to vector<32x32xbf16>
    %191 = arith.extf %190 : vector<32x32xbf16> to vector<32x32xf32>
    %c21 = arith.constant 21 : index
    %c0_127 = arith.constant 0 : index
    %c0_128 = arith.constant 0 : index
    %192 = vector.load %arg2[%c21, %c0_127, %c0_128] : memref<27x1x32xf32, #tpu.memory_space<vmem>>, vector<1x1x32xf32>
    %193 = vector.shape_cast %192 : vector<1x1x32xf32> to vector<1x32xf32>
    %194 = vector.broadcast %193 : vector<1x32xf32> to vector<32x32xf32>
    %195 = arith.mulf %191, %194 : vector<32x32xf32>
    %196 = arith.addf %188, %195 : vector<32x32xf32>
    %c4_129 = arith.constant 4 : index
    %c0_130 = arith.constant 0 : index
    %c0_131 = arith.constant 0 : index
    %197 = vector.load %arg1[%c4_129, %c0_130, %c0_131] : memref<9x32x32xbf16, #tpu.memory_space<vmem>>, vector<1x32x32xbf16>
    %198 = vector.shape_cast %197 : vector<1x32x32xbf16> to vector<32x32xbf16>
    %199 = arith.extf %198 : vector<32x32xbf16> to vector<32x32xf32>
    %c22 = arith.constant 22 : index
    %c0_132 = arith.constant 0 : index
    %c0_133 = arith.constant 0 : index
    %200 = vector.load %arg2[%c22, %c0_132, %c0_133] : memref<27x1x32xf32, #tpu.memory_space<vmem>>, vector<1x1x32xf32>
    %201 = vector.shape_cast %200 : vector<1x1x32xf32> to vector<1x32xf32>
    %202 = vector.broadcast %201 : vector<1x32xf32> to vector<32x32xf32>
    %203 = arith.mulf %199, %202 : vector<32x32xf32>
    %204 = arith.addf %196, %203 : vector<32x32xf32>
    %c5_134 = arith.constant 5 : index
    %c0_135 = arith.constant 0 : index
    %c0_136 = arith.constant 0 : index
    %205 = vector.load %arg1[%c5_134, %c0_135, %c0_136] : memref<9x32x32xbf16, #tpu.memory_space<vmem>>, vector<1x32x32xbf16>
    %206 = vector.shape_cast %205 : vector<1x32x32xbf16> to vector<32x32xbf16>
    %207 = arith.extf %206 : vector<32x32xbf16> to vector<32x32xf32>
    %c23 = arith.constant 23 : index
    %c0_137 = arith.constant 0 : index
    %c0_138 = arith.constant 0 : index
    %208 = vector.load %arg2[%c23, %c0_137, %c0_138] : memref<27x1x32xf32, #tpu.memory_space<vmem>>, vector<1x1x32xf32>
    %209 = vector.shape_cast %208 : vector<1x1x32xf32> to vector<1x32xf32>
    %210 = vector.broadcast %209 : vector<1x32xf32> to vector<32x32xf32>
    %211 = arith.mulf %207, %210 : vector<32x32xf32>
    %212 = arith.addf %204, %211 : vector<32x32xf32>
    %c6_139 = arith.constant 6 : index
    %c0_140 = arith.constant 0 : index
    %c0_141 = arith.constant 0 : index
    %213 = vector.load %arg1[%c6_139, %c0_140, %c0_141] : memref<9x32x32xbf16, #tpu.memory_space<vmem>>, vector<1x32x32xbf16>
    %214 = vector.shape_cast %213 : vector<1x32x32xbf16> to vector<32x32xbf16>
    %215 = arith.extf %214 : vector<32x32xbf16> to vector<32x32xf32>
    %c24 = arith.constant 24 : index
    %c0_142 = arith.constant 0 : index
    %c0_143 = arith.constant 0 : index
    %216 = vector.load %arg2[%c24, %c0_142, %c0_143] : memref<27x1x32xf32, #tpu.memory_space<vmem>>, vector<1x1x32xf32>
    %217 = vector.shape_cast %216 : vector<1x1x32xf32> to vector<1x32xf32>
    %218 = vector.broadcast %217 : vector<1x32xf32> to vector<32x32xf32>
    %219 = arith.mulf %215, %218 : vector<32x32xf32>
    %220 = arith.addf %212, %219 : vector<32x32xf32>
    %c7_144 = arith.constant 7 : index
    %c0_145 = arith.constant 0 : index
    %c0_146 = arith.constant 0 : index
    %221 = vector.load %arg1[%c7_144, %c0_145, %c0_146] : memref<9x32x32xbf16, #tpu.memory_space<vmem>>, vector<1x32x32xbf16>
    %222 = vector.shape_cast %221 : vector<1x32x32xbf16> to vector<32x32xbf16>
    %223 = arith.extf %222 : vector<32x32xbf16> to vector<32x32xf32>
    %c25 = arith.constant 25 : index
    %c0_147 = arith.constant 0 : index
    %c0_148 = arith.constant 0 : index
    %224 = vector.load %arg2[%c25, %c0_147, %c0_148] : memref<27x1x32xf32, #tpu.memory_space<vmem>>, vector<1x1x32xf32>
    %225 = vector.shape_cast %224 : vector<1x1x32xf32> to vector<1x32xf32>
    %226 = vector.broadcast %225 : vector<1x32xf32> to vector<32x32xf32>
    %227 = arith.mulf %223, %226 : vector<32x32xf32>
    %228 = arith.addf %220, %227 : vector<32x32xf32>
    %c8_149 = arith.constant 8 : index
    %c0_150 = arith.constant 0 : index
    %c0_151 = arith.constant 0 : index
    %229 = vector.load %arg1[%c8_149, %c0_150, %c0_151] : memref<9x32x32xbf16, #tpu.memory_space<vmem>>, vector<1x32x32xbf16>
    %230 = vector.shape_cast %229 : vector<1x32x32xbf16> to vector<32x32xbf16>
    %231 = arith.extf %230 : vector<32x32xbf16> to vector<32x32xf32>
    %c26 = arith.constant 26 : index
    %c0_152 = arith.constant 0 : index
    %c0_153 = arith.constant 0 : index
    %232 = vector.load %arg2[%c26, %c0_152, %c0_153] : memref<27x1x32xf32, #tpu.memory_space<vmem>>, vector<1x1x32xf32>
    %233 = vector.shape_cast %232 : vector<1x1x32xf32> to vector<1x32xf32>
    %234 = vector.broadcast %233 : vector<1x32xf32> to vector<32x32xf32>
    %235 = arith.mulf %231, %234 : vector<32x32xf32>
    %236 = arith.addf %228, %235 : vector<32x32xf32>
    %c2_154 = arith.constant 2 : index
    %c0_155 = arith.constant 0 : index
    %c0_156 = arith.constant 0 : index
    %237 = vector.load %arg3[%c2_154, %c0_155, %c0_156] : memref<3x1x32xf32, #tpu.memory_space<vmem>>, vector<1x1x32xf32>
    %238 = vector.shape_cast %237 : vector<1x1x32xf32> to vector<1x32xf32>
    %239 = vector.broadcast %238 : vector<1x32xf32> to vector<32x32xf32>
    %240 = arith.mulf %236, %239 : vector<32x32xf32>
    %c2_157 = arith.constant 2 : index
    %c0_158 = arith.constant 0 : index
    %c0_159 = arith.constant 0 : index
    %241 = vector.load %arg4[%c2_157, %c0_158, %c0_159] : memref<3x1x32xf32, #tpu.memory_space<vmem>>, vector<1x1x32xf32>
    %242 = vector.shape_cast %241 : vector<1x1x32xf32> to vector<1x32xf32>
    %243 = vector.broadcast %242 : vector<1x32xf32> to vector<32x32xf32>
    %244 = arith.addf %240, %243 : vector<32x32xf32>
    %245 = arith.truncf %244 : vector<32x32xf32> to vector<32x32xbf16>
    %c2_160 = arith.constant 2 : index
    %c0_161 = arith.constant 0 : index
    %c0_162 = arith.constant 0 : index
    %246 = vector.load %arg5[%c2_160, %c0_161, %c0_162] : memref<3x32x32xbf16, #tpu.memory_space<vmem>>, vector<1x32x32xbf16>
    %247 = vector.shape_cast %246 : vector<1x32x32xbf16> to vector<32x32xbf16>
    %cst_163 = arith.constant dense<0.000000e+00> : vector<32x32xf32>
    %248 = tpu.matmul %245, %247, %cst_163 {dimension_numbers = #tpu.dot_dimension_numbers<[1], [0], [0], [1], [0, 0, 1, 1], [], []>} : vector<32x32xbf16>, vector<32x32xbf16>, vector<32x32xf32> -> vector<32x32xf32>
    %249 = tpu.concatenate %82, %165, %248 in 1 : vector<32x32xf32>, vector<32x32xf32>, vector<32x32xf32> -> vector<32x96xf32>
    %250 = arith.truncf %249 : vector<32x96xf32> to vector<32x96xbf16>
    %c0_164 = arith.constant 0 : index
    %c0_165 = arith.constant 0 : index
    %251 = vector.load %arg6[%c0_164, %c0_165] : memref<32x96xbf16, #tpu.memory_space<vmem>>, vector<32x96xbf16>
    tpu.vector_store %arg6[%c0_164, %c0_165], %250 {strides = array<i32>} : memref<32x96xbf16, #tpu.memory_space<vmem>>, vector<32x96xbf16>,
    return
  }
  func.func @transform_0(%arg0: i32) -> (i32, i32, i32) {
    %c0_i32 = arith.constant 0 : i32
    %c0_i32_0 = arith.constant 0 : i32
    %c0_i32_1 = arith.constant 0 : i32
    return %c0_i32, %arg0, %c0_i32_0 : i32, i32, i32
  }
  func.func @transform_1(%arg0: i32) -> (i32, i32, i32) {
    %c0_i32 = arith.constant 0 : i32
    %c0_i32_0 = arith.constant 0 : i32
    %c0_i32_1 = arith.constant 0 : i32
    %c0_i32_2 = arith.constant 0 : i32
    return %c0_i32, %c0_i32_0, %c0_i32_1 : i32, i32, i32
  }
  func.func @transform_2(%arg0: i32) -> (i32, i32, i32) {
    %c0_i32 = arith.constant 0 : i32
    %c0_i32_0 = arith.constant 0 : i32
    %c0_i32_1 = arith.constant 0 : i32
    %c0_i32_2 = arith.constant 0 : i32
    return %c0_i32, %c0_i32_0, %c0_i32_1 : i32, i32, i32
  }
  func.func @transform_3(%arg0: i32) -> (i32, i32, i32) {
    %c0_i32 = arith.constant 0 : i32
    %c0_i32_0 = arith.constant 0 : i32
    %c0_i32_1 = arith.constant 0 : i32
    %c0_i32_2 = arith.constant 0 : i32
    return %c0_i32, %c0_i32_0, %c0_i32_1 : i32, i32, i32
  }
  func.func @transform_4(%arg0: i32) -> (i32, i32, i32) {
    %c0_i32 = arith.constant 0 : i32
    %c0_i32_0 = arith.constant 0 : i32
    %c0_i32_1 = arith.constant 0 : i32
    %c0_i32_2 = arith.constant 0 : i32
    return %c0_i32, %c0_i32_0, %c0_i32_1 : i32, i32, i32
  }
  func.func @transform_5(%arg0: i32) -> (i32, i32) {
    %c0_i32 = arith.constant 0 : i32
    %c0_i32_0 = arith.constant 0 : i32
    return %arg0, %c0_i32 : i32, i32
  }
}

module attributes {stable_mosaic.version = 11 : i64} {
  func.func @_attn_kernel(%arg0: i32, %arg1: i32, %arg2: memref<1x17x96xbf16, #tpu.memory_space<vmem>>, %arg3: memref<1x17x96xbf16, #tpu.memory_space<vmem>>, %arg4: memref<1x17x32xf32, #tpu.memory_space<vmem>>, %arg5: memref<32x32xbf16, #tpu.memory_space<vmem>>, %arg6: memref<1x32xf32, #tpu.memory_space<vmem>>, %arg7: memref<1x17x32xf32, #tpu.memory_space<vmem>>) attributes {dimension_semantics = [#tpu.dimension_semantics<parallel>, #tpu.dimension_semantics<parallel>], iteration_bounds = array<i64: 2, 1>, scalar_prefetch = 0 : i64, scratch_operands = 0 : i64, tpu.core_type = #tpu.core_type<tc>, window_params = [{transform_indices = @transform_0, window_bounds = array<i64: 1, 17, 96>}, {transform_indices = @transform_1, window_bounds = array<i64: 1, 17, 96>}, {transform_indices = @transform_2, window_bounds = array<i64: 1, 17, 32>}, {pipeline_mode = #tpu.pipeline_mode<synchronous>, transform_indices = @transform_3, window_bounds = array<i64: 32, 32>}, {pipeline_mode = #tpu.pipeline_mode<synchronous>, transform_indices = @transform_4, window_bounds = array<i64: 1, 32>}, {transform_indices = @transform_5, window_bounds = array<i64: 1, 17, 32>}]} {
    %c0 = arith.constant 0 : index
    %c0_0 = arith.constant 0 : index
    %c0_1 = arith.constant 0 : index
    %0 = vector.load %arg2[%c0, %c0_0, %c0_1] : memref<1x17x96xbf16, #tpu.memory_space<vmem>>, vector<1x17x96xbf16>
    %1 = vector.shape_cast %0 : vector<1x17x96xbf16> to vector<17x96xbf16>
    %c0_2 = arith.constant 0 : index
    %c0_3 = arith.constant 0 : index
    %c0_4 = arith.constant 0 : index
    %2 = vector.load %arg3[%c0_2, %c0_3, %c0_4] : memref<1x17x96xbf16, #tpu.memory_space<vmem>>, vector<1x17x96xbf16>
    %3 = vector.shape_cast %2 : vector<1x17x96xbf16> to vector<17x96xbf16>
    %4 = vector.extract_strided_slice %1 {offsets = [0, 0], sizes = [17, 8], strides = [1, 1]} : vector<17x96xbf16> to vector<17x8xbf16>
    %5 = vector.extract_strided_slice %3 {offsets = [0, 32], sizes = [17, 8], strides = [1, 1]} : vector<17x96xbf16> to vector<17x8xbf16>
    %6 = vector.extract_strided_slice %3 {offsets = [0, 64], sizes = [17, 8], strides = [1, 1]} : vector<17x96xbf16> to vector<17x8xbf16>
    %cst = arith.constant dense<0.000000e+00> : vector<17x17xf32>
    %7 = tpu.matmul %4, %5, %cst {dimension_numbers = #tpu.dot_dimension_numbers<[1], [1], [0], [0], [0, 0, 1, 0], [], []>} : vector<17x8xbf16>, vector<17x8xbf16>, vector<17x17xf32> -> vector<17x17xf32>
    %cst_5 = arith.constant 0.176776692 : f32
    %8 = vector.broadcast %cst_5 : f32 to vector<17x17xf32>
    %9 = arith.mulf %7, %8 : vector<17x17xf32>
    %cst_6 = arith.constant dense<0xFF800000> : vector<17xf32>
    %10 = vector.multi_reduction <maximumf>, %9, %cst_6 [1] : vector<17x17xf32> to vector<17xf32>
    %11 = vector.shape_cast %10 : vector<17xf32> to vector<17x1xf32>
    %12 = vector.broadcast %11 : vector<17x1xf32> to vector<17x17xf32>
    %13 = arith.subf %9, %12 : vector<17x17xf32>
    %14 = math.exp %13 : vector<17x17xf32>
    %cst_7 = arith.constant dense<0.000000e+00> : vector<17xf32>
    %15 = vector.multi_reduction <add>, %14, %cst_7 [1] : vector<17x17xf32> to vector<17xf32>
    %16 = vector.shape_cast %15 : vector<17xf32> to vector<17x1xf32>
    %17 = tpu.reciprocal %16 {approx = true} : vector<17x1xf32> -> vector<17x1xf32>
    %18 = vector.broadcast %17 : vector<17x1xf32> to vector<17x17xf32>
    %19 = arith.mulf %14, %18 : vector<17x17xf32>
    %20 = arith.truncf %19 : vector<17x17xf32> to vector<17x17xbf16>
    %cst_8 = arith.constant dense<0.000000e+00> : vector<17x8xf32>
    %21 = tpu.matmul %20, %6, %cst_8 {dimension_numbers = #tpu.dot_dimension_numbers<[1], [0], [0], [1], [0, 0, 1, 1], [], []>} : vector<17x17xbf16>, vector<17x8xbf16>, vector<17x8xf32> -> vector<17x8xf32>
    %22 = vector.extract_strided_slice %1 {offsets = [0, 8], sizes = [17, 8], strides = [1, 1]} : vector<17x96xbf16> to vector<17x8xbf16>
    %23 = vector.extract_strided_slice %3 {offsets = [0, 40], sizes = [17, 8], strides = [1, 1]} : vector<17x96xbf16> to vector<17x8xbf16>
    %24 = vector.extract_strided_slice %3 {offsets = [0, 72], sizes = [17, 8], strides = [1, 1]} : vector<17x96xbf16> to vector<17x8xbf16>
    %cst_9 = arith.constant dense<0.000000e+00> : vector<17x17xf32>
    %25 = tpu.matmul %22, %23, %cst_9 {dimension_numbers = #tpu.dot_dimension_numbers<[1], [1], [0], [0], [0, 0, 1, 0], [], []>} : vector<17x8xbf16>, vector<17x8xbf16>, vector<17x17xf32> -> vector<17x17xf32>
    %cst_10 = arith.constant 0.176776692 : f32
    %26 = vector.broadcast %cst_10 : f32 to vector<17x17xf32>
    %27 = arith.mulf %25, %26 : vector<17x17xf32>
    %cst_11 = arith.constant dense<0xFF800000> : vector<17xf32>
    %28 = vector.multi_reduction <maximumf>, %27, %cst_11 [1] : vector<17x17xf32> to vector<17xf32>
    %29 = vector.shape_cast %28 : vector<17xf32> to vector<17x1xf32>
    %30 = vector.broadcast %29 : vector<17x1xf32> to vector<17x17xf32>
    %31 = arith.subf %27, %30 : vector<17x17xf32>
    %32 = math.exp %31 : vector<17x17xf32>
    %cst_12 = arith.constant dense<0.000000e+00> : vector<17xf32>
    %33 = vector.multi_reduction <add>, %32, %cst_12 [1] : vector<17x17xf32> to vector<17xf32>
    %34 = vector.shape_cast %33 : vector<17xf32> to vector<17x1xf32>
    %35 = tpu.reciprocal %34 {approx = true} : vector<17x1xf32> -> vector<17x1xf32>
    %36 = vector.broadcast %35 : vector<17x1xf32> to vector<17x17xf32>
    %37 = arith.mulf %32, %36 : vector<17x17xf32>
    %38 = arith.truncf %37 : vector<17x17xf32> to vector<17x17xbf16>
    %cst_13 = arith.constant dense<0.000000e+00> : vector<17x8xf32>
    %39 = tpu.matmul %38, %24, %cst_13 {dimension_numbers = #tpu.dot_dimension_numbers<[1], [0], [0], [1], [0, 0, 1, 1], [], []>} : vector<17x17xbf16>, vector<17x8xbf16>, vector<17x8xf32> -> vector<17x8xf32>
    %40 = vector.extract_strided_slice %1 {offsets = [0, 16], sizes = [17, 8], strides = [1, 1]} : vector<17x96xbf16> to vector<17x8xbf16>
    %41 = vector.extract_strided_slice %3 {offsets = [0, 48], sizes = [17, 8], strides = [1, 1]} : vector<17x96xbf16> to vector<17x8xbf16>
    %42 = vector.extract_strided_slice %3 {offsets = [0, 80], sizes = [17, 8], strides = [1, 1]} : vector<17x96xbf16> to vector<17x8xbf16>
    %cst_14 = arith.constant dense<0.000000e+00> : vector<17x17xf32>
    %43 = tpu.matmul %40, %41, %cst_14 {dimension_numbers = #tpu.dot_dimension_numbers<[1], [1], [0], [0], [0, 0, 1, 0], [], []>} : vector<17x8xbf16>, vector<17x8xbf16>, vector<17x17xf32> -> vector<17x17xf32>
    %cst_15 = arith.constant 0.176776692 : f32
    %44 = vector.broadcast %cst_15 : f32 to vector<17x17xf32>
    %45 = arith.mulf %43, %44 : vector<17x17xf32>
    %cst_16 = arith.constant dense<0xFF800000> : vector<17xf32>
    %46 = vector.multi_reduction <maximumf>, %45, %cst_16 [1] : vector<17x17xf32> to vector<17xf32>
    %47 = vector.shape_cast %46 : vector<17xf32> to vector<17x1xf32>
    %48 = vector.broadcast %47 : vector<17x1xf32> to vector<17x17xf32>
    %49 = arith.subf %45, %48 : vector<17x17xf32>
    %50 = math.exp %49 : vector<17x17xf32>
    %cst_17 = arith.constant dense<0.000000e+00> : vector<17xf32>
    %51 = vector.multi_reduction <add>, %50, %cst_17 [1] : vector<17x17xf32> to vector<17xf32>
    %52 = vector.shape_cast %51 : vector<17xf32> to vector<17x1xf32>
    %53 = tpu.reciprocal %52 {approx = true} : vector<17x1xf32> -> vector<17x1xf32>
    %54 = vector.broadcast %53 : vector<17x1xf32> to vector<17x17xf32>
    %55 = arith.mulf %50, %54 : vector<17x17xf32>
    %56 = arith.truncf %55 : vector<17x17xf32> to vector<17x17xbf16>
    %cst_18 = arith.constant dense<0.000000e+00> : vector<17x8xf32>
    %57 = tpu.matmul %56, %42, %cst_18 {dimension_numbers = #tpu.dot_dimension_numbers<[1], [0], [0], [1], [0, 0, 1, 1], [], []>} : vector<17x17xbf16>, vector<17x8xbf16>, vector<17x8xf32> -> vector<17x8xf32>
    %58 = vector.extract_strided_slice %1 {offsets = [0, 24], sizes = [17, 8], strides = [1, 1]} : vector<17x96xbf16> to vector<17x8xbf16>
    %59 = vector.extract_strided_slice %3 {offsets = [0, 56], sizes = [17, 8], strides = [1, 1]} : vector<17x96xbf16> to vector<17x8xbf16>
    %60 = vector.extract_strided_slice %3 {offsets = [0, 88], sizes = [17, 8], strides = [1, 1]} : vector<17x96xbf16> to vector<17x8xbf16>
    %cst_19 = arith.constant dense<0.000000e+00> : vector<17x17xf32>
    %61 = tpu.matmul %58, %59, %cst_19 {dimension_numbers = #tpu.dot_dimension_numbers<[1], [1], [0], [0], [0, 0, 1, 0], [], []>} : vector<17x8xbf16>, vector<17x8xbf16>, vector<17x17xf32> -> vector<17x17xf32>
    %cst_20 = arith.constant 0.176776692 : f32
    %62 = vector.broadcast %cst_20 : f32 to vector<17x17xf32>
    %63 = arith.mulf %61, %62 : vector<17x17xf32>
    %cst_21 = arith.constant dense<0xFF800000> : vector<17xf32>
    %64 = vector.multi_reduction <maximumf>, %63, %cst_21 [1] : vector<17x17xf32> to vector<17xf32>
    %65 = vector.shape_cast %64 : vector<17xf32> to vector<17x1xf32>
    %66 = vector.broadcast %65 : vector<17x1xf32> to vector<17x17xf32>
    %67 = arith.subf %63, %66 : vector<17x17xf32>
    %68 = math.exp %67 : vector<17x17xf32>
    %cst_22 = arith.constant dense<0.000000e+00> : vector<17xf32>
    %69 = vector.multi_reduction <add>, %68, %cst_22 [1] : vector<17x17xf32> to vector<17xf32>
    %70 = vector.shape_cast %69 : vector<17xf32> to vector<17x1xf32>
    %71 = tpu.reciprocal %70 {approx = true} : vector<17x1xf32> -> vector<17x1xf32>
    %72 = vector.broadcast %71 : vector<17x1xf32> to vector<17x17xf32>
    %73 = arith.mulf %68, %72 : vector<17x17xf32>
    %74 = arith.truncf %73 : vector<17x17xf32> to vector<17x17xbf16>
    %cst_23 = arith.constant dense<0.000000e+00> : vector<17x8xf32>
    %75 = tpu.matmul %74, %60, %cst_23 {dimension_numbers = #tpu.dot_dimension_numbers<[1], [0], [0], [1], [0, 0, 1, 1], [], []>} : vector<17x17xbf16>, vector<17x8xbf16>, vector<17x8xf32> -> vector<17x8xf32>
    %76 = tpu.concatenate %21, %39, %57, %75 in 1 : vector<17x8xf32>, vector<17x8xf32>, vector<17x8xf32>, vector<17x8xf32> -> vector<17x32xf32>
    %77 = arith.truncf %76 : vector<17x32xf32> to vector<17x32xbf16>
    %c0_24 = arith.constant 0 : index
    %c0_25 = arith.constant 0 : index
    %78 = vector.load %arg5[%c0_24, %c0_25] : memref<32x32xbf16, #tpu.memory_space<vmem>>, vector<32x32xbf16>
    %cst_26 = arith.constant dense<0.000000e+00> : vector<17x32xf32>
    %79 = tpu.matmul %77, %78, %cst_26 {dimension_numbers = #tpu.dot_dimension_numbers<[1], [0], [0], [1], [0, 0, 1, 1], [], []>} : vector<17x32xbf16>, vector<32x32xbf16>, vector<17x32xf32> -> vector<17x32xf32>
    %c0_27 = arith.constant 0 : index
    %c0_28 = arith.constant 0 : index
    %c0_29 = arith.constant 0 : index
    %80 = vector.load %arg4[%c0_27, %c0_28, %c0_29] : memref<1x17x32xf32, #tpu.memory_space<vmem>>, vector<1x17x32xf32>
    %81 = vector.shape_cast %80 : vector<1x17x32xf32> to vector<17x32xf32>
    %c0_30 = arith.constant 0 : index
    %c0_31 = arith.constant 0 : index
    %82 = vector.load %arg6[%c0_30, %c0_31] : memref<1x32xf32, #tpu.memory_space<vmem>>, vector<1x32xf32>
    %83 = vector.broadcast %82 : vector<1x32xf32> to vector<17x32xf32>
    %84 = arith.addf %81, %83 : vector<17x32xf32>
    %85 = arith.addf %84, %79 : vector<17x32xf32>
    %86 = vector.shape_cast %85 : vector<17x32xf32> to vector<1x17x32xf32>
    %c0_32 = arith.constant 0 : index
    %c0_33 = arith.constant 0 : index
    %c0_34 = arith.constant 0 : index
    %87 = vector.load %arg7[%c0_32, %c0_33, %c0_34] : memref<1x17x32xf32, #tpu.memory_space<vmem>>, vector<1x17x32xf32>
    tpu.vector_store %arg7[%c0_32, %c0_33, %c0_34], %86 {strides = array<i32>} : memref<1x17x32xf32, #tpu.memory_space<vmem>>, vector<1x17x32xf32>,
    return
  }
  func.func @transform_0(%arg0: i32, %arg1: i32) -> (i32, i32, i32) {
    %c0_i32 = arith.constant 0 : i32
    %c0_i32_0 = arith.constant 0 : i32
    return %arg0, %arg1, %c0_i32 : i32, i32, i32
  }
  func.func @transform_1(%arg0: i32, %arg1: i32) -> (i32, i32, i32) {
    %c0_i32 = arith.constant 0 : i32
    %c0_i32_0 = arith.constant 0 : i32
    %c0_i32_1 = arith.constant 0 : i32
    return %arg0, %c0_i32, %c0_i32_0 : i32, i32, i32
  }
  func.func @transform_2(%arg0: i32, %arg1: i32) -> (i32, i32, i32) {
    %c0_i32 = arith.constant 0 : i32
    %c0_i32_0 = arith.constant 0 : i32
    return %arg0, %arg1, %c0_i32 : i32, i32, i32
  }
  func.func @transform_3(%arg0: i32, %arg1: i32) -> (i32, i32) {
    %c0_i32 = arith.constant 0 : i32
    %c0_i32_0 = arith.constant 0 : i32
    %c0_i32_1 = arith.constant 0 : i32
    return %c0_i32, %c0_i32_0 : i32, i32
  }
  func.func @transform_4(%arg0: i32, %arg1: i32) -> (i32, i32) {
    %c0_i32 = arith.constant 0 : i32
    %c0_i32_0 = arith.constant 0 : i32
    %c0_i32_1 = arith.constant 0 : i32
    return %c0_i32, %c0_i32_0 : i32, i32
  }
  func.func @transform_5(%arg0: i32, %arg1: i32) -> (i32, i32, i32) {
    %c0_i32 = arith.constant 0 : i32
    %c0_i32_0 = arith.constant 0 : i32
    return %arg0, %arg1, %c0_i32 : i32, i32, i32
  }
}

module attributes {stable_mosaic.version = 11 : i64} {
  func.func @_mlp_block_kernel(%arg0: i32, %arg1: memref<34x32xf32, #tpu.memory_space<vmem>>, %arg2: memref<1x32xf32, #tpu.memory_space<vmem>>, %arg3: memref<1x32xf32, #tpu.memory_space<vmem>>, %arg4: memref<32x128xbf16, #tpu.memory_space<vmem>>, %arg5: memref<1x128xf32, #tpu.memory_space<vmem>>, %arg6: memref<128x32xbf16, #tpu.memory_space<vmem>>, %arg7: memref<1x32xf32, #tpu.memory_space<vmem>>, %arg8: memref<34x32xf32, #tpu.memory_space<vmem>>) attributes {dimension_semantics = [#tpu.dimension_semantics<parallel>], iteration_bounds = array<i64: 1>, scalar_prefetch = 0 : i64, scratch_operands = 0 : i64, tpu.core_type = #tpu.core_type<tc>, window_params = [{transform_indices = @transform_0, window_bounds = array<i64: 34, 32>}, {pipeline_mode = #tpu.pipeline_mode<synchronous>, transform_indices = @transform_1, window_bounds = array<i64: 1, 32>}, {pipeline_mode = #tpu.pipeline_mode<synchronous>, transform_indices = @transform_2, window_bounds = array<i64: 1, 32>}, {pipeline_mode = #tpu.pipeline_mode<synchronous>, transform_indices = @transform_3, window_bounds = array<i64: 32, 128>}, {pipeline_mode = #tpu.pipeline_mode<synchronous>, transform_indices = @transform_4, window_bounds = array<i64: 1, 128>}, {pipeline_mode = #tpu.pipeline_mode<synchronous>, transform_indices = @transform_5, window_bounds = array<i64: 128, 32>}, {pipeline_mode = #tpu.pipeline_mode<synchronous>, transform_indices = @transform_6, window_bounds = array<i64: 1, 32>}, {transform_indices = @transform_7, window_bounds = array<i64: 34, 32>}]} {
    %c0 = arith.constant 0 : index
    %c0_0 = arith.constant 0 : index
    %0 = vector.load %arg1[%c0, %c0_0] : memref<34x32xf32, #tpu.memory_space<vmem>>, vector<34x32xf32>
    %c0_1 = arith.constant 0 : index
    %c0_2 = arith.constant 0 : index
    %1 = vector.load %arg2[%c0_1, %c0_2] : memref<1x32xf32, #tpu.memory_space<vmem>>, vector<1x32xf32>
    %c0_3 = arith.constant 0 : index
    %c0_4 = arith.constant 0 : index
    %2 = vector.load %arg3[%c0_3, %c0_4] : memref<1x32xf32, #tpu.memory_space<vmem>>, vector<1x32xf32>
    %cst = arith.constant dense<0.000000e+00> : vector<34xf32>
    %3 = vector.multi_reduction <add>, %0, %cst [1] : vector<34x32xf32> to vector<34xf32>
    %4 = vector.shape_cast %3 : vector<34xf32> to vector<34x1xf32>
    %cst_5 = arith.constant 3.200000e+01 : f32
    %5 = vector.broadcast %cst_5 : f32 to vector<34x1xf32>
    %6 = arith.divf %4, %5 : vector<34x1xf32>
    %7 = vector.broadcast %6 : vector<34x1xf32> to vector<34x32xf32>
    %8 = arith.subf %0, %7 : vector<34x32xf32>
    %9 = arith.mulf %8, %8 : vector<34x32xf32>
    %cst_6 = arith.constant dense<0.000000e+00> : vector<34xf32>
    %10 = vector.multi_reduction <add>, %9, %cst_6 [1] : vector<34x32xf32> to vector<34xf32>
    %11 = vector.shape_cast %10 : vector<34xf32> to vector<34x1xf32>
    %cst_7 = arith.constant 3.200000e+01 : f32
    %12 = vector.broadcast %cst_7 : f32 to vector<34x1xf32>
    %13 = arith.divf %11, %12 : vector<34x1xf32>
    %cst_8 = arith.constant 9.99999974E-6 : f32
    %14 = vector.broadcast %cst_8 : f32 to vector<34x1xf32>
    %15 = arith.addf %13, %14 : vector<34x1xf32>
    %16 = math.rsqrt %15 : vector<34x1xf32>
    %17 = vector.broadcast %16 : vector<34x1xf32> to vector<34x32xf32>
    %18 = arith.mulf %8, %17 : vector<34x32xf32>
    %19 = vector.broadcast %1 : vector<1x32xf32> to vector<34x32xf32>
    %20 = arith.mulf %18, %19 : vector<34x32xf32>
    %21 = vector.broadcast %2 : vector<1x32xf32> to vector<34x32xf32>
    %22 = arith.addf %20, %21 : vector<34x32xf32>
    %23 = arith.truncf %22 : vector<34x32xf32> to vector<34x32xbf16>
    %c0_9 = arith.constant 0 : index
    %c0_10 = arith.constant 0 : index
    %24 = vector.load %arg4[%c0_9, %c0_10] : memref<32x128xbf16, #tpu.memory_space<vmem>>, vector<32x128xbf16>
    %cst_11 = arith.constant dense<0.000000e+00> : vector<34x128xf32>
    %25 = tpu.matmul %23, %24, %cst_11 {dimension_numbers = #tpu.dot_dimension_numbers<[1], [0], [0], [1], [0, 0, 1, 1], [], []>} : vector<34x32xbf16>, vector<32x128xbf16>, vector<34x128xf32> -> vector<34x128xf32>
    %c0_12 = arith.constant 0 : index
    %c0_13 = arith.constant 0 : index
    %26 = vector.load %arg5[%c0_12, %c0_13] : memref<1x128xf32, #tpu.memory_space<vmem>>, vector<1x128xf32>
    %27 = vector.broadcast %26 : vector<1x128xf32> to vector<34x128xf32>
    %28 = arith.addf %25, %27 : vector<34x128xf32>
    %cst_14 = arith.constant 0.707106769 : f32
    %29 = vector.broadcast %cst_14 : f32 to vector<34x128xf32>
    %30 = arith.mulf %28, %29 : vector<34x128xf32>
    %31 = math.absf %30 : vector<34x128xf32>
    %cst_15 = arith.constant 0.327591091 : f32
    %32 = vector.broadcast %cst_15 : f32 to vector<34x128xf32>
    %33 = arith.mulf %32, %31 : vector<34x128xf32>
    %cst_16 = arith.constant 1.000000e+00 : f32
    %34 = vector.broadcast %cst_16 : f32 to vector<34x128xf32>
    %35 = arith.addf %34, %33 : vector<34x128xf32>
    %cst_17 = arith.constant 1.000000e+00 : f32
    %36 = vector.broadcast %cst_17 : f32 to vector<34x128xf32>
    %37 = arith.divf %36, %35 : vector<34x128xf32>
    %cst_18 = arith.constant 1.06140542 : f32
    %38 = vector.broadcast %cst_18 : f32 to vector<34x128xf32>
    %39 = arith.mulf %37, %38 : vector<34x128xf32>
    %cst_19 = arith.constant -1.45315206 : f32
    %40 = vector.broadcast %cst_19 : f32 to vector<34x128xf32>
    %41 = arith.addf %40, %39 : vector<34x128xf32>
    %42 = arith.mulf %37, %41 : vector<34x128xf32>
    %cst_20 = arith.constant 1.42141378 : f32
    %43 = vector.broadcast %cst_20 : f32 to vector<34x128xf32>
    %44 = arith.addf %43, %42 : vector<34x128xf32>
    %45 = arith.mulf %37, %44 : vector<34x128xf32>
    %cst_21 = arith.constant -0.284496725 : f32
    %46 = vector.broadcast %cst_21 : f32 to vector<34x128xf32>
    %47 = arith.addf %46, %45 : vector<34x128xf32>
    %48 = arith.mulf %37, %47 : vector<34x128xf32>
    %cst_22 = arith.constant 0.254829586 : f32
    %49 = vector.broadcast %cst_22 : f32 to vector<34x128xf32>
    %50 = arith.addf %49, %48 : vector<34x128xf32>
    %51 = arith.mulf %37, %50 : vector<34x128xf32>
    %cst_23 = arith.constant 0.000000e+00 : f32
    %52 = vector.broadcast %cst_23 : f32 to vector<34x128xf32>
    %53 = arith.subf %52, %31 : vector<34x128xf32>
    %54 = arith.mulf %53, %31 : vector<34x128xf32>
    %55 = math.exp %54 : vector<34x128xf32>
    %56 = arith.mulf %51, %55 : vector<34x128xf32>
    %cst_24 = arith.constant 1.000000e+00 : f32
    %57 = vector.broadcast %cst_24 : f32 to vector<34x128xf32>
    %58 = arith.subf %57, %56 : vector<34x128xf32>
    %cst_25 = arith.constant 0.000000e+00 : f32
    %59 = vector.broadcast %cst_25 : f32 to vector<34x128xf32>
    %60 = arith.cmpf olt, %30, %59 : vector<34x128xf32>
    %cst_26 = arith.constant 0.000000e+00 : f32
    %61 = vector.broadcast %cst_26 : f32 to vector<34x128xf32>
    %62 = arith.subf %61, %58 : vector<34x128xf32>
    %63 = arith.select %60, %62, %58 : vector<34x128xi1>, vector<34x128xf32>
    %cst_27 = arith.constant 5.000000e-01 : f32
    %64 = vector.broadcast %cst_27 : f32 to vector<34x128xf32>
    %65 = arith.mulf %64, %28 : vector<34x128xf32>
    %cst_28 = arith.constant 1.000000e+00 : f32
    %66 = vector.broadcast %cst_28 : f32 to vector<34x128xf32>
    %67 = arith.addf %66, %63 : vector<34x128xf32>
    %68 = arith.mulf %65, %67 : vector<34x128xf32>
    %69 = arith.truncf %68 : vector<34x128xf32> to vector<34x128xbf16>
    %c0_29 = arith.constant 0 : index
    %c0_30 = arith.constant 0 : index
    %70 = vector.load %arg6[%c0_29, %c0_30] : memref<128x32xbf16, #tpu.memory_space<vmem>>, vector<128x32xbf16>
    %cst_31 = arith.constant dense<0.000000e+00> : vector<34x32xf32>
    %71 = tpu.matmul %69, %70, %cst_31 {dimension_numbers = #tpu.dot_dimension_numbers<[1], [0], [0], [1], [0, 0, 1, 1], [], []>} : vector<34x128xbf16>, vector<128x32xbf16>, vector<34x32xf32> -> vector<34x32xf32>
    %c0_32 = arith.constant 0 : index
    %c0_33 = arith.constant 0 : index
    %72 = vector.load %arg7[%c0_32, %c0_33] : memref<1x32xf32, #tpu.memory_space<vmem>>, vector<1x32xf32>
    %73 = vector.broadcast %72 : vector<1x32xf32> to vector<34x32xf32>
    %74 = arith.addf %71, %73 : vector<34x32xf32>
    %75 = arith.addf %0, %74 : vector<34x32xf32>
    %c0_34 = arith.constant 0 : index
    %c0_35 = arith.constant 0 : index
    %76 = vector.load %arg8[%c0_34, %c0_35] : memref<34x32xf32, #tpu.memory_space<vmem>>, vector<34x32xf32>
    tpu.vector_store %arg8[%c0_34, %c0_35], %75 {strides = array<i32>} : memref<34x32xf32, #tpu.memory_space<vmem>>, vector<34x32xf32>,
    return
  }
  func.func @transform_0(%arg0: i32) -> (i32, i32) {
    %c0_i32 = arith.constant 0 : i32
    %c0_i32_0 = arith.constant 0 : i32
    return %arg0, %c0_i32 : i32, i32
  }
  func.func @transform_1(%arg0: i32) -> (i32, i32) {
    %c0_i32 = arith.constant 0 : i32
    %c0_i32_0 = arith.constant 0 : i32
    %c0_i32_1 = arith.constant 0 : i32
    return %c0_i32, %c0_i32_0 : i32, i32
  }
  func.func @transform_2(%arg0: i32) -> (i32, i32) {
    %c0_i32 = arith.constant 0 : i32
    %c0_i32_0 = arith.constant 0 : i32
    %c0_i32_1 = arith.constant 0 : i32
    return %c0_i32, %c0_i32_0 : i32, i32
  }
  func.func @transform_3(%arg0: i32) -> (i32, i32) {
    %c0_i32 = arith.constant 0 : i32
    %c0_i32_0 = arith.constant 0 : i32
    %c0_i32_1 = arith.constant 0 : i32
    return %c0_i32, %c0_i32_0 : i32, i32
  }
  func.func @transform_4(%arg0: i32) -> (i32, i32) {
    %c0_i32 = arith.constant 0 : i32
    %c0_i32_0 = arith.constant 0 : i32
    %c0_i32_1 = arith.constant 0 : i32
    return %c0_i32, %c0_i32_0 : i32, i32
  }
  func.func @transform_5(%arg0: i32) -> (i32, i32) {
    %c0_i32 = arith.constant 0 : i32
    %c0_i32_0 = arith.constant 0 : i32
    %c0_i32_1 = arith.constant 0 : i32
    return %c0_i32, %c0_i32_0 : i32, i32
  }
  func.func @transform_6(%arg0: i32) -> (i32, i32) {
    %c0_i32 = arith.constant 0 : i32
    %c0_i32_0 = arith.constant 0 : i32
    %c0_i32_1 = arith.constant 0 : i32
    return %c0_i32, %c0_i32_0 : i32, i32
  }
  func.func @transform_7(%arg0: i32) -> (i32, i32) {
    %c0_i32 = arith.constant 0 : i32
    %c0_i32_0 = arith.constant 0 : i32
    return %arg0, %c0_i32 : i32, i32
  }
}

</mosaic_0001>

<llo_original>
// kernel: block_forward.4
$region0: #{block_forward.4}
  #allocation0 [shape = 'u32[]', space=smem, size = 0x4, offset = 0x4, fixed_abs, tag = 'smem constant byte address 0x4 - core index']
  #allocation1 [shape = 'u32[144,128]{1,0:T(1,128)}', space=vmem, size = 0x12000, scoped, tag = 'internal scratch']
  %s0 = inlined_call_operand.vmem [shape: f32[34,32], index: 0, kind: input, shape index: {}]
  %s1 = inlined_call_operand.vmem [shape: f32[1,32], index: 1, kind: input, shape index: {}]
  %s2 = inlined_call_operand.vmem [shape: f32[1,32], index: 2, kind: input, shape index: {}]
  %s3 = inlined_call_operand.vmem [shape: f32[34,32], index: 3, kind: output, shape index: {}]
  %s4 = sld [smem:[#allocation0]]
  $region22: #{block_forward.4} parent=0
    _
  %s6 = ssub.s32 1, %s4
  %s7 = scalar_select 0, %s6, %s4
  // Predicated region
  $region2: #{block_forward.4} parent=0 // pred_check
    _
  $region3: #{block_forward.4} parent=0 // pred_check_branch
    %9 = sbr.rel (0) target = $region5
  $region4: #{block_forward.4} parent=0 // pred_region
    _
  $region5: #{block_forward.4} parent=0 // pred_fallthru
    _
  // Predicated region
  $region6: #{block_forward.4} parent=0 // pred_check
    _
  $region7: #{block_forward.4} parent=0 // pred_check_branch
    %11 = sbr.rel (0) target = $region9
  $region8: #{block_forward.4} parent=0 // pred_region
    _
  $region9: #{block_forward.4} parent=0 // pred_fallthru
    _
  // Predicated region
  $region10: #{block_forward.4} parent=0 // pred_check
    _
  $region11: #{block_forward.4} parent=0 // pred_check_branch
    %13 = sbr.rel (0) target = $region13
  $region12: #{block_forward.4} parent=0 // pred_region
    _
  $region13: #{block_forward.4} parent=0 // pred_fallthru
    _
  %v14 = vld [vmem:[%s0] sm:$0xff]
  %v15 = vld [vmem:[%s0 + $0x8] sm:$0xff]
  %v16 = vld [vmem:[%s0 + $0x10] sm:$0xff]
  %v17 = vld [vmem:[%s0 + $0x18] sm:$0xff]
  %v18 = vld [vmem:[%s0 + $0x20] sm:$0x3]
  %v19 = vld [vmem:[%s1] sm:$0x1]
  %v20 = vld [vmem:[%s2] sm:$0x1]
  %vm21 = vcmask 261120
  %v22 = vsel %vm21, %v14, 0.0
  %23 = vadd.xlane.f32.xlu0 %v22
  %v24 = vpop.xlane.xlu0 %23
  %v25 = vsel %vm21, %v15, 0.0
  %26 = vadd.xlane.f32.xlu0 %v25
  %v27 = vpop.xlane.xlu0 %26
  %v28 = vsel %vm21, %v16, 0.0
  %29 = vadd.xlane.f32.xlu0 %v28
  %v30 = vpop.xlane.xlu0 %29
  %v31 = vsel %vm21, %v17, 0.0
  %32 = vadd.xlane.f32.xlu0 %v31
  %v33 = vpop.xlane.xlu0 %32
  %vm34 = vcmask 254976
  %v35 = vsel %vm34, %v18, 0.0
  %36 = vadd.xlane.f32.xlu0 %v35
  %v37 = vpop.xlane.xlu0 %36
  %v38 = vrcp.pop 32.0
  %v39 = vmul.f32 %v24, %v38
  %v40 = vmul.f32 %v27, %v38
  %v41 = vmul.f32 %v30, %v38
  %v42 = vmul.f32 %v33, %v38
  %v43 = vmul.f32 %v37, %v38
  %v44 = vsub.f32 %v14, %v39
  %v45 = vsub.f32 %v15, %v40
  %v46 = vsub.f32 %v16, %v41
  %v47 = vsub.f32 %v17, %v42
  %v48 = vsub.f32 %v18, %v43
  %v49 = vmul.f32 %v44, %v44
  %v50 = vmul.f32 %v45, %v45
  %v51 = vmul.f32 %v46, %v46
  %v52 = vmul.f32 %v47, %v47
  %v53 = vmul.f32 %v48, %v48
  %v54 = vsel %vm21, %v49, 0.0
  %55 = vadd.xlane.f32.xlu0 %v54
  %v56 = vpop.xlane.xlu0 %55
  %v57 = vsel %vm21, %v50, 0.0
  %58 = vadd.xlane.f32.xlu0 %v57
  %v59 = vpop.xlane.xlu0 %58
  %v60 = vsel %vm21, %v51, 0.0
  %61 = vadd.xlane.f32.xlu0 %v60
  %v62 = vpop.xlane.xlu0 %61
  %v63 = vsel %vm21, %v52, 0.0
  %64 = vadd.xlane.f32.xlu0 %v63
  %v65 = vpop.xlane.xlu0 %64
  %v66 = vsel %vm34, %v53, 0.0
  %67 = vadd.xlane.f32.xlu0 %v66
  %v68 = vpop.xlane.xlu0 %67
  %v69 = vmul.f32 %v56, %v38
  %v70 = vmul.f32 %v59, %v38
  %v71 = vmul.f32 %v62, %v38
  %v72 = vmul.f32 %v65, %v38
  %v73 = vmul.f32 %v68, %v38
  %v74 = vadd.f32 %v69, 1e-05
  %v75 = vadd.f32 %v70, 1e-05
  %v76 = vadd.f32 %v71, 1e-05
  %v77 = vadd.f32 %v72, 1e-05
  %v78 = vadd.f32 %v73, 1e-05
  %v79 = vrsqrt.pop %v74
  %v80 = vrsqrt.pop %v75
  %v81 = vrsqrt.pop %v76
  %v82 = vrsqrt.pop %v77
  %v83 = vrsqrt.pop %v78
  %v84 = vmul.f32 %v44, %v79
  %v85 = vmul.f32 %v45, %v80
  %v86 = vmul.f32 %v46, %v81
  %v87 = vmul.f32 %v47, %v82
  %v88 = vmul.f32 %v48, %v83
  %v90 = vlaneseq
  %v91 = vshrl.u32 %v90, 7
  %v92 = vsub.s32 0, %v91
  %v93 = vrot.slane %v19, %v92
  %v95 = vmul.f32 %v84, %v93
  %v96 = vmul.f32 %v85, %v93
  %v97 = vmul.f32 %v86, %v93
  %v98 = vmul.f32 %v87, %v93
  %v99 = vmul.f32 %v88, %v93
  %v101 = vlaneseq
  %v102 = vshrl.u32 %v101, 7
  %v103 = vsub.s32 0, %v102
  %v104 = vrot.slane %v20, %v103
  %v106 = vadd.f32 %v95, %v104
  %v107 = vadd.f32 %v96, %v104
  %v108 = vadd.f32 %v97, %v104
  %v109 = vadd.f32 %v98, %v104
  %v110 = vadd.f32 %v99, %v104
  %111 = vst.msk [vmem:[%s3] sm:$0xff] %vm21, %v106
  %112 = vst.msk [vmem:[%s3 + $0x8] sm:$0xff] %vm21, %v107
  %113 = vst.msk [vmem:[%s3 + $0x10] sm:$0xff] %vm21, %v108
  %114 = vst.msk [vmem:[%s3 + $0x18] sm:$0xff] %vm21, %v109
  %115 = vst.msk [vmem:[%s3 + $0x20] sm:$0x3] %vm34, %v110
  // Predicated region
  $region14: #{block_forward.4} parent=0 // pred_check
    _
  $region15: #{block_forward.4} parent=0 // pred_check_branch
    %117 = sbr.rel (0) target = $region17
  $region16: #{block_forward.4} parent=0 // pred_region
    _
  $region17: #{block_forward.4} parent=0 // pred_fallthru
    _
  // Predicated region
  $region18: #{block_forward.4} parent=0 // pred_check
    _
  $region19: #{block_forward.4} parent=0 // pred_check_branch
    %119 = sbr.rel (0) target = $region21
  $region20: #{block_forward.4} parent=0 // pred_region
    _
  $region21: #{block_forward.4} parent=0 // pred_fallthru
    _

// kernel: block_forward.7
$region0: #{block_forward.7}
  #allocation0 [shape = 'u32[]', space=smem, size = 0x4, offset = 0x4, fixed_abs, tag = 'smem constant byte address 0x4 - core index']
  #allocation1 [shape = 'u32[144,128]{1,0:T(1,128)}', space=vmem, size = 0x12000, scoped, tag = 'internal scratch']
  %s0 = inlined_call_operand.vmem [shape: f32[34,32], index: 0, kind: input, shape index: {}]
  %s1 = inlined_call_operand.vmem [shape: f32[1,32], index: 1, kind: input, shape index: {}]
  %s2 = inlined_call_operand.vmem [shape: f32[1,32], index: 2, kind: input, shape index: {}]
  %s3 = inlined_call_operand.vmem [shape: bf16[32,128], index: 3, kind: input, shape index: {}]
  %s4 = inlined_call_operand.vmem [shape: f32[1,128], index: 4, kind: input, shape index: {}]
  %s5 = inlined_call_operand.vmem [shape: bf16[128,32], index: 5, kind: input, shape index: {}]
  %s6 = inlined_call_operand.vmem [shape: f32[1,32], index: 6, kind: input, shape index: {}]
  %s7 = inlined_call_operand.vmem [shape: f32[34,32], index: 7, kind: output, shape index: {}]
  %s8 = sld [smem:[#allocation0]]
  $region38: #{block_forward.7} parent=0
    _
  %s10 = ssub.s32 1, %s8
  %s11 = scalar_select 0, %s10, %s8
  // Predicated region
  $region2: #{block_forward.7} parent=0 // pred_check
    _
  $region3: #{block_forward.7} parent=0 // pred_check_branch
    %13 = sbr.rel (0) target = $region5
  $region4: #{block_forward.7} parent=0 // pred_region
    _
  $region5: #{block_forward.7} parent=0 // pred_fallthru
    _
  // Predicated region
  $region6: #{block_forward.7} parent=0 // pred_check
    _
  $region7: #{block_forward.7} parent=0 // pred_check_branch
    %15 = sbr.rel (0) target = $region9
  $region8: #{block_forward.7} parent=0 // pred_region
    _
  $region9: #{block_forward.7} parent=0 // pred_fallthru
    _
  // Predicated region
  $region10: #{block_forward.7} parent=0 // pred_check
    _
  $region11: #{block_forward.7} parent=0 // pred_check_branch
    %17 = sbr.rel (0) target = $region13
  $region12: #{block_forward.7} parent=0 // pred_region
    _
  $region13: #{block_forward.7} parent=0 // pred_fallthru
    _
  // Predicated region
  $region14: #{block_forward.7} parent=0 // pred_check
    _
  $region15: #{block_forward.7} parent=0 // pred_check_branch
    %19 = sbr.rel (0) target = $region17
  $region16: #{block_forward.7} parent=0 // pred_region
    _
  $region17: #{block_forward.7} parent=0 // pred_fallthru
    _
  // Predicated region
  $region18: #{block_forward.7} parent=0 // pred_check
    _
  $region19: #{block_forward.7} parent=0 // pred_check_branch
    %21 = sbr.rel (0) target = $region21
  $region20: #{block_forward.7} parent=0 // pred_region
    _
  $region21: #{block_forward.7} parent=0 // pred_fallthru
    _
  // Predicated region
  $region22: #{block_forward.7} parent=0 // pred_check
    _
  $region23: #{block_forward.7} parent=0 // pred_check_branch
    %23 = sbr.rel (0) target = $region25
  $region24: #{block_forward.7} parent=0 // pred_region
    _
  $region25: #{block_forward.7} parent=0 // pred_fallthru
    _
  // Predicated region
  $region26: #{block_forward.7} parent=0 // pred_check
    _
  $region27: #{block_forward.7} parent=0 // pred_check_branch
    %25 = sbr.rel (0) target = $region29
  $region28: #{block_forward.7} parent=0 // pred_region
    _
  $region29: #{block_forward.7} parent=0 // pred_fallthru
    _
  %v27 = vld [vmem:[%s0] sm:$0xff]
  %v28 = vld [vmem:[%s0 + $0x8] sm:$0xff]
  %v29 = vld [vmem:[%s0 + $0x10] sm:$0xff]
  %v30 = vld [vmem:[%s0 + $0x18] sm:$0xff]
  %v31 = vld [vmem:[%s0 + $0x20] sm:$0x3]
  %v32 = vld [vmem:[%s1] sm:$0x1]
  %v33 = vld [vmem:[%s2] sm:$0x1]
  %vm34 = vcmask 261120
  %v35 = vsel %vm34, %v27, 0.0
  %36 = vadd.xlane.f32.xlu0 %v35
  %v37 = vpop.xlane.xlu0 %36
  %v38 = vsel %vm34, %v28, 0.0
  %39 = vadd.xlane.f32.xlu0 %v38
  %v40 = vpop.xlane.xlu0 %39
  %v41 = vsel %vm34, %v29, 0.0
  %42 = vadd.xlane.f32.xlu0 %v41
  %v43 = vpop.xlane.xlu0 %42
  %v44 = vsel %vm34, %v30, 0.0
  %45 = vadd.xlane.f32.xlu0 %v44
  %v46 = vpop.xlane.xlu0 %45
  %vm47 = vcmask 254976
  %v48 = vsel %vm47, %v31, 0.0
  %49 = vadd.xlane.f32.xlu0 %v48
  %v50 = vpop.xlane.xlu0 %49
  %v51 = vrcp.pop 32.0
  %v52 = vmul.f32 %v37, %v51
  %v53 = vmul.f32 %v40, %v51
  %v54 = vmul.f32 %v43, %v51
  %v55 = vmul.f32 %v46, %v51
  %v56 = vmul.f32 %v50, %v51
  %v57 = vsub.f32 %v27, %v52
  %v58 = vsub.f32 %v28, %v53
  %v59 = vsub.f32 %v29, %v54
  %v60 = vsub.f32 %v30, %v55
  %v61 = vsub.f32 %v31, %v56
  %v62 = vmul.f32 %v57, %v57
  %v63 = vmul.f32 %v58, %v58
  %v64 = vmul.f32 %v59, %v59
  %v65 = vmul.f32 %v60, %v60
  %v66 = vmul.f32 %v61, %v61
  %v67 = vsel %vm34, %v62, 0.0
  %68 = vadd.xlane.f32.xlu0 %v67
  %v69 = vpop.xlane.xlu0 %68
  %v70 = vsel %vm34, %v63, 0.0
  %71 = vadd.xlane.f32.xlu0 %v70
  %v72 = vpop.xlane.xlu0 %71
  %v73 = vsel %vm34, %v64, 0.0
  %74 = vadd.xlane.f32.xlu0 %v73
  %v75 = vpop.xlane.xlu0 %74
  %v76 = vsel %vm34, %v65, 0.0
  %77 = vadd.xlane.f32.xlu0 %v76
  %v78 = vpop.xlane.xlu0 %77
  %v79 = vsel %vm47, %v66, 0.0
  %80 = vadd.xlane.f32.xlu0 %v79
  %v81 = vpop.xlane.xlu0 %80
  %v82 = vmul.f32 %v69, %v51
  %v83 = vmul.f32 %v72, %v51
  %v84 = vmul.f32 %v75, %v51
  %v85 = vmul.f32 %v78, %v51
  %v86 = vmul.f32 %v81, %v51
  %v87 = vadd.f32 %v82, 1e-05
  %v88 = vadd.f32 %v83, 1e-05
  %v89 = vadd.f32 %v84, 1e-05
  %v90 = vadd.f32 %v85, 1e-05
  %v91 = vadd.f32 %v86, 1e-05
  %v92 = vrsqrt.pop %v87
  %v93 = vrsqrt.pop %v88
  %v94 = vrsqrt.pop %v89
  %v95 = vrsqrt.pop %v90
  %v96 = vrsqrt.pop %v91
  %v97 = vmul.f32 %v57, %v92
  %v98 = vmul.f32 %v58, %v93
  %v99 = vmul.f32 %v59, %v94
  %v100 = vmul.f32 %v60, %v95
  %v101 = vmul.f32 %v61, %v96
  %v103 = vlaneseq
  %v104 = vshrl.u32 %v103, 7
  %v105 = vsub.s32 0, %v104
  %v106 = vrot.slane %v32, %v105
  %v108 = vmul.f32 %v97, %v106
  %v109 = vmul.f32 %v98, %v106
  %v110 = vmul.f32 %v99, %v106
  %v111 = vmul.f32 %v100, %v106
  %v112 = vmul.f32 %v101, %v106
  %v114 = vlaneseq
  %v115 = vshrl.u32 %v114, 7
  %v116 = vsub.s32 0, %v115
  %v117 = vrot.slane %v33, %v116
  %v119 = vadd.f32 %v108, %v117
  %v120 = vadd.f32 %v109, %v117
  %v121 = vadd.f32 %v110, %v117
  %v122 = vadd.f32 %v111, %v117
  %v123 = vadd.f32 %v112, %v117
  %v124 = vpack.c.bf16 %v120, %v119
  %v125 = vpack.c.bf16 %v122, %v121
  %v126 = vpack.c.bf16 %v123, %v123
  %v127 = vld [vmem:[%s3] sm:$0xf]
  %v128 = vld [vmem:[%s3 + $0x4] sm:$0xf]
  %v129 = vld [vmem:[%s3 + $0x8] sm:$0xf]
  %v130 = vld [vmem:[%s3 + $0xc] sm:$0xf]
  %v131 = vld [vmem:[%s4] sm:$0x1]
  %v133 = vlaneseq
  %v134 = vshrl.u32 %v133, 7
  %v135 = vsub.s32 0, %v134
  %v136 = vrot.slane %v131, %v135
  %v142 = vunpack.c.l.b16 %v127
  %v143 = vunpack.c.l.b16 %v128
  %v144 = vunpack.c.l.b16 %v129
  %v145 = vunpack.c.l.b16 %v130
  %v146 = vpack.c.b16 %v143, %v142
  %v147 = vpack.c.b16 %v145, %v144
  %v151 = vsel %vm34, %v124, 0
  %v154 = vsel %vm34, %v125, 0
  %v157 = vsel %vm34, %v126, 0
  %159 = vmatprep.subr.bf16.mxu0 0
  %160 = vmatpush1.bf16.msra.mxu0 %v146
  %161 = vmatprep.subr.bf16.mxu0 0
  %162 = vmatpush1.bf16.msra.mxu0 %v147
  %163 = vmatprep.subr.bf16.mxu0 0
  %164 = vmatpush1.bf16.msra.mxu0 0
  %165 = vmatprep.subr.bf16.mxu0 0
  %166 = vmatpush1.bf16.msra.mxu0 0
  %167 = vmatprep.subr.bf16.mxu0 0
  %168 = vmatpush1.bf16.msra.mxu0 0
  %169 = vmatprep.subr.bf16.mxu0 0
  %170 = vmatpush1.bf16.msra.mxu0 0
  %171 = vmatprep.subr.bf16.mxu0 0
  %172 = vmatpush1.bf16.msra.mxu0 0
  %173 = vmatprep.subr.bf16.mxu0 0
  %174 = vmatpush1.bf16.msra.mxu0 0
  %175 = vmatprep.subr.bf16.mxu0 0
  %176 = vmatpush1.bf16.msra.mxu0 0
  %177 = vmatprep.subr.bf16.mxu0 0
  %178 = vmatpush1.bf16.msra.mxu0 0
  %179 = vmatprep.subr.bf16.mxu0 0
  %180 = vmatpush1.bf16.msra.mxu0 0
  %181 = vmatprep.subr.bf16.mxu0 0
  %182 = vmatpush1.bf16.msra.mxu0 0
  %183 = vmatprep.subr.bf16.mxu0 0
  %184 = vmatpush1.bf16.msra.mxu0 0
  %185 = vmatprep.subr.bf16.mxu0 0
  %186 = vmatpush1.bf16.msra.mxu0 0
  %187 = vmatprep.subr.bf16.mxu0 0
  %188 = vmatpush1.bf16.msra.mxu0 0
  %189 = vmatprep.subr.bf16.mxu0 0
  %190 = vmatpush1.bf16.msra.mxu0 0
  %191 = vmatprep.mubr.bf16.mxu0 0
  %192 = vmatmul.mubr.bf16.gmra.mrb[0].mxu0 %v151
  %v193 = vpop.f32.mrb[0].mxu0
  %v194 = vadd.f32 %v136, %v193
  %v195 = vpop.f32.mrb[0].mxu0
  %v196 = vpop.f32.mrb[0].mxu0
  %v197 = vadd.f32 %v136, %v196
  %v198 = vpop.f32.mrb[0].mxu0
  %199 = vmatprep.mubr.bf16.mxu0 0
  %200 = vmatmul.mubr.bf16.gmra.mrb[0].mxu0 %v154
  %v201 = vpop.f32.mrb[0].mxu0
  %v202 = vadd.f32 %v136, %v201
  %v203 = vpop.f32.mrb[0].mxu0
  %v204 = vpop.f32.mrb[0].mxu0
  %v205 = vadd.f32 %v136, %v204
  %v206 = vpop.f32.mrb[0].mxu0
  %207 = vmatprep.mubr.bf16.mxu0 0
  %208 = vmatmul.mubr.bf16.gmra.mrb[0].mxu0 %v157
  %v209 = vpop.f32.mrb[0].mxu0
  %v210 = vadd.f32 %v136, %v209
  %v211 = vpop.f32.mrb[0].mxu0
  %v212 = vpop.f32.mrb[0].mxu0
  %v213 = vpop.f32.mrb[0].mxu0
  %214 = vdwg.mxu0
  %v215 = vmul.f32 %v194, 0.70710677
  %v216 = vmul.f32 %v197, 0.70710677
  %v217 = vmul.f32 %v202, 0.70710677
  %v218 = vmul.f32 %v205, 0.70710677
  %v219 = vmul.f32 %v210, 0.70710677
  %v220 = vand.u32 2147483647, %v215
  %v221 = vand.u32 2147483647, %v216
  %v222 = vand.u32 2147483647, %v217
  %v223 = vand.u32 2147483647, %v218
  %v224 = vand.u32 2147483647, %v219
  %v225 = vmul.f32 %v220, 0.3275911
  %v226 = vmul.f32 %v221, 0.3275911
  %v227 = vmul.f32 %v222, 0.3275911
  %v228 = vmul.f32 %v223, 0.3275911
  %v229 = vmul.f32 %v224, 0.3275911
  %v230 = vadd.f32 %v225, 1.0
  %v231 = vadd.f32 %v226, 1.0
  %v232 = vadd.f32 %v227, 1.0
  %v233 = vadd.f32 %v228, 1.0
  %v234 = vadd.f32 %v229, 1.0
  %v235 = vrcp.pop %v230
  %v236 = vmul.f32 1.0, %v235
  %v237 = vrcp.pop %v231
  %v238 = vmul.f32 1.0, %v237
  %v239 = vrcp.pop %v232
  %v240 = vmul.f32 1.0, %v239
  %v241 = vrcp.pop %v233
  %v242 = vmul.f32 1.0, %v241
  %v243 = vrcp.pop %v234
  %v244 = vmul.f32 1.0, %v243
  %v245 = vmul.f32 %v236, 1.0614054
  %v246 = vmul.f32 %v238, 1.0614054
  %v247 = vmul.f32 %v240, 1.0614054
  %v248 = vmul.f32 %v242, 1.0614054
  %v249 = vmul.f32 %v244, 1.0614054
  %v250 = vadd.f32 %v245, -1.4531521
  %v251 = vadd.f32 %v246, -1.4531521
  %v252 = vadd.f32 %v247, -1.4531521
  %v253 = vadd.f32 %v248, -1.4531521
  %v254 = vadd.f32 %v249, -1.4531521
  %v255 = vmul.f32 %v236, %v250
  %v256 = vmul.f32 %v238, %v251
  %v257 = vmul.f32 %v240, %v252
  %v258 = vmul.f32 %v242, %v253
  %v259 = vmul.f32 %v244, %v254
  %v260 = vadd.f32 %v255, 1.4214138
  %v261 = vadd.f32 %v256, 1.4214138
  %v262 = vadd.f32 %v257, 1.4214138
  %v263 = vadd.f32 %v258, 1.4214138
  %v264 = vadd.f32 %v259, 1.4214138
  %v265 = vmul.f32 %v236, %v260
  %v266 = vmul.f32 %v238, %v261
  %v267 = vmul.f32 %v240, %v262
  %v268 = vmul.f32 %v242, %v263
  %v269 = vmul.f32 %v244, %v264
  %v270 = vadd.f32 %v265, -0.28449672
  %v271 = vadd.f32 %v266, -0.28449672
  %v272 = vadd.f32 %v267, -0.28449672
  %v273 = vadd.f32 %v268, -0.28449672
  %v274 = vadd.f32 %v269, -0.28449672
  %v275 = vmul.f32 %v236, %v270
  %v276 = vmul.f32 %v238, %v271
  %v277 = vmul.f32 %v240, %v272
  %v278 = vmul.f32 %v242, %v273
  %v279 = vmul.f32 %v244, %v274
  %v280 = vadd.f32 %v275, 0.2548296
  %v281 = vadd.f32 %v276, 0.2548296
  %v282 = vadd.f32 %v277, 0.2548296
  %v283 = vadd.f32 %v278, 0.2548296
  %v284 = vadd.f32 %v279, 0.2548296
  %v285 = vmul.f32 %v236, %v280
  %v286 = vmul.f32 %v238, %v281
  %v287 = vmul.f32 %v240, %v282
  %v288 = vmul.f32 %v242, %v283
  %v289 = vmul.f32 %v244, %v284
  %v290 = vsub.f32 0.0, %v220
  %v291 = vsub.f32 0.0, %v221
  %v292 = vsub.f32 0.0, %v222
  %v293 = vsub.f32 0.0, %v223
  %v294 = vsub.f32 0.0, %v224
  %v295 = vmul.f32 %v290, %v220
  %v296 = vmul.f32 %v291, %v221
  %v297 = vmul.f32 %v292, %v222
  %v298 = vmul.f32 %v293, %v223
  %v299 = vmul.f32 %v294, %v224
  %v300 = vmul.f32 %v295, 1.442695
  %v301 = vpow.pop %v300
  %v302 = vmul.f32 %v296, 1.442695
  %v303 = vpow.pop %v302
  %v304 = vmul.f32 %v297, 1.442695
  %v305 = vpow.pop %v304
  %v306 = vmul.f32 %v298, 1.442695
  %v307 = vpow.pop %v306
  %v308 = vmul.f32 %v299, 1.442695
  %v309 = vpow.pop %v308
  %v310 = vmul.f32 %v285, %v301
  %v311 = vmul.f32 %v286, %v303
  %v312 = vmul.f32 %v287, %v305
  %v313 = vmul.f32 %v288, %v307
  %v314 = vmul.f32 %v289, %v309
  %v315 = vsub.f32 1.0, %v310
  %v316 = vsub.f32 1.0, %v311
  %v317 = vsub.f32 1.0, %v312
  %v318 = vsub.f32 1.0, %v313
  %v319 = vsub.f32 1.0, %v314
  %vm320 = vcmp.lt.f32.partialorder %v215, 0.0
  %vm321 = vcmp.lt.f32.partialorder %v216, 0.0
  %vm322 = vcmp.lt.f32.partialorder %v217, 0.0
  %vm323 = vcmp.lt.f32.partialorder %v218, 0.0
  %vm324 = vcmp.lt.f32.partialorder %v219, 0.0
  %v325 = vsub.f32 0.0, %v315
  %v326 = vsub.f32 0.0, %v316
  %v327 = vsub.f32 0.0, %v317
  %v328 = vsub.f32 0.0, %v318
  %v329 = vsub.f32 0.0, %v319
  %v330 = vsel %vm320, %v325, %v315
  %v331 = vsel %vm321, %v326, %v316
  %v332 = vsel %vm322, %v327, %v317
  %v333 = vsel %vm323, %v328, %v318
  %v334 = vsel %vm324, %v329, %v319
  %v335 = vmul.f32 %v194, 0.5
  %v336 = vmul.f32 %v197, 0.5
  %v337 = vmul.f32 %v202, 0.5
  %v338 = vmul.f32 %v205, 0.5
  %v339 = vmul.f32 %v210, 0.5
  %v340 = vadd.f32 %v330, 1.0
  %v341 = vadd.f32 %v331, 1.0
  %v342 = vadd.f32 %v332, 1.0
  %v343 = vadd.f32 %v333, 1.0
  %v344 = vadd.f32 %v334, 1.0
  %v345 = vmul.f32 %v335, %v340
  %v346 = vmul.f32 %v336, %v341
  %v347 = vmul.f32 %v337, %v342
  %v348 = vmul.f32 %v338, %v343
  %v349 = vmul.f32 %v339, %v344
  %v350 = vpack.c.bf16 %v346, %v345
  %v351 = vpack.c.bf16 %v348, %v347
  %v352 = vpack.c.bf16 %v349, %v349
  %v353 = vld [vmem:[%s5] sm:$0xf]
  %v354 = vld [vmem:[%s5 + $0x4] sm:$0xf]
  %v355 = vld [vmem:[%s5 + $0x8] sm:$0xf]
  %v356 = vld [vmem:[%s5 + $0xc] sm:$0xf]
  %v357 = vld [vmem:[%s5 + $0x10] sm:$0xf]
  %v358 = vld [vmem:[%s5 + $0x14] sm:$0xf]
  %v359 = vld [vmem:[%s5 + $0x18] sm:$0xf]
  %v360 = vld [vmem:[%s5 + $0x1c] sm:$0xf]
  %v361 = vld [vmem:[%s5 + $0x20] sm:$0xf]
  %v362 = vld [vmem:[%s5 + $0x24] sm:$0xf]
  %v363 = vld [vmem:[%s5 + $0x28] sm:$0xf]
  %v364 = vld [vmem:[%s5 + $0x2c] sm:$0xf]
  %v365 = vld [vmem:[%s5 + $0x30] sm:$0xf]
  %v366 = vld [vmem:[%s5 + $0x34] sm:$0xf]
  %v367 = vld [vmem:[%s5 + $0x38] sm:$0xf]
  %v368 = vld [vmem:[%s5 + $0x3c] sm:$0xf]
  %v369 = vld [vmem:[%s6] sm:$0x1]
  %v371 = vlaneseq
  %v372 = vshrl.u32 %v371, 7
  %v373 = vsub.s32 0, %v372
  %v374 = vrot.slane %v369, %v373
  %v392 = vunpack.c.l.b16 %v353
  %v393 = vunpack.c.l.b16 %v354
  %v394 = vunpack.c.l.b16 %v355
  %v395 = vunpack.c.l.b16 %v356
  %v396 = vunpack.c.l.b16 %v357
  %v397 = vunpack.c.l.b16 %v358
  %v398 = vunpack.c.l.b16 %v359
  %v399 = vunpack.c.l.b16 %v360
  %v400 = vunpack.c.l.b16 %v361
  %v401 = vunpack.c.l.b16 %v362
  %v402 = vunpack.c.l.b16 %v363
  %v403 = vunpack.c.l.b16 %v364
  %v404 = vunpack.c.l.b16 %v365
  %v405 = vunpack.c.l.b16 %v366
  %v406 = vunpack.c.l.b16 %v367
  %v407 = vunpack.c.l.b16 %v368
  %v408 = vpack.c.b16 %v393, %v392
  %v409 = vpack.c.b16 %v395, %v394
  %v410 = vpack.c.b16 %v397, %v396
  %v411 = vpack.c.b16 %v399, %v398
  %v412 = vpack.c.b16 %v401, %v400
  %v413 = vpack.c.b16 %v403, %v402
  %v414 = vpack.c.b16 %v405, %v404
  %v415 = vpack.c.b16 %v407, %v406
  %424 = vmatprep.subr.bf16.mxu0 0
  %425 = vmatpush1.bf16.msra.mxu0 %v408
  %426 = vmatprep.subr.bf16.mxu0 0
  %427 = vmatpush1.bf16.msra.mxu0 %v409
  %428 = vmatprep.subr.bf16.mxu0 0
  %429 = vmatpush1.bf16.msra.mxu0 %v410
  %430 = vmatprep.subr.bf16.mxu0 0
  %431 = vmatpush1.bf16.msra.mxu0 %v411
  %432 = vmatprep.subr.bf16.mxu0 0
  %433 = vmatpush1.bf16.msra.mxu0 %v412
  %434 = vmatprep.subr.bf16.mxu0 0
  %435 = vmatpush1.bf16.msra.mxu0 %v413
  %436 = vmatprep.subr.bf16.mxu0 0
  %437 = vmatpush1.bf16.msra.mxu0 %v414
  %438 = vmatprep.subr.bf16.mxu0 0
  %439 = vmatpush1.bf16.msra.mxu0 %v415
  %440 = vmatprep.subr.bf16.mxu0 0
  %441 = vmatpush1.bf16.msra.mxu0 0
  %442 = vmatprep.subr.bf16.mxu0 0
  %443 = vmatpush1.bf16.msra.mxu0 0
  %444 = vmatprep.subr.bf16.mxu0 0
  %445 = vmatpush1.bf16.msra.mxu0 0
  %446 = vmatprep.subr.bf16.mxu0 0
  %447 = vmatpush1.bf16.msra.mxu0 0
  %448 = vmatprep.subr.bf16.mxu0 0
  %449 = vmatpush1.bf16.msra.mxu0 0
  %450 = vmatprep.subr.bf16.mxu0 0
  %451 = vmatpush1.bf16.msra.mxu0 0
  %452 = vmatprep.subr.bf16.mxu0 0
  %453 = vmatpush1.bf16.msra.mxu0 0
  %454 = vmatprep.subr.bf16.mxu0 0
  %455 = vmatpush1.bf16.msra.mxu0 0
  %456 = vmatprep.mubr.bf16.mxu0 0
  %457 = vmatmul.mubr.bf16.gmra.mrb[0].mxu0 %v350
  %v458 = vpop.f32.mrb[0].mxu0
  %v459 = vadd.f32 %v374, %v458
  %v460 = vpop.f32.mrb[0].mxu0
  %v461 = vpop.f32.mrb[0].mxu0
  %v462 = vadd.f32 %v374, %v461
  %v463 = vpop.f32.mrb[0].mxu0
  %464 = vmatprep.mubr.bf16.mxu0 0
  %465 = vmatmul.mubr.bf16.gmra.mrb[0].mxu0 %v351
  %v466 = vpop.f32.mrb[0].mxu0
  %v467 = vadd.f32 %v374, %v466
  %v468 = vpop.f32.mrb[0].mxu0
  %v469 = vpop.f32.mrb[0].mxu0
  %v470 = vadd.f32 %v374, %v469
  %v471 = vpop.f32.mrb[0].mxu0
  %472 = vmatprep.mubr.bf16.mxu0 0
  %473 = vmatmul.mubr.bf16.gmra.mrb[0].mxu0 %v352
  %v474 = vpop.f32.mrb[0].mxu0
  %v475 = vadd.f32 %v374, %v474
  %v476 = vpop.f32.mrb[0].mxu0
  %v477 = vpop.f32.mrb[0].mxu0
  %v478 = vpop.f32.mrb[0].mxu0
  %479 = vdwg.mxu0
  %v480 = vadd.f32 %v27, %v459
  %v481 = vadd.f32 %v28, %v462
  %v482 = vadd.f32 %v29, %v467
  %v483 = vadd.f32 %v30, %v470
  %v484 = vadd.f32 %v31, %v475
  %485 = vst.msk [vmem:[%s7] sm:$0xff] %vm34, %v480
  %486 = vst.msk [vmem:[%s7 + $0x8] sm:$0xff] %vm34, %v481
  %487 = vst.msk [vmem:[%s7 + $0x10] sm:$0xff] %vm34, %v482
  %488 = vst.msk [vmem:[%s7 + $0x18] sm:$0xff] %vm34, %v483
  %489 = vst.msk [vmem:[%s7 + $0x20] sm:$0x3] %vm47, %v484
  // Predicated region
  $region30: #{block_forward.7} parent=0 // pred_check
    _
  $region31: #{block_forward.7} parent=0 // pred_check_branch
    %491 = sbr.rel (0) target = $region33
  $region32: #{block_forward.7} parent=0 // pred_region
    _
  $region33: #{block_forward.7} parent=0 // pred_fallthru
    _
  // Predicated region
  $region34: #{block_forward.7} parent=0 // pred_check
    _
  $region35: #{block_forward.7} parent=0 // pred_check_branch
    %493 = sbr.rel (0) target = $region37
  $region36: #{block_forward.7} parent=0 // pred_region
    _
  $region37: #{block_forward.7} parent=0 // pred_fallthru
    _

// kernel: block_forward.6
$region0: #{block_forward.6}
  #allocation0 [shape = 'u32[]', space=smem, size = 0x4, offset = 0x4, fixed_abs, tag = 'smem constant byte address 0x4 - core index']
  #allocation1 [shape = 'u32[144,128]{1,0:T(1,128)}', space=vmem, size = 0x12000, scoped, tag = 'internal scratch']
  %s0 = inlined_call_operand.vmem [shape: bf16[2,17,96], index: 0, kind: input, shape index: {}, may-alias: {0,1}]
  %s1 = inlined_call_operand.vmem [shape: bf16[2,17,96], index: 1, kind: input, shape index: {}, may-alias: {0,1}]
  %s2 = inlined_call_operand.vmem [shape: f32[2,17,32], index: 2, kind: input, shape index: {}]
  %s3 = inlined_call_operand.vmem [shape: bf16[32,32], index: 3, kind: input, shape index: {}]
  %s4 = inlined_call_operand.vmem [shape: f32[1,32], index: 4, kind: input, shape index: {}]
  %s5 = inlined_call_operand.vmem [shape: f32[2,17,32], index: 5, kind: output, shape index: {}]
  %s6 = sld [smem:[#allocation0]]
  $region53: #{block_forward.6} parent=0
    _
  %s8 = ssub.s32 1, %s6
  %s9 = scalar_select 0, %s8, %s6
  loop: start=0, step=1, limit=4
  $region2: #{block_forward.6} parent=0 // loop_pre_header
    _
  $region3: #{block_forward.6} parent=0 // loop_header
    %s11 = sphi 0, %s15
    %p12 = scmp.ge.s32.totalorder %s11, 4
    %s18 = sphi 0, %s30
    %s19 = sphi 0, %s26
    %s20 = sphi 0, %s18
    %s21 = sphi 0, %s19
    %s22 = sphi 0, %s20
    %s23 = sphi 0, %s21
    %s35 = sphi 0, %s37
    %s38 = sphi 0, %s35
    %s39 = sphi 0, %s38
    %s55 = sphi 0, %s39
    %s61 = sphi 0, %s63
    %s64 = sphi 0, %s61
    %s65 = sphi 0, %s64
    %s81 = sphi 0, %s65
    %s89 = sphi 0, %s91
    %s92 = sphi 0, %s89
    %s93 = sphi 0, %s92
    %s109 = sphi 0, %s93
    %s113 = sphi 0, %s113
    %s115 = sphi 0, %s113
    %s116 = sphi 0, %s115
    %s130 = sphi 0, %s116
    %s134 = sphi 0, %s134
    %s136 = sphi 0, %s134
    %s137 = sphi 0, %s136
    %s151 = sphi 0, %s137
    %s159 = sphi 0, %s161
    %s162 = sphi 0, %s159
    %s163 = sphi 0, %s162
    %s179 = sphi 0, %s163
  $region4: #{block_forward.6} parent=0 // loop_header_branch
    %14 = sbr.rel (%p12) target = $region8
  $region5: #{block_forward.6} parent=0 // loop_body
    %s16 = ssub.s32 %s11, 1
    %s17 = ssub.s32 %s11, 2
    %s24 = sadd.s32 1, %s19
    %p25 = scmp.ge.s32.totalorder %s24, 1
    %s26 = scalar_select %p25, 0, %s24
    %s27 = sadd.s32 1, %s18
    %s28 = scalar_select %p25, %s27, %s18
    %p29 = scmp.ge.s32.totalorder %s28, 2
    %s30 = scalar_select %p29, 0, %s28
    %s31 = ssub.s32 %s18, %s30
    %s32 = ssub.s32 %s19, %s26
    %s33 = sor.u32 %s31, %s32
    %p34 = scmp.eq.s32.totalorder %s33, 0
    %s36 = sadd.s32 %s35, 1
    %s37 = scalar_select %p34, %s35, %s36
    %p40 = pneg %p34
    %p41 = scmp.eq.s32.totalorder %s11, 1
    %p42 = por %p40, %p41
    %p43 = scmp.ne.s32.totalorder %s35, %s38
    %p44 = scmp.eq.s32.totalorder %s11, 0
    %p45 = por %p43, %p44
    %p46 = scmp.ne.s32.totalorder %s35, %s38
    %p47 = scmp.eq.s32.totalorder %s16, 1
    %p48 = por %p46, %p47
    %p49 = scmp.ne.s32.totalorder %s38, %s39
    %p50 = scmp.eq.s32.totalorder %s16, 0
    %p51 = por %p49, %p50
    %p52 = scmp.ne.s32.totalorder %s38, %s39
    %p53 = scmp.eq.s32.totalorder %s17, 1
    %p54 = por %p52, %p53
    %p56 = scmp.ne.s32.totalorder %s39, %s55
    %p57 = scmp.eq.s32.totalorder %s17, 0
    %p58 = por %p56, %p57
    %s59 = ssub.s32 %s18, %s30
    %p60 = scmp.eq.s32.totalorder %s59, 0
    %s62 = sadd.s32 %s61, 1
    %s63 = scalar_select %p60, %s61, %s62
    %p66 = pneg %p60
    %p67 = scmp.eq.s32.totalorder %s11, 1
    %p68 = por %p66, %p67
    %p69 = scmp.ne.s32.totalorder %s61, %s64
    %p70 = scmp.eq.s32.totalorder %s11, 0
    %p71 = por %p69, %p70
    %p72 = scmp.ne.s32.totalorder %s61, %s64
    %p73 = scmp.eq.s32.totalorder %s16, 1
    %p74 = por %p72, %p73
    %p75 = scmp.ne.s32.totalorder %s64, %s65
    %p76 = scmp.eq.s32.totalorder %s16, 0
    %p77 = por %p75, %p76
    %p78 = scmp.ne.s32.totalorder %s64, %s65
    %p79 = scmp.eq.s32.totalorder %s17, 1
    %p80 = por %p78, %p79
    %p82 = scmp.ne.s32.totalorder %s65, %s81
    %p83 = scmp.eq.s32.totalorder %s17, 0
    %p84 = por %p82, %p83
    %s85 = ssub.s32 %s18, %s30
    %s86 = ssub.s32 %s19, %s26
    %s87 = sor.u32 %s85, %s86
    %p88 = scmp.eq.s32.totalorder %s87, 0
    %s90 = sadd.s32 %s89, 1
    %s91 = scalar_select %p88, %s89, %s90
    %p94 = pneg %p88
    %p95 = scmp.eq.s32.totalorder %s11, 1
    %p96 = por %p94, %p95
    %p97 = scmp.ne.s32.totalorder %s89, %s92
    %p98 = scmp.eq.s32.totalorder %s11, 0
    %p99 = por %p97, %p98
    %p100 = scmp.ne.s32.totalorder %s89, %s92
    %p101 = scmp.eq.s32.totalorder %s16, 1
    %p102 = por %p100, %p101
    %p103 = scmp.ne.s32.totalorder %s92, %s93
    %p104 = scmp.eq.s32.totalorder %s16, 0
    %p105 = por %p103, %p104
    %p106 = scmp.ne.s32.totalorder %s92, %s93
    %p107 = scmp.eq.s32.totalorder %s17, 1
    %p108 = por %p106, %p107
    %p110 = scmp.ne.s32.totalorder %s93, %s109
    %p111 = scmp.eq.s32.totalorder %s17, 0
    %p112 = por %p110, %p111
    %s114 = sadd.s32 %s113, 1
    %p117 = scmp.eq.s32.totalorder %s11, 1
    %p118 = scmp.ne.s32.totalorder %s113, %s115
    %p119 = scmp.eq.s32.totalorder %s11, 0
    %p120 = por %p118, %p119
    %p121 = scmp.ne.s32.totalorder %s113, %s115
    %p122 = scmp.eq.s32.totalorder %s16, 1
    %p123 = por %p121, %p122
    %p124 = scmp.ne.s32.totalorder %s115, %s116
    %p125 = scmp.eq.s32.totalorder %s16, 0
    %p126 = por %p124, %p125
    %p127 = scmp.ne.s32.totalorder %s115, %s116
    %p128 = scmp.eq.s32.totalorder %s17, 1
    %p129 = por %p127, %p128
    %p131 = scmp.ne.s32.totalorder %s116, %s130
    %p132 = scmp.eq.s32.totalorder %s17, 0
    %p133 = por %p131, %p132
    %s135 = sadd.s32 %s134, 1
    %p138 = scmp.eq.s32.totalorder %s11, 1
    %p139 = scmp.ne.s32.totalorder %s134, %s136
    %p140 = scmp.eq.s32.totalorder %s11, 0
    %p141 = por %p139, %p140
    %p142 = scmp.ne.s32.totalorder %s134, %s136
    %p143 = scmp.eq.s32.totalorder %s16, 1
    %p144 = por %p142, %p143
    %p145 = scmp.ne.s32.totalorder %s136, %s137
    %p146 = scmp.eq.s32.totalorder %s16, 0
    %p147 = por %p145, %p146
    %p148 = scmp.ne.s32.totalorder %s136, %s137
    %p149 = scmp.eq.s32.totalorder %s17, 1
    %p150 = por %p148, %p149
    %p152 = scmp.ne.s32.totalorder %s137, %s151
    %p153 = scmp.eq.s32.totalorder %s17, 0
    %p154 = por %p152, %p153
    %s155 = ssub.s32 %s18, %s30
    %s156 = ssub.s32 %s19, %s26
    %s157 = sor.u32 %s155, %s156
    %p158 = scmp.eq.s32.totalorder %s157, 0
    %s160 = sadd.s32 %s159, 1
    %s161 = scalar_select %p158, %s159, %s160
    %p164 = pneg %p158
    %p165 = scmp.eq.s32.totalorder %s11, 1
    %p166 = por %p164, %p165
    %p167 = scmp.ne.s32.totalorder %s159, %s162
    %p168 = scmp.eq.s32.totalorder %s11, 0
    %p169 = por %p167, %p168
    %p170 = scmp.ne.s32.totalorder %s159, %s162
    %p171 = scmp.eq.s32.totalorder %s16, 1
    %p172 = por %p170, %p171
    %p173 = scmp.ne.s32.totalorder %s162, %s163
    %p174 = scmp.eq.s32.totalorder %s16, 0
    %p175 = por %p173, %p174
    %p176 = scmp.ne.s32.totalorder %s162, %s163
    %p177 = scmp.eq.s32.totalorder %s17, 1
    %p178 = por %p176, %p177
    %p180 = scmp.ne.s32.totalorder %s163, %s179
    %p181 = scmp.eq.s32.totalorder %s17, 0
    %p182 = por %p180, %p181
    %p183 = scmp.le.s32.totalorder 1, %s11
    %p184 = scmp.lt.s32.totalorder %s11, 3
    %p185 = pnand %p183, %p184
    %p186 = pneg %p185
    // Predicated region
    $region9: #{block_forward.6} parent=5 // pred_check
      _
    $region10: #{block_forward.6} parent=5 // pred_check_branch
      %188 = sbr.rel (%p185) target = $region12
    $region11: #{block_forward.6} parent=5 // pred_region
      %s189 = ssub.s32 %s11, 1
      // Predicated region
      $region13: #{block_forward.6} parent=11 // pred_check
        %p190 = pneg %p126
      $region14: #{block_forward.6} parent=11 // pred_check_branch
        %192 = sbr.rel (%p190) target = $region16
      $region15: #{block_forward.6} parent=11 // pred_region
        _
      $region16: #{block_forward.6} parent=11 // pred_fallthru
        _
      // Predicated region
      $region17: #{block_forward.6} parent=11 // pred_check
        %p193 = pneg %p147
      $region18: #{block_forward.6} parent=11 // pred_check_branch
        %195 = sbr.rel (%p193) target = $region20
      $region19: #{block_forward.6} parent=11 // pred_region
        _
      $region20: #{block_forward.6} parent=11 // pred_fallthru
        _
    $region12: #{block_forward.6} parent=5 // pred_fallthru
      _
    %p196 = scmp.lt.s32.totalorder %s11, 2
    // Predicated region
    $region21: #{block_forward.6} parent=5 // pred_check
      %p197 = pneg %p196
    $region22: #{block_forward.6} parent=5 // pred_check_branch
      %199 = sbr.rel (%p197) target = $region24
    $region23: #{block_forward.6} parent=5 // pred_region
      // Predicated region
      $region25: #{block_forward.6} parent=23 // pred_check
        %p200 = pneg %p45
      $region26: #{block_forward.6} parent=23 // pred_check_branch
        %202 = sbr.rel (%p200) target = $region28
      $region27: #{block_forward.6} parent=23 // pred_region
        %s203 = smul.u32 3, %s19
        %p204 = scmp.lt.s32.totalorder %s18, 1
        %s205 = scalar_select %p204, %s18, 1
        %p206 = scmp.lt.s32.totalorder %s203, 2
        %s207 = scalar_select %p206, %s203, 2
        %s208 = smul.addr %s205, 3
        %s209 = sadd.s32 %s207, %s208
        %s210 = smul.addr %s209, 4
        %s211 = scalar_lea.vmem %s0, %s210
        %s212 = smul.u32 3, %s19
      $region28: #{block_forward.6} parent=23 // pred_fallthru
        _
      // Predicated region
      $region29: #{block_forward.6} parent=23 // pred_check
        %p213 = pneg %p71
      $region30: #{block_forward.6} parent=23 // pred_check_branch
        %215 = sbr.rel (%p213) target = $region32
      $region31: #{block_forward.6} parent=23 // pred_region
        %p216 = scmp.lt.s32.totalorder %s18, 1
        %s217 = scalar_select %p216, %s18, 1
        %s218 = smul.addr %s217, 3
        %s219 = smul.addr %s218, 4
        %s220 = scalar_lea.vmem %s1, %s219
      $region32: #{block_forward.6} parent=23 // pred_fallthru
        _
      // Predicated region
      $region33: #{block_forward.6} parent=23 // pred_check
        %p221 = pneg %p99
      $region34: #{block_forward.6} parent=23 // pred_check_branch
        %223 = sbr.rel (%p221) target = $region36
      $region35: #{block_forward.6} parent=23 // pred_region
        %s224 = smul.u32 3, %s19
        %p225 = scmp.lt.s32.totalorder %s18, 1
        %s226 = scalar_select %p225, %s18, 1
        %p227 = scmp.lt.s32.totalorder %s224, 2
        %s228 = scalar_select %p227, %s224, 2
        %s229 = smul.addr %s226, 3
        %s230 = sadd.s32 %s228, %s229
        %s231 = smul.addr %s230, 8
        %s232 = scalar_lea.vmem %s2, %s231
        %s233 = smul.u32 3, %s19
      $region36: #{block_forward.6} parent=23 // pred_fallthru
        _
    $region24: #{block_forward.6} parent=5 // pred_fallthru
      _
    %p234 = scmp.le.s32.totalorder 1, %s11
    %p235 = scmp.lt.s32.totalorder %s11, 3
    %p236 = pnand %p234, %p235
    %p237 = pneg %p236
    // Predicated region
    $region37: #{block_forward.6} parent=5 // pred_check
      _
    $region38: #{block_forward.6} parent=5 // pred_check_branch
      %239 = sbr.rel (%p236) target = $region40
    $region39: #{block_forward.6} parent=5 // pred_region
      %s240 = ssub.s32 %s11, 1
      %s241 = smul.u32 3, %s21
      %p242 = scmp.lt.s32.totalorder %s20, 1
      %s243 = scalar_select %p242, %s20, 1
      %p244 = scmp.lt.s32.totalorder %s241, 2
      %s245 = scalar_select %p244, %s241, 2
      %s246 = smul.addr %s243, 3
      %s247 = sadd.s32 %s245, %s246
      %s248 = smul.addr %s247, 4
      %s249 = scalar_lea.vmem %s0, %s248
      %p250 = pneg %p51
      %p251 = pneg %p48
      %p252 = scmp.lt.s32.totalorder %s20, 1
      %s253 = scalar_select %p252, %s20, 1
      %s254 = smul.addr %s253, 3
      %s255 = smul.addr %s254, 4
      %s256 = scalar_lea.vmem %s1, %s255
      %p257 = pneg %p77
      %p258 = pneg %p74
      %s259 = smul.u32 3, %s21
      %p260 = scmp.lt.s32.totalorder %s20, 1
      %s261 = scalar_select %p260, %s20, 1
      %p262 = scmp.lt.s32.totalorder %s259, 2
      %s263 = scalar_select %p262, %s259, 2
      %s264 = smul.addr %s261, 3
      %s265 = sadd.s32 %s263, %s264
      %s266 = smul.addr %s265, 8
      %s267 = scalar_lea.vmem %s2, %s266
      %p268 = pneg %p105
      %p269 = pneg %p102
      %p270 = pneg %p126
      %p271 = pneg %p123
      %p272 = pneg %p147
      %p273 = pneg %p144
      %p274 = pneg %p175
      %p275 = pneg %p172
      %s276 = smul.u32 3, %s21
      %p277 = scmp.lt.s32.totalorder %s20, 1
      %s278 = scalar_select %p277, %s20, 1
      %p279 = scmp.lt.s32.totalorder %s276, 2
      %s280 = scalar_select %p279, %s276, 2
      %s281 = smul.addr %s278, 3
      %s282 = sadd.s32 %s280, %s281
      %s283 = smul.addr %s282, 8
      %s284 = scalar_lea.vmem %s5, %s283
      %s285 = smul.u32 3, %s21
      %p286 = scmp.lt.s32.totalorder %s20, 1
      %s287 = scalar_select %p286, %s20, 1
      %p288 = scmp.lt.s32.totalorder %s285, 2
      %s289 = scalar_select %p288, %s285, 2
      %s290 = smul.addr %s287, 3
      %s291 = sadd.s32 %s289, %s290
      %s292 = smul.addr %s291, 4
      %s293 = scalar_lea.vmem %s0, %s292
      %s294 = smul.u32 3, %s21
      %p295 = scmp.lt.s32.totalorder %s20, 1
      %s296 = scalar_select %p295, %s20, 1
      %s297 = smul.addr %s296, 3
      %s298 = smul.addr %s297, 4
      %s299 = scalar_lea.vmem %s1, %s298
      %s300 = smul.u32 3, %s21
      %p301 = scmp.lt.s32.totalorder %s20, 1
      %s302 = scalar_select %p301, %s20, 1
      %p303 = scmp.lt.s32.totalorder %s300, 2
      %s304 = scalar_select %p303, %s300, 2
      %s305 = smul.addr %s302, 3
      %s306 = sadd.s32 %s304, %s305
      %s307 = smul.addr %s306, 8
      %s308 = scalar_lea.vmem %s2, %s307
      %s309 = smul.u32 3, %s21
      %s310 = smul.u32 3, %s21
      %p311 = scmp.lt.s32.totalorder %s20, 1
      %s312 = scalar_select %p311, %s20, 1
      %p313 = scmp.lt.s32.totalorder %s310, 2
      %s314 = scalar_select %p313, %s310, 2
      %s315 = smul.addr %s312, 3
      %s316 = sadd.s32 %s314, %s315
      %s317 = smul.addr %s316, 8
      %s318 = scalar_lea.vmem %s5, %s317
      %s319 = smul.u32 3, %s21
      %v321 = vld [vmem:[%s293] sm:$0xf]
      %v322 = vld [vmem:[%s293 + $0x4] sm:$0xf]
      %v323 = vld [vmem:[%s293 + $0x8] sm:$0x1]
      %v324 = vld [vmem:[%s299] sm:$0xf]
      %v325 = vld [vmem:[%s299 + $0x4] sm:$0xf]
      %v326 = vld [vmem:[%s299 + $0x8] sm:$0x1]
      %v330 = vunpack.c.l.b16 %v321
      %v331 = vunpack.c.l.b16 %v322
      %v332 = vunpack.c.l.b16 %v323
      %v333 = vpack.c.b16 %v331, %v330
      %v334 = vpack.c.b16 %v332, %v332
      %v338 = vunpack.c.l.b16 %v324
      %v339 = vunpack.c.l.b16 %v325
      %v340 = vunpack.c.l.b16 %v326
      %v341 = vpack.c.b16 %v339, %v338
      %v342 = vpack.c.b16 %v340, %v340
      %343 = vrot.lane.b32.xlu0 %v341, 96
      %v344 = vpop.permute.xlu0 %343
      %345 = vrot.lane.b32.xlu0 %v342, 96
      %v346 = vpop.permute.xlu0 %345
      %vm347 = vcmask 64512
      %v349 = vsel %vm347, %v333, 0
      %v352 = vsel %vm347, %v334, 0
      %v355 = vsel %vm347, %v344, 0
      %v358 = vsel %vm347, %v346, 0
      %360 = vmatprep.subr.bf16.mxu0 0
      %361 = vmatpush1.bf16.xpose.msra.mxu0 %v355
      %362 = vmatprep.subr.bf16.mxu0 0
      %363 = vmatpush1.bf16.xpose.msra.mxu0 %v358
      %364 = vmatprep.subr.bf16.mxu0 0
      %365 = vmatpush1.bf16.xpose.msra.mxu0 0
      %366 = vmatprep.subr.bf16.mxu0 0
      %367 = vmatpush1.bf16.xpose.msra.mxu0 0
      %368 = vmatprep.subr.bf16.mxu0 0
      %369 = vmatpush1.bf16.xpose.msra.mxu0 0
      %370 = vmatprep.subr.bf16.mxu0 0
      %371 = vmatpush1.bf16.xpose.msra.mxu0 0
      %372 = vmatprep.subr.bf16.mxu0 0
      %373 = vmatpush1.bf16.xpose.msra.mxu0 0
      %374 = vmatprep.subr.bf16.mxu0 0
      %375 = vmatpush1.bf16.xpose.msra.mxu0 0
      %376 = vmatprep.subr.bf16.mxu0 0
      %377 = vmatpush1.bf16.xpose.msra.mxu0 0
      %378 = vmatprep.subr.bf16.mxu0 0
      %379 = vmatpush1.bf16.xpose.msra.mxu0 0
      %380 = vmatprep.subr.bf16.mxu0 0
      %381 = vmatpush1.bf16.xpose.msra.mxu0 0
      %382 = vmatprep.subr.bf16.mxu0 0
      %383 = vmatpush1.bf16.xpose.msra.mxu0 0
      %384 = vmatprep.subr.bf16.mxu0 0
      %385 = vmatpush1.bf16.xpose.msra.mxu0 0
      %386 = vmatprep.subr.bf16.mxu0 0
      %387 = vmatpush1.bf16.xpose.msra.mxu0 0
      %388 = vmatprep.subr.bf16.mxu0 0
      %389 = vmatpush1.bf16.xpose.msra.mxu0 0
      %390 = vmatprep.subr.bf16.mxu0 0
      %391 = vmatpush1.bf16.xpose.msra.mxu0 0
      %392 = vmatprep.mubr.bf16.mxu0 0
      %393 = vmatmul.mubr.bf16.gmra.mrb[0].mxu0 %v349
      %v394 = vpop.f32.mrb[0].mxu0
      %v395 = vadd.f32 0.0, %v394
      %v396 = vpop.f32.mrb[0].mxu0
      %v397 = vpop.f32.mrb[0].mxu0
      %v398 = vadd.f32 0.0, %v397
      %v399 = vpop.f32.mrb[0].mxu0
      %400 = vmatprep.mubr.bf16.mxu0 0
      %401 = vmatmul.mubr.bf16.gmra.mrb[0].mxu0 %v352
      %v402 = vpop.f32.mrb[0].mxu0
      %v403 = vadd.f32 0.0, %v402
      %v404 = vpop.f32.mrb[0].mxu0
      %v405 = vpop.f32.mrb[0].mxu0
      %v406 = vpop.f32.mrb[0].mxu0
      %407 = vdwg.mxu0
      %v408 = vmul.f32 %v395, 0.17677669
      %v409 = vmul.f32 %v398, 0.17677669
      %v410 = vmul.f32 %v403, 0.17677669
      %vm411 = vcmask 138240
      %v412 = vsel %vm411, %v408, -inf
      %413 = vmax.xlane.f32.xlu0 %v412
      %v414 = vpop.xlane.xlu0 %413
      %v415 = vsel %vm411, %v409, -inf
      %416 = vmax.xlane.f32.xlu0 %v415
      %v417 = vpop.xlane.xlu0 %416
      %vm418 = vcmask 131072
      %v419 = vsel %vm418, %v410, -inf
      %420 = vmax.xlane.f32.xlu0 %v419
      %v421 = vpop.xlane.xlu0 %420
      %v422 = vsub.f32 %v408, %v414
      %v423 = vsub.f32 %v409, %v417
      %v424 = vsub.f32 %v410, %v421
      %v425 = vmul.f32 %v422, 1.442695
      %v426 = vpow.pop %v425
      %v427 = vmul.f32 %v423, 1.442695
      %v428 = vpow.pop %v427
      %v429 = vmul.f32 %v424, 1.442695
      %v430 = vpow.pop %v429
      %v431 = vsel %vm411, %v426, 0.0
      %432 = vadd.xlane.f32.xlu0 %v431
      %v433 = vpop.xlane.xlu0 %432
      %v434 = vsel %vm411, %v428, 0.0
      %435 = vadd.xlane.f32.xlu0 %v434
      %v436 = vpop.xlane.xlu0 %435
      %v437 = vsel %vm418, %v430, 0.0
      %438 = vadd.xlane.f32.xlu0 %v437
      %v439 = vpop.xlane.xlu0 %438
      %v440 = vrcp.pop %v433
      %v441 = vrcp.pop %v436
      %v442 = vrcp.pop %v439
      %v443 = vmul.f32 %v426, %v440
      %v444 = vmul.f32 %v428, %v441
      %v445 = vmul.f32 %v430, %v442
      %v446 = vpack.c.bf16 %v444, %v443
      %v447 = vpack.c.bf16 %v445, %v445
      %448 = vrot.lane.b32.xlu0 %v341, 64
      %v449 = vpop.permute.xlu0 %448
      %450 = vrot.lane.b32.xlu0 %v342, 64
      %v451 = vpop.permute.xlu0 %450
      %v454 = vsel %vm411, %v446, 0
      %v457 = vsel %vm411, %v447, 0
      %vm459 = vcmask 1040384
      %v460 = vsel 0, 4294967295, 65535
      %v461 = vsel %vm459, %v460, 0
      %v463 = vand.u32 %v451, %v461
      %465 = vmatprep.subr.bf16.mxu0 0
      %466 = vmatpush1.bf16.msra.mxu0 %v449
      %467 = vmatprep.subr.bf16.mxu0 0
      %468 = vmatpush1.bf16.msra.mxu0 %v463
      %469 = vmatprep.subr.bf16.mxu0 0
      %470 = vmatpush1.bf16.msra.mxu0 0
      %471 = vmatprep.subr.bf16.mxu0 0
      %472 = vmatpush1.bf16.msra.mxu0 0
      %473 = vmatprep.subr.bf16.mxu0 0
      %474 = vmatpush1.bf16.msra.mxu0 0
      %475 = vmatprep.subr.bf16.mxu0 0
      %476 = vmatpush1.bf16.msra.mxu0 0
      %477 = vmatprep.subr.bf16.mxu0 0
      %478 = vmatpush1.bf16.msra.mxu0 0
      %479 = vmatprep.subr.bf16.mxu0 0
      %480 = vmatpush1.bf16.msra.mxu0 0
      %481 = vmatprep.subr.bf16.mxu0 0
      %482 = vmatpush1.bf16.msra.mxu0 0
      %483 = vmatprep.subr.bf16.mxu0 0
      %484 = vmatpush1.bf16.msra.mxu0 0
      %485 = vmatprep.subr.bf16.mxu0 0
      %486 = vmatpush1.bf16.msra.mxu0 0
      %487 = vmatprep.subr.bf16.mxu0 0
      %488 = vmatpush1.bf16.msra.mxu0 0
      %489 = vmatprep.subr.bf16.mxu0 0
      %490 = vmatpush1.bf16.msra.mxu0 0
      %491 = vmatprep.subr.bf16.mxu0 0
      %492 = vmatpush1.bf16.msra.mxu0 0
      %493 = vmatprep.subr.bf16.mxu0 0
      %494 = vmatpush1.bf16.msra.mxu0 0
      %495 = vmatprep.subr.bf16.mxu0 0
      %496 = vmatpush1.bf16.msra.mxu0 0
      %497 = vmatprep.mubr.bf16.mxu0 0
      %498 = vmatmul.mubr.bf16.gmra.mrb[0].mxu0 %v454
      %v499 = vpop.f32.mrb[0].mxu0
      %v500 = vadd.f32 0.0, %v499
      %v501 = vpop.f32.mrb[0].mxu0
      %v502 = vpop.f32.mrb[0].mxu0
      %v503 = vadd.f32 0.0, %v502
      %v504 = vpop.f32.mrb[0].mxu0
      %505 = vmatprep.mubr.bf16.mxu0 0
      %506 = vmatmul.mubr.bf16.gmra.mrb[0].mxu0 %v457
      %v507 = vpop.f32.mrb[0].mxu0
      %v508 = vadd.f32 0.0, %v507
      %v509 = vpop.f32.mrb[0].mxu0
      %v510 = vpop.f32.mrb[0].mxu0
      %v511 = vpop.f32.mrb[0].mxu0
      %512 = vdwg.mxu0
      %513 = vrot.lane.b32.xlu0 %v333, 120
      %v514 = vpop.permute.xlu0 %513
      %515 = vrot.lane.b32.xlu0 %v334, 120
      %v516 = vpop.permute.xlu0 %515
      %517 = vrot.lane.b32.xlu0 %v341, 88
      %v518 = vpop.permute.xlu0 %517
      %519 = vrot.lane.b32.xlu0 %v342, 88
      %v520 = vpop.permute.xlu0 %519
      %v522 = vsel %vm347, %v514, 0
      %v525 = vsel %vm347, %v516, 0
      %v528 = vsel %vm347, %v518, 0
      %v531 = vsel %vm347, %v520, 0
      %533 = vmatprep.subr.bf16.mxu0 0
      %534 = vmatpush1.bf16.xpose.msra.mxu0 %v528
      %535 = vmatprep.subr.bf16.mxu0 0
      %536 = vmatpush1.bf16.xpose.msra.mxu0 %v531
      %537 = vmatprep.subr.bf16.mxu0 0
      %538 = vmatpush1.bf16.xpose.msra.mxu0 0
      %539 = vmatprep.subr.bf16.mxu0 0
      %540 = vmatpush1.bf16.xpose.msra.mxu0 0
      %541 = vmatprep.subr.bf16.mxu0 0
      %542 = vmatpush1.bf16.xpose.msra.mxu0 0
      %543 = vmatprep.subr.bf16.mxu0 0
      %544 = vmatpush1.bf16.xpose.msra.mxu0 0
      %545 = vmatprep.subr.bf16.mxu0 0
      %546 = vmatpush1.bf16.xpose.msra.mxu0 0
      %547 = vmatprep.subr.bf16.mxu0 0
      %548 = vmatpush1.bf16.xpose.msra.mxu0 0
      %549 = vmatprep.subr.bf16.mxu0 0
      %550 = vmatpush1.bf16.xpose.msra.mxu0 0
      %551 = vmatprep.subr.bf16.mxu0 0
      %552 = vmatpush1.bf16.xpose.msra.mxu0 0
      %553 = vmatprep.subr.bf16.mxu0 0
      %554 = vmatpush1.bf16.xpose.msra.mxu0 0
      %555 = vmatprep.subr.bf16.mxu0 0
      %556 = vmatpush1.bf16.xpose.msra.mxu0 0
      %557 = vmatprep.subr.bf16.mxu0 0
      %558 = vmatpush1.bf16.xpose.msra.mxu0 0
      %559 = vmatprep.subr.bf16.mxu0 0
      %560 = vmatpush1.bf16.xpose.msra.mxu0 0
      %561 = vmatprep.subr.bf16.mxu0 0
      %562 = vmatpush1.bf16.xpose.msra.mxu0 0
      %563 = vmatprep.subr.bf16.mxu0 0
      %564 = vmatpush1.bf16.xpose.msra.mxu0 0
      %565 = vmatprep.mubr.bf16.mxu0 0
      %566 = vmatmul.mubr.bf16.gmra.mrb[0].mxu0 %v522
      %v567 = vpop.f32.mrb[0].mxu0
      %v568 = vadd.f32 0.0, %v567
      %v569 = vpop.f32.mrb[0].mxu0
      %v570 = vpop.f32.mrb[0].mxu0
      %v571 = vadd.f32 0.0, %v570
      %v572 = vpop.f32.mrb[0].mxu0
      %573 = vmatprep.mubr.bf16.mxu0 0
      %574 = vmatmul.mubr.bf16.gmra.mrb[0].mxu0 %v525
      %v575 = vpop.f32.mrb[0].mxu0
      %v576 = vadd.f32 0.0, %v575
      %v577 = vpop.f32.mrb[0].mxu0
      %v578 = vpop.f32.mrb[0].mxu0
      %v579 = vpop.f32.mrb[0].mxu0
      %580 = vdwg.mxu0
      %v581 = vmul.f32 %v568, 0.17677669
      %v582 = vmul.f32 %v571, 0.17677669
      %v583 = vmul.f32 %v576, 0.17677669
      %v584 = vsel %vm411, %v581, -inf
      %585 = vmax.xlane.f32.xlu0 %v584
      %v586 = vpop.xlane.xlu0 %585
      %v587 = vsel %vm411, %v582, -inf
      %588 = vmax.xlane.f32.xlu0 %v587
      %v589 = vpop.xlane.xlu0 %588
      %v590 = vsel %vm418, %v583, -inf
      %591 = vmax.xlane.f32.xlu0 %v590
      %v592 = vpop.xlane.xlu0 %591
      %v593 = vsub.f32 %v581, %v586
      %v594 = vsub.f32 %v582, %v589
      %v595 = vsub.f32 %v583, %v592
      %v596 = vmul.f32 %v593, 1.442695
      %v597 = vpow.pop %v596
      %v598 = vmul.f32 %v594, 1.442695
      %v599 = vpow.pop %v598
      %v600 = vmul.f32 %v595, 1.442695
      %v601 = vpow.pop %v600
      %v602 = vsel %vm411, %v597, 0.0
      %603 = vadd.xlane.f32.xlu0 %v602
      %v604 = vpop.xlane.xlu0 %603
      %v605 = vsel %vm411, %v599, 0.0
      %606 = vadd.xlane.f32.xlu0 %v605
      %v607 = vpop.xlane.xlu0 %606
      %v608 = vsel %vm418, %v601, 0.0
      %609 = vadd.xlane.f32.xlu0 %v608
      %v610 = vpop.xlane.xlu0 %609
      %v611 = vrcp.pop %v604
      %v612 = vrcp.pop %v607
      %v613 = vrcp.pop %v610
      %v614 = vmul.f32 %v597, %v611
      %v615 = vmul.f32 %v599, %v612
      %v616 = vmul.f32 %v601, %v613
      %v617 = vpack.c.bf16 %v615, %v614
      %v618 = vpack.c.bf16 %v616, %v616
      %619 = vrot.lane.b32.xlu0 %v341, 56
      %v620 = vpop.permute.xlu0 %619
      %621 = vrot.lane.b32.xlu0 %v342, 56
      %v622 = vpop.permute.xlu0 %621
      %v625 = vsel %vm411, %v617, 0
      %v628 = vsel %vm411, %v618, 0
      %v631 = vand.u32 %v622, %v461
      %633 = vmatprep.subr.bf16.mxu0 0
      %634 = vmatpush1.bf16.msra.mxu0 %v620
      %635 = vmatprep.subr.bf16.mxu0 0
      %636 = vmatpush1.bf16.msra.mxu0 %v631
      %637 = vmatprep.subr.bf16.mxu0 0
      %638 = vmatpush1.bf16.msra.mxu0 0
      %639 = vmatprep.subr.bf16.mxu0 0
      %640 = vmatpush1.bf16.msra.mxu0 0
      %641 = vmatprep.subr.bf16.mxu0 0
      %642 = vmatpush1.bf16.msra.mxu0 0
      %643 = vmatprep.subr.bf16.mxu0 0
      %644 = vmatpush1.bf16.msra.mxu0 0
      %645 = vmatprep.subr.bf16.mxu0 0
      %646 = vmatpush1.bf16.msra.mxu0 0
      %647 = vmatprep.subr.bf16.mxu0 0
      %648 = vmatpush1.bf16.msra.mxu0 0
      %649 = vmatprep.subr.bf16.mxu0 0
      %650 = vmatpush1.bf16.msra.mxu0 0
      %651 = vmatprep.subr.bf16.mxu0 0
      %652 = vmatpush1.bf16.msra.mxu0 0
      %653 = vmatprep.subr.bf16.mxu0 0
      %654 = vmatpush1.bf16.msra.mxu0 0
      %655 = vmatprep.subr.bf16.mxu0 0
      %656 = vmatpush1.bf16.msra.mxu0 0
      %657 = vmatprep.subr.bf16.mxu0 0
      %658 = vmatpush1.bf16.msra.mxu0 0
      %659 = vmatprep.subr.bf16.mxu0 0
      %660 = vmatpush1.bf16.msra.mxu0 0
      %661 = vmatprep.subr.bf16.mxu0 0
      %662 = vmatpush1.bf16.msra.mxu0 0
      %663 = vmatprep.subr.bf16.mxu0 0
      %664 = vmatpush1.bf16.msra.mxu0 0
      %665 = vmatprep.mubr.bf16.mxu0 0
      %666 = vmatmul.mubr.bf16.gmra.mrb[0].mxu0 %v625
      %v667 = vpop.f32.mrb[0].mxu0
      %v668 = vadd.f32 0.0, %v667
      %v669 = vpop.f32.mrb[0].mxu0
      %v670 = vpop.f32.mrb[0].mxu0
      %v671 = vadd.f32 0.0, %v670
      %v672 = vpop.f32.mrb[0].mxu0
      %673 = vmatprep.mubr.bf16.mxu0 0
      %674 = vmatmul.mubr.bf16.gmra.mrb[0].mxu0 %v628
      %v675 = vpop.f32.mrb[0].mxu0
      %v676 = vadd.f32 0.0, %v675
      %v677 = vpop.f32.mrb[0].mxu0
      %v678 = vpop.f32.mrb[0].mxu0
      %v679 = vpop.f32.mrb[0].mxu0
      %680 = vdwg.mxu0
      %681 = vrot.lane.b32.xlu0 %v333, 112
      %v682 = vpop.permute.xlu0 %681
      %683 = vrot.lane.b32.xlu0 %v334, 112
      %v684 = vpop.permute.xlu0 %683
      %685 = vrot.lane.b32.xlu0 %v341, 80
      %v686 = vpop.permute.xlu0 %685
      %687 = vrot.lane.b32.xlu0 %v342, 80
      %v688 = vpop.permute.xlu0 %687
      %v690 = vsel %vm347, %v682, 0
      %v693 = vsel %vm347, %v684, 0
      %v696 = vsel %vm347, %v686, 0
      %v699 = vsel %vm347, %v688, 0
      %701 = vmatprep.subr.bf16.mxu0 0
      %702 = vmatpush1.bf16.xpose.msra.mxu0 %v696
      %703 = vmatprep.subr.bf16.mxu0 0
      %704 = vmatpush1.bf16.xpose.msra.mxu0 %v699
      %705 = vmatprep.subr.bf16.mxu0 0
      %706 = vmatpush1.bf16.xpose.msra.mxu0 0
      %707 = vmatprep.subr.bf16.mxu0 0
      %708 = vmatpush1.bf16.xpose.msra.mxu0 0
      %709 = vmatprep.subr.bf16.mxu0 0
      %710 = vmatpush1.bf16.xpose.msra.mxu0 0
      %711 = vmatprep.subr.bf16.mxu0 0
      %712 = vmatpush1.bf16.xpose.msra.mxu0 0
      %713 = vmatprep.subr.bf16.mxu0 0
      %714 = vmatpush1.bf16.xpose.msra.mxu0 0
      %715 = vmatprep.subr.bf16.mxu0 0
      %716 = vmatpush1.bf16.xpose.msra.mxu0 0
      %717 = vmatprep.subr.bf16.mxu0 0
      %718 = vmatpush1.bf16.xpose.msra.mxu0 0
      %719 = vmatprep.subr.bf16.mxu0 0
      %720 = vmatpush1.bf16.xpose.msra.mxu0 0
      %721 = vmatprep.subr.bf16.mxu0 0
      %722 = vmatpush1.bf16.xpose.msra.mxu0 0
      %723 = vmatprep.subr.bf16.mxu0 0
      %724 = vmatpush1.bf16.xpose.msra.mxu0 0
      %725 = vmatprep.subr.bf16.mxu0 0
      %726 = vmatpush1.bf16.xpose.msra.mxu0 0
      %727 = vmatprep.subr.bf16.mxu0 0
      %728 = vmatpush1.bf16.xpose.msra.mxu0 0
      %729 = vmatprep.subr.bf16.mxu0 0
      %730 = vmatpush1.bf16.xpose.msra.mxu0 0
      %731 = vmatprep.subr.bf16.mxu0 0
      %732 = vmatpush1.bf16.xpose.msra.mxu0 0
      %733 = vmatprep.mubr.bf16.mxu0 0
      %734 = vmatmul.mubr.bf16.gmra.mrb[0].mxu0 %v690
      %v735 = vpop.f32.mrb[0].mxu0
      %v736 = vadd.f32 0.0, %v735
      %v737 = vpop.f32.mrb[0].mxu0
      %v738 = vpop.f32.mrb[0].mxu0
      %v739 = vadd.f32 0.0, %v738
      %v740 = vpop.f32.mrb[0].mxu0
      %741 = vmatprep.mubr.bf16.mxu0 0
      %742 = vmatmul.mubr.bf16.gmra.mrb[0].mxu0 %v693
      %v743 = vpop.f32.mrb[0].mxu0
      %v744 = vadd.f32 0.0, %v743
      %v745 = vpop.f32.mrb[0].mxu0
      %v746 = vpop.f32.mrb[0].mxu0
      %v747 = vpop.f32.mrb[0].mxu0
      %748 = vdwg.mxu0
      %v749 = vmul.f32 %v736, 0.17677669
      %v750 = vmul.f32 %v739, 0.17677669
      %v751 = vmul.f32 %v744, 0.17677669
      %v752 = vsel %vm411, %v749, -inf
      %753 = vmax.xlane.f32.xlu0 %v752
      %v754 = vpop.xlane.xlu0 %753
      %v755 = vsel %vm411, %v750, -inf
      %756 = vmax.xlane.f32.xlu0 %v755
      %v757 = vpop.xlane.xlu0 %756
      %v758 = vsel %vm418, %v751, -inf
      %759 = vmax.xlane.f32.xlu0 %v758
      %v760 = vpop.xlane.xlu0 %759
      %v761 = vsub.f32 %v749, %v754
      %v762 = vsub.f32 %v750, %v757
      %v763 = vsub.f32 %v751, %v760
      %v764 = vmul.f32 %v761, 1.442695
      %v765 = vpow.pop %v764
      %v766 = vmul.f32 %v762, 1.442695
      %v767 = vpow.pop %v766
      %v768 = vmul.f32 %v763, 1.442695
      %v769 = vpow.pop %v768
      %v770 = vsel %vm411, %v765, 0.0
      %771 = vadd.xlane.f32.xlu0 %v770
      %v772 = vpop.xlane.xlu0 %771
      %v773 = vsel %vm411, %v767, 0.0
      %774 = vadd.xlane.f32.xlu0 %v773
      %v775 = vpop.xlane.xlu0 %774
      %v776 = vsel %vm418, %v769, 0.0
      %777 = vadd.xlane.f32.xlu0 %v776
      %v778 = vpop.xlane.xlu0 %777
      %v779 = vrcp.pop %v772
      %v780 = vrcp.pop %v775
      %v781 = vrcp.pop %v778
      %v782 = vmul.f32 %v765, %v779
      %v783 = vmul.f32 %v767, %v780
      %v784 = vmul.f32 %v769, %v781
      %v785 = vpack.c.bf16 %v783, %v782
      %v786 = vpack.c.bf16 %v784, %v784
      %787 = vrot.lane.b32.xlu0 %v341, 48
      %v788 = vpop.permute.xlu0 %787
      %789 = vrot.lane.b32.xlu0 %v342, 48
      %v790 = vpop.permute.xlu0 %789
      %v793 = vsel %vm411, %v785, 0
      %v796 = vsel %vm411, %v786, 0
      %v799 = vand.u32 %v790, %v461
      %801 = vmatprep.subr.bf16.mxu0 0
      %802 = vmatpush1.bf16.msra.mxu0 %v788
      %803 = vmatprep.subr.bf16.mxu0 0
      %804 = vmatpush1.bf16.msra.mxu0 %v799
      %805 = vmatprep.subr.bf16.mxu0 0
      %806 = vmatpush1.bf16.msra.mxu0 0
      %807 = vmatprep.subr.bf16.mxu0 0
      %808 = vmatpush1.bf16.msra.mxu0 0
      %809 = vmatprep.subr.bf16.mxu0 0
      %810 = vmatpush1.bf16.msra.mxu0 0
      %811 = vmatprep.subr.bf16.mxu0 0
      %812 = vmatpush1.bf16.msra.mxu0 0
      %813 = vmatprep.subr.bf16.mxu0 0
      %814 = vmatpush1.bf16.msra.mxu0 0
      %815 = vmatprep.subr.bf16.mxu0 0
      %816 = vmatpush1.bf16.msra.mxu0 0
      %817 = vmatprep.subr.bf16.mxu0 0
      %818 = vmatpush1.bf16.msra.mxu0 0
      %819 = vmatprep.subr.bf16.mxu0 0
      %820 = vmatpush1.bf16.msra.mxu0 0
      %821 = vmatprep.subr.bf16.mxu0 0
      %822 = vmatpush1.bf16.msra.mxu0 0
      %823 = vmatprep.subr.bf16.mxu0 0
      %824 = vmatpush1.bf16.msra.mxu0 0
      %825 = vmatprep.subr.bf16.mxu0 0
      %826 = vmatpush1.bf16.msra.mxu0 0
      %827 = vmatprep.subr.bf16.mxu0 0
      %828 = vmatpush1.bf16.msra.mxu0 0
      %829 = vmatprep.subr.bf16.mxu0 0
      %830 = vmatpush1.bf16.msra.mxu0 0
      %831 = vmatprep.subr.bf16.mxu0 0
      %832 = vmatpush1.bf16.msra.mxu0 0
      %833 = vmatprep.mubr.bf16.mxu0 0
      %834 = vmatmul.mubr.bf16.gmra.mrb[0].mxu0 %v793
      %v835 = vpop.f32.mrb[0].mxu0
      %v836 = vadd.f32 0.0, %v835
      %v837 = vpop.f32.mrb[0].mxu0
      %v838 = vpop.f32.mrb[0].mxu0
      %v839 = vadd.f32 0.0, %v838
      %v840 = vpop.f32.mrb[0].mxu0
      %841 = vmatprep.mubr.bf16.mxu0 0
      %842 = vmatmul.mubr.bf16.gmra.mrb[0].mxu0 %v796
      %v843 = vpop.f32.mrb[0].mxu0
      %v844 = vadd.f32 0.0, %v843
      %v845 = vpop.f32.mrb[0].mxu0
      %v846 = vpop.f32.mrb[0].mxu0
      %v847 = vpop.f32.mrb[0].mxu0
      %848 = vdwg.mxu0
      %849 = vrot.lane.b32.xlu0 %v333, 104
      %v850 = vpop.permute.xlu0 %849
      %851 = vrot.lane.b32.xlu0 %v334, 104
      %v852 = vpop.permute.xlu0 %851
      %853 = vrot.lane.b32.xlu0 %v341, 72
      %v854 = vpop.permute.xlu0 %853
      %855 = vrot.lane.b32.xlu0 %v342, 72
      %v856 = vpop.permute.xlu0 %855
      %v858 = vsel %vm347, %v850, 0
      %v861 = vsel %vm347, %v852, 0
      %v864 = vsel %vm347, %v854, 0
      %v867 = vsel %vm347, %v856, 0
      %869 = vmatprep.subr.bf16.mxu0 0
      %870 = vmatpush1.bf16.xpose.msra.mxu0 %v864
      %871 = vmatprep.subr.bf16.mxu0 0
      %872 = vmatpush1.bf16.xpose.msra.mxu0 %v867
      %873 = vmatprep.subr.bf16.mxu0 0
      %874 = vmatpush1.bf16.xpose.msra.mxu0 0
      %875 = vmatprep.subr.bf16.mxu0 0
      %876 = vmatpush1.bf16.xpose.msra.mxu0 0
      %877 = vmatprep.subr.bf16.mxu0 0
      %878 = vmatpush1.bf16.xpose.msra.mxu0 0
      %879 = vmatprep.subr.bf16.mxu0 0
      %880 = vmatpush1.bf16.xpose.msra.mxu0 0
      %881 = vmatprep.subr.bf16.mxu0 0
      %882 = vmatpush1.bf16.xpose.msra.mxu0 0
      %883 = vmatprep.subr.bf16.mxu0 0
      %884 = vmatpush1.bf16.xpose.msra.mxu0 0
      %885 = vmatprep.subr.bf16.mxu0 0
      %886 = vmatpush1.bf16.xpose.msra.mxu0 0
      %887 = vmatprep.subr.bf16.mxu0 0
      %888 = vmatpush1.bf16.xpose.msra.mxu0 0
      %889 = vmatprep.subr.bf16.mxu0 0
      %890 = vmatpush1.bf16.xpose.msra.mxu0 0
      %891 = vmatprep.subr.bf16.mxu0 0
      %892 = vmatpush1.bf16.xpose.msra.mxu0 0
      %893 = vmatprep.subr.bf16.mxu0 0
      %894 = vmatpush1.bf16.xpose.msra.mxu0 0
      %895 = vmatprep.subr.bf16.mxu0 0
      %896 = vmatpush1.bf16.xpose.msra.mxu0 0
      %897 = vmatprep.subr.bf16.mxu0 0
      %898 = vmatpush1.bf16.xpose.msra.mxu0 0
      %899 = vmatprep.subr.bf16.mxu0 0
      %900 = vmatpush1.bf16.xpose.msra.mxu0 0
      %901 = vmatprep.mubr.bf16.mxu0 0
      %902 = vmatmul.mubr.bf16.gmra.mrb[0].mxu0 %v858
      %v903 = vpop.f32.mrb[0].mxu0
      %v904 = vadd.f32 0.0, %v903
      %v905 = vpop.f32.mrb[0].mxu0
      %v906 = vpop.f32.mrb[0].mxu0
      %v907 = vadd.f32 0.0, %v906
      %v908 = vpop.f32.mrb[0].mxu0
      %909 = vmatprep.mubr.bf16.mxu0 0
      %910 = vmatmul.mubr.bf16.gmra.mrb[0].mxu0 %v861
      %v911 = vpop.f32.mrb[0].mxu0
      %v912 = vadd.f32 0.0, %v911
      %v913 = vpop.f32.mrb[0].mxu0
      %v914 = vpop.f32.mrb[0].mxu0
      %v915 = vpop.f32.mrb[0].mxu0
      %916 = vdwg.mxu0
      %v917 = vmul.f32 %v904, 0.17677669
      %v918 = vmul.f32 %v907, 0.17677669
      %v919 = vmul.f32 %v912, 0.17677669
      %v920 = vsel %vm411, %v917, -inf
      %921 = vmax.xlane.f32.xlu0 %v920
      %v922 = vpop.xlane.xlu0 %921
      %v923 = vsel %vm411, %v918, -inf
      %924 = vmax.xlane.f32.xlu0 %v923
      %v925 = vpop.xlane.xlu0 %924
      %v926 = vsel %vm418, %v919, -inf
      %927 = vmax.xlane.f32.xlu0 %v926
      %v928 = vpop.xlane.xlu0 %927
      %v929 = vsub.f32 %v917, %v922
      %v930 = vsub.f32 %v918, %v925
      %v931 = vsub.f32 %v919, %v928
      %v932 = vmul.f32 %v929, 1.442695
      %v933 = vpow.pop %v932
      %v934 = vmul.f32 %v930, 1.442695
      %v935 = vpow.pop %v934
      %v936 = vmul.f32 %v931, 1.442695
      %v937 = vpow.pop %v936
      %v938 = vsel %vm411, %v933, 0.0
      %939 = vadd.xlane.f32.xlu0 %v938
      %v940 = vpop.xlane.xlu0 %939
      %v941 = vsel %vm411, %v935, 0.0
      %942 = vadd.xlane.f32.xlu0 %v941
      %v943 = vpop.xlane.xlu0 %942
      %v944 = vsel %vm418, %v937, 0.0
      %945 = vadd.xlane.f32.xlu0 %v944
      %v946 = vpop.xlane.xlu0 %945
      %v947 = vrcp.pop %v940
      %v948 = vrcp.pop %v943
      %v949 = vrcp.pop %v946
      %v950 = vmul.f32 %v933, %v947
      %v951 = vmul.f32 %v935, %v948
      %v952 = vmul.f32 %v937, %v949
      %v953 = vpack.c.bf16 %v951, %v950
      %v954 = vpack.c.bf16 %v952, %v952
      %955 = vrot.lane.b32.xlu0 %v341, 40
      %v956 = vpop.permute.xlu0 %955
      %957 = vrot.lane.b32.xlu0 %v342, 40
      %v958 = vpop.permute.xlu0 %957
      %v961 = vsel %vm411, %v953, 0
      %v964 = vsel %vm411, %v954, 0
      %v967 = vand.u32 %v958, %v461
      %969 = vmatprep.subr.bf16.mxu0 0
      %970 = vmatpush1.bf16.msra.mxu0 %v956
      %971 = vmatprep.subr.bf16.mxu0 0
      %972 = vmatpush1.bf16.msra.mxu0 %v967
      %973 = vmatprep.subr.bf16.mxu0 0
      %974 = vmatpush1.bf16.msra.mxu0 0
      %975 = vmatprep.subr.bf16.mxu0 0
      %976 = vmatpush1.bf16.msra.mxu0 0
      %977 = vmatprep.subr.bf16.mxu0 0
      %978 = vmatpush1.bf16.msra.mxu0 0
      %979 = vmatprep.subr.bf16.mxu0 0
      %980 = vmatpush1.bf16.msra.mxu0 0
      %981 = vmatprep.subr.bf16.mxu0 0
      %982 = vmatpush1.bf16.msra.mxu0 0
      %983 = vmatprep.subr.bf16.mxu0 0
      %984 = vmatpush1.bf16.msra.mxu0 0
      %985 = vmatprep.subr.bf16.mxu0 0
      %986 = vmatpush1.bf16.msra.mxu0 0
      %987 = vmatprep.subr.bf16.mxu0 0
      %988 = vmatpush1.bf16.msra.mxu0 0
      %989 = vmatprep.subr.bf16.mxu0 0
      %990 = vmatpush1.bf16.msra.mxu0 0
      %991 = vmatprep.subr.bf16.mxu0 0
      %992 = vmatpush1.bf16.msra.mxu0 0
      %993 = vmatprep.subr.bf16.mxu0 0
      %994 = vmatpush1.bf16.msra.mxu0 0
      %995 = vmatprep.subr.bf16.mxu0 0
      %996 = vmatpush1.bf16.msra.mxu0 0
      %997 = vmatprep.subr.bf16.mxu0 0
      %998 = vmatpush1.bf16.msra.mxu0 0
      %999 = vmatprep.subr.bf16.mxu0 0
      %1000 = vmatpush1.bf16.msra.mxu0 0
      %1001 = vmatprep.mubr.bf16.mxu0 0
      %1002 = vmatmul.mubr.bf16.gmra.mrb[0].mxu0 %v961
      %v1003 = vpop.f32.mrb[0].mxu0
      %v1004 = vadd.f32 0.0, %v1003
      %v1005 = vpop.f32.mrb[0].mxu0
      %v1006 = vpop.f32.mrb[0].mxu0
      %v1007 = vadd.f32 0.0, %v1006
      %v1008 = vpop.f32.mrb[0].mxu0
      %1009 = vmatprep.mubr.bf16.mxu0 0
      %1010 = vmatmul.mubr.bf16.gmra.mrb[0].mxu0 %v964
      %v1011 = vpop.f32.mrb[0].mxu0
      %v1012 = vadd.f32 0.0, %v1011
      %v1013 = vpop.f32.mrb[0].mxu0
      %v1014 = vpop.f32.mrb[0].mxu0
      %v1015 = vpop.f32.mrb[0].mxu0
      %1016 = vdwg.mxu0
      %1020 = vrot.lane.b32.xlu0 %v668, 8
      %v1021 = vpop.permute.xlu0 %1020
      %1022 = vrot.lane.b32.xlu0 %v671, 8
      %v1023 = vpop.permute.xlu0 %1022
      %1024 = vrot.lane.b32.xlu0 %v676, 8
      %v1025 = vpop.permute.xlu0 %1024
      %1032 = vrot.lane.b32.xlu0 %v836, 16
      %v1033 = vpop.permute.xlu0 %1032
      %1034 = vrot.lane.b32.xlu0 %v839, 16
      %v1035 = vpop.permute.xlu0 %1034
      %1036 = vrot.lane.b32.xlu0 %v844, 16
      %v1037 = vpop.permute.xlu0 %1036
      %1044 = vrot.lane.b32.xlu0 %v1004, 24
      %v1045 = vpop.permute.xlu0 %1044
      %1046 = vrot.lane.b32.xlu0 %v1007, 24
      %v1047 = vpop.permute.xlu0 %1046
      %1048 = vrot.lane.b32.xlu0 %v1012, 24
      %v1049 = vpop.permute.xlu0 %1048
      %v1053 = vsel %vm347, %v500, %v1021
      %v1054 = vsel %vm347, %v503, %v1023
      %v1055 = vsel %vm347, %v508, %v1025
      %vm1056 = vcmask 130048
      %v1057 = vsel %vm1056, %v1053, %v1033
      %v1058 = vsel %vm1056, %v1054, %v1035
      %v1059 = vsel %vm1056, %v1055, %v1037
      %vm1060 = vcmask 195584
      %v1061 = vsel %vm1060, %v1057, %v1045
      %v1062 = vsel %vm1060, %v1058, %v1047
      %v1063 = vsel %vm1060, %v1059, %v1049
      %v1064 = vpack.c.bf16 %v1062, %v1061
      %v1065 = vpack.c.bf16 %v1063, %v1063
      %v1066 = vld [vmem:[%s3] sm:$0xf]
      %v1067 = vld [vmem:[%s3 + $0x4] sm:$0xf]
      %v1068 = vld [vmem:[%s3 + $0x8] sm:$0xf]
      %v1069 = vld [vmem:[%s3 + $0xc] sm:$0xf]
      %v1074 = vunpack.c.l.b16 %v1066
      %v1075 = vunpack.c.l.b16 %v1067
      %v1076 = vunpack.c.l.b16 %v1068
      %v1077 = vunpack.c.l.b16 %v1069
      %v1078 = vpack.c.b16 %v1075, %v1074
      %v1079 = vpack.c.b16 %v1077, %v1076
      %vm1082 = vcmask 261120
      %v1084 = vsel %vm1082, %v1064, 0
      %v1087 = vsel %vm1082, %v1065, 0
      %1089 = vmatprep.subr.bf16.mxu0 0
      %1090 = vmatpush1.bf16.msra.mxu0 %v1078
      %1091 = vmatprep.subr.bf16.mxu0 0
      %1092 = vmatpush1.bf16.msra.mxu0 %v1079
      %1093 = vmatprep.subr.bf16.mxu0 0
      %1094 = vmatpush1.bf16.msra.mxu0 0
      %1095 = vmatprep.subr.bf16.mxu0 0
      %1096 = vmatpush1.bf16.msra.mxu0 0
      %1097 = vmatprep.subr.bf16.mxu0 0
      %1098 = vmatpush1.bf16.msra.mxu0 0
      %1099 = vmatprep.subr.bf16.mxu0 0
      %1100 = vmatpush1.bf16.msra.mxu0 0
      %1101 = vmatprep.subr.bf16.mxu0 0
      %1102 = vmatpush1.bf16.msra.mxu0 0
      %1103 = vmatprep.subr.bf16.mxu0 0
      %1104 = vmatpush1.bf16.msra.mxu0 0
      %1105 = vmatprep.subr.bf16.mxu0 0
      %1106 = vmatpush1.bf16.msra.mxu0 0
      %1107 = vmatprep.subr.bf16.mxu0 0
      %1108 = vmatpush1.bf16.msra.mxu0 0
      %1109 = vmatprep.subr.bf16.mxu0 0
      %1110 = vmatpush1.bf16.msra.mxu0 0
      %1111 = vmatprep.subr.bf16.mxu0 0
      %1112 = vmatpush1.bf16.msra.mxu0 0
      %1113 = vmatprep.subr.bf16.mxu0 0
      %1114 = vmatpush1.bf16.msra.mxu0 0
      %1115 = vmatprep.subr.bf16.mxu0 0
      %1116 = vmatpush1.bf16.msra.mxu0 0
      %1117 = vmatprep.subr.bf16.mxu0 0
      %1118 = vmatpush1.bf16.msra.mxu0 0
      %1119 = vmatprep.subr.bf16.mxu0 0
      %1120 = vmatpush1.bf16.msra.mxu0 0
      %1121 = vmatprep.mubr.bf16.mxu0 0
      %1122 = vmatmul.mubr.bf16.gmra.mrb[0].mxu0 %v1084
      %v1123 = vpop.f32.mrb[0].mxu0
      %v1124 = vadd.f32 0.0, %v1123
      %v1125 = vpop.f32.mrb[0].mxu0
      %v1126 = vpop.f32.mrb[0].mxu0
      %v1127 = vadd.f32 0.0, %v1126
      %v1128 = vpop.f32.mrb[0].mxu0
      %1129 = vmatprep.mubr.bf16.mxu0 0
      %1130 = vmatmul.mubr.bf16.gmra.mrb[0].mxu0 %v1087
      %v1131 = vpop.f32.mrb[0].mxu0
      %v1132 = vadd.f32 0.0, %v1131
      %v1133 = vpop.f32.mrb[0].mxu0
      %v1134 = vpop.f32.mrb[0].mxu0
      %v1135 = vpop.f32.mrb[0].mxu0
      %1136 = vdwg.mxu0
      %v1137 = vld [vmem:[%s308] sm:$0xff]
      %v1138 = vld [vmem:[%s308 + $0x8] sm:$0xff]
      %v1139 = vld [vmem:[%s308 + $0x10] sm:$0x1]
      %v1140 = vld [vmem:[%s4] sm:$0x1]
      %v1142 = vlaneseq
      %v1143 = vshrl.u32 %v1142, 7
      %v1144 = vsub.s32 0, %v1143
      %v1145 = vrot.slane %v1140, %v1144
      %v1147 = vadd.f32 %v1137, %v1145
      %v1148 = vadd.f32 %v1138, %v1145
      %v1149 = vadd.f32 %v1139, %v1145
      %v1150 = vadd.f32 %v1147, %v1124
      %v1151 = vadd.f32 %v1148, %v1127
      %v1152 = vadd.f32 %v1149, %v1132
      %1153 = vst.msk [vmem:[%s318] sm:$0xff] %vm1082, %v1150
      %1154 = vst.msk [vmem:[%s318 + $0x8] sm:$0xff] %vm1082, %v1151
      %vm1155 = vcmask 253952
      %1156 = vst.msk [vmem:[%s318 + $0x10] sm:$0x1] %vm1155, %v1152
      %s1157 = smul.u32 3, %s21
      %p1158 = scmp.lt.s32.totalorder %s20, 1
      %s1159 = scalar_select %p1158, %s20, 1
      %p1160 = scmp.lt.s32.totalorder %s1157, 2
      %s1161 = scalar_select %p1160, %s1157, 2
      %s1162 = smul.addr %s1159, 3
      %s1163 = sadd.s32 %s1161, %s1162
      %s1164 = smul.addr %s1163, 8
      %s1165 = scalar_lea.vmem %s5, %s1164
      // Predicated region
      $region41: #{block_forward.6} parent=39 // pred_check
        %p1166 = pneg %p172
      $region42: #{block_forward.6} parent=39 // pred_check_branch
        %1168 = sbr.rel (%p1166) target = $region44
      $region43: #{block_forward.6} parent=39 // pred_region
        %s1169 = smul.u32 3, %s21
      $region44: #{block_forward.6} parent=39 // pred_fallthru
        _
    $region40: #{block_forward.6} parent=5 // pred_fallthru
      _
    %p1170 = scmp.le.s32.totalorder 2, %s11
    // Predicated region
    $region45: #{block_forward.6} parent=5 // pred_check
      %p1171 = pneg %p1170
    $region46: #{block_forward.6} parent=5 // pred_check_branch
      %1173 = sbr.rel (%p1171) target = $region48
    $region47: #{block_forward.6} parent=5 // pred_region
      %s1174 = ssub.s32 %s11, 2
      // Predicated region
      $region49: #{block_forward.6} parent=47 // pred_check
        %p1175 = pneg %p178
      $region50: #{block_forward.6} parent=47 // pred_check_branch
        %1177 = sbr.rel (%p1175) target = $region52
      $region51: #{block_forward.6} parent=47 // pred_region
        %s1178 = smul.u32 3, %s23
        %p1179 = scmp.lt.s32.totalorder %s22, 1
        %s1180 = scalar_select %p1179, %s22, 1
        %p1181 = scmp.lt.s32.totalorder %s1178, 2
        %s1182 = scalar_select %p1181, %s1178, 2
        %s1183 = smul.addr %s1180, 3
        %s1184 = sadd.s32 %s1182, %s1183
        %s1185 = smul.addr %s1184, 8
        %s1186 = scalar_lea.vmem %s5, %s1185
      $region52: #{block_forward.6} parent=47 // pred_fallthru
        _
    $region48: #{block_forward.6} parent=5 // pred_fallthru
      _
  $region6: #{block_forward.6} parent=0 // loop_footer
    %s15 = sadd.s32 1, %s11
  $region7: #{block_forward.6} parent=0 // loop_footer_branch
    %10 = sbr.rel target = $region3
  $region8: #{block_forward.6} parent=0 // loop_exit
    _

// kernel: block_forward.5
$region0: #{block_forward.5}
  #allocation0 [shape = 'u32[]', space=smem, size = 0x4, offset = 0x4, fixed_abs, tag = 'smem constant byte address 0x4 - core index']
  #allocation1 [shape = 'u32[144,128]{1,0:T(1,128)}', space=vmem, size = 0x12000, scoped, tag = 'internal scratch']
  %s0 = inlined_call_operand.vmem [shape: bf16[9,32,32], index: 0, kind: input, shape index: {}]
  %s1 = inlined_call_operand.vmem [shape: f32[27,1,32], index: 1, kind: input, shape index: {}]
  %s2 = inlined_call_operand.vmem [shape: f32[3,1,32], index: 2, kind: input, shape index: {}]
  %s3 = inlined_call_operand.vmem [shape: f32[3,1,32], index: 3, kind: input, shape index: {}]
  %s4 = inlined_call_operand.vmem [shape: bf16[3,32,32], index: 4, kind: input, shape index: {}]
  %s5 = inlined_call_operand.vmem [shape: bf16[32,96], index: 5, kind: output, shape index: {}]
  %s6 = sld [smem:[#allocation0]]
  $region30: #{block_forward.5} parent=0
    _
  %s8 = ssub.s32 1, %s6
  %s9 = scalar_select 0, %s8, %s6
  // Predicated region
  $region2: #{block_forward.5} parent=0 // pred_check
    _
  $region3: #{block_forward.5} parent=0 // pred_check_branch
    %11 = sbr.rel (0) target = $region5
  $region4: #{block_forward.5} parent=0 // pred_region
    _
  $region5: #{block_forward.5} parent=0 // pred_fallthru
    _
  // Predicated region
  $region6: #{block_forward.5} parent=0 // pred_check
    _
  $region7: #{block_forward.5} parent=0 // pred_check_branch
    %13 = sbr.rel (0) target = $region9
  $region8: #{block_forward.5} parent=0 // pred_region
    _
  $region9: #{block_forward.5} parent=0 // pred_fallthru
    _
  // Predicated region
  $region10: #{block_forward.5} parent=0 // pred_check
    _
  $region11: #{block_forward.5} parent=0 // pred_check_branch
    %15 = sbr.rel (0) target = $region13
  $region12: #{block_forward.5} parent=0 // pred_region
    _
  $region13: #{block_forward.5} parent=0 // pred_fallthru
    _
  // Predicated region
  $region14: #{block_forward.5} parent=0 // pred_check
    _
  $region15: #{block_forward.5} parent=0 // pred_check_branch
    %17 = sbr.rel (0) target = $region17
  $region16: #{block_forward.5} parent=0 // pred_region
    _
  $region17: #{block_forward.5} parent=0 // pred_fallthru
    _
  // Predicated region
  $region18: #{block_forward.5} parent=0 // pred_check
    _
  $region19: #{block_forward.5} parent=0 // pred_check_branch
    %19 = sbr.rel (0) target = $region21
  $region20: #{block_forward.5} parent=0 // pred_region
    _
  $region21: #{block_forward.5} parent=0 // pred_fallthru
    _
  %v21 = vld [vmem:[%s0] sm:$0xf]
  %v22 = vld [vmem:[%s0 + $0x4] sm:$0xf]
  %v23 = vld [vmem:[%s0 + $0x8] sm:$0xf]
  %v24 = vld [vmem:[%s0 + $0xc] sm:$0xf]
  %v25 = vunpack.c.l.bf16 %v21
  %v26 = vunpack.c.l.bf16 %v22
  %v27 = vunpack.c.l.bf16 %v23
  %v28 = vunpack.c.l.bf16 %v24
  %v29 = vld [vmem:[%s1] sm:$0x1]
  %v31 = vlaneseq
  %v32 = vshrl.u32 %v31, 7
  %v33 = vsub.s32 0, %v32
  %v34 = vrot.slane %v29, %v33
  %v36 = vmul.f32 %v25, %v34
  %v37 = vmul.f32 %v26, %v34
  %v38 = vmul.f32 %v27, %v34
  %v39 = vmul.f32 %v28, %v34
  %s40 = scalar_lea.vmem %s0, 16
  %v41 = vld [vmem:[%s40] sm:$0xf]
  %v42 = vld [vmem:[%s40 + $0x4] sm:$0xf]
  %v43 = vld [vmem:[%s40 + $0x8] sm:$0xf]
  %v44 = vld [vmem:[%s40 + $0xc] sm:$0xf]
  %v45 = vunpack.c.l.bf16 %v41
  %v46 = vunpack.c.l.bf16 %v42
  %v47 = vunpack.c.l.bf16 %v43
  %v48 = vunpack.c.l.bf16 %v44
  %s49 = scalar_lea.vmem %s1, 1
  %v50 = vld [vmem:[%s49] sm:$0x1]
  %v52 = vlaneseq
  %v53 = vshrl.u32 %v52, 7
  %v54 = vsub.s32 0, %v53
  %v55 = vrot.slane %v50, %v54
  %v57 = vmul.f32 %v45, %v55
  %v58 = vmul.f32 %v46, %v55
  %v59 = vmul.f32 %v47, %v55
  %v60 = vmul.f32 %v48, %v55
  %v61 = vadd.f32 %v36, %v57
  %v62 = vadd.f32 %v37, %v58
  %v63 = vadd.f32 %v38, %v59
  %v64 = vadd.f32 %v39, %v60
  %s65 = scalar_lea.vmem %s0, 32
  %v66 = vld [vmem:[%s65] sm:$0xf]
  %v67 = vld [vmem:[%s65 + $0x4] sm:$0xf]
  %v68 = vld [vmem:[%s65 + $0x8] sm:$0xf]
  %v69 = vld [vmem:[%s65 + $0xc] sm:$0xf]
  %v70 = vunpack.c.l.bf16 %v66
  %v71 = vunpack.c.l.bf16 %v67
  %v72 = vunpack.c.l.bf16 %v68
  %v73 = vunpack.c.l.bf16 %v69
  %s74 = scalar_lea.vmem %s1, 2
  %v75 = vld [vmem:[%s74] sm:$0x1]
  %v77 = vlaneseq
  %v78 = vshrl.u32 %v77, 7
  %v79 = vsub.s32 0, %v78
  %v80 = vrot.slane %v75, %v79
  %v82 = vmul.f32 %v70, %v80
  %v83 = vmul.f32 %v71, %v80
  %v84 = vmul.f32 %v72, %v80
  %v85 = vmul.f32 %v73, %v80
  %v86 = vadd.f32 %v61, %v82
  %v87 = vadd.f32 %v62, %v83
  %v88 = vadd.f32 %v63, %v84
  %v89 = vadd.f32 %v64, %v85
  %s90 = scalar_lea.vmem %s0, 48
  %v91 = vld [vmem:[%s90] sm:$0xf]
  %v92 = vld [vmem:[%s90 + $0x4] sm:$0xf]
  %v93 = vld [vmem:[%s90 + $0x8] sm:$0xf]
  %v94 = vld [vmem:[%s90 + $0xc] sm:$0xf]
  %v95 = vunpack.c.l.bf16 %v91
  %v96 = vunpack.c.l.bf16 %v92
  %v97 = vunpack.c.l.bf16 %v93
  %v98 = vunpack.c.l.bf16 %v94
  %s99 = scalar_lea.vmem %s1, 3
  %v100 = vld [vmem:[%s99] sm:$0x1]
  %v102 = vlaneseq
  %v103 = vshrl.u32 %v102, 7
  %v104 = vsub.s32 0, %v103
  %v105 = vrot.slane %v100, %v104
  %v107 = vmul.f32 %v95, %v105
  %v108 = vmul.f32 %v96, %v105
  %v109 = vmul.f32 %v97, %v105
  %v110 = vmul.f32 %v98, %v105
  %v111 = vadd.f32 %v86, %v107
  %v112 = vadd.f32 %v87, %v108
  %v113 = vadd.f32 %v88, %v109
  %v114 = vadd.f32 %v89, %v110
  %s115 = scalar_lea.vmem %s0, 64
  %v116 = vld [vmem:[%s115] sm:$0xf]
  %v117 = vld [vmem:[%s115 + $0x4] sm:$0xf]
  %v118 = vld [vmem:[%s115 + $0x8] sm:$0xf]
  %v119 = vld [vmem:[%s115 + $0xc] sm:$0xf]
  %v120 = vunpack.c.l.bf16 %v116
  %v121 = vunpack.c.l.bf16 %v117
  %v122 = vunpack.c.l.bf16 %v118
  %v123 = vunpack.c.l.bf16 %v119
  %s124 = scalar_lea.vmem %s1, 4
  %v125 = vld [vmem:[%s124] sm:$0x1]
  %v127 = vlaneseq
  %v128 = vshrl.u32 %v127, 7
  %v129 = vsub.s32 0, %v128
  %v130 = vrot.slane %v125, %v129
  %v132 = vmul.f32 %v120, %v130
  %v133 = vmul.f32 %v121, %v130
  %v134 = vmul.f32 %v122, %v130
  %v135 = vmul.f32 %v123, %v130
  %v136 = vadd.f32 %v111, %v132
  %v137 = vadd.f32 %v112, %v133
  %v138 = vadd.f32 %v113, %v134
  %v139 = vadd.f32 %v114, %v135
  %s140 = scalar_lea.vmem %s0, 80
  %v141 = vld [vmem:[%s140] sm:$0xf]
  %v142 = vld [vmem:[%s140 + $0x4] sm:$0xf]
  %v143 = vld [vmem:[%s140 + $0x8] sm:$0xf]
  %v144 = vld [vmem:[%s140 + $0xc] sm:$0xf]
  %v145 = vunpack.c.l.bf16 %v141
  %v146 = vunpack.c.l.bf16 %v142
  %v147 = vunpack.c.l.bf16 %v143
  %v148 = vunpack.c.l.bf16 %v144
  %s149 = scalar_lea.vmem %s1, 5
  %v150 = vld [vmem:[%s149] sm:$0x1]
  %v152 = vlaneseq
  %v153 = vshrl.u32 %v152, 7
  %v154 = vsub.s32 0, %v153
  %v155 = vrot.slane %v150, %v154
  %v157 = vmul.f32 %v145, %v155
  %v158 = vmul.f32 %v146, %v155
  %v159 = vmul.f32 %v147, %v155
  %v160 = vmul.f32 %v148, %v155
  %v161 = vadd.f32 %v136, %v157
  %v162 = vadd.f32 %v137, %v158
  %v163 = vadd.f32 %v138, %v159
  %v164 = vadd.f32 %v139, %v160
  %s165 = scalar_lea.vmem %s0, 96
  %v166 = vld [vmem:[%s165] sm:$0xf]
  %v167 = vld [vmem:[%s165 + $0x4] sm:$0xf]
  %v168 = vld [vmem:[%s165 + $0x8] sm:$0xf]
  %v169 = vld [vmem:[%s165 + $0xc] sm:$0xf]
  %v170 = vunpack.c.l.bf16 %v166
  %v171 = vunpack.c.l.bf16 %v167
  %v172 = vunpack.c.l.bf16 %v168
  %v173 = vunpack.c.l.bf16 %v169
  %s174 = scalar_lea.vmem %s1, 6
  %v175 = vld [vmem:[%s174] sm:$0x1]
  %v177 = vlaneseq
  %v178 = vshrl.u32 %v177, 7
  %v179 = vsub.s32 0, %v178
  %v180 = vrot.slane %v175, %v179
  %v182 = vmul.f32 %v170, %v180
  %v183 = vmul.f32 %v171, %v180
  %v184 = vmul.f32 %v172, %v180
  %v185 = vmul.f32 %v173, %v180
  %v186 = vadd.f32 %v161, %v182
  %v187 = vadd.f32 %v162, %v183
  %v188 = vadd.f32 %v163, %v184
  %v189 = vadd.f32 %v164, %v185
  %s190 = scalar_lea.vmem %s0, 112
  %v191 = vld [vmem:[%s190] sm:$0xf]
  %v192 = vld [vmem:[%s190 + $0x4] sm:$0xf]
  %v193 = vld [vmem:[%s190 + $0x8] sm:$0xf]
  %v194 = vld [vmem:[%s190 + $0xc] sm:$0xf]
  %v195 = vunpack.c.l.bf16 %v191
  %v196 = vunpack.c.l.bf16 %v192
  %v197 = vunpack.c.l.bf16 %v193
  %v198 = vunpack.c.l.bf16 %v194
  %s199 = scalar_lea.vmem %s1, 7
  %v200 = vld [vmem:[%s199] sm:$0x1]
  %v202 = vlaneseq
  %v203 = vshrl.u32 %v202, 7
  %v204 = vsub.s32 0, %v203
  %v205 = vrot.slane %v200, %v204
  %v207 = vmul.f32 %v195, %v205
  %v208 = vmul.f32 %v196, %v205
  %v209 = vmul.f32 %v197, %v205
  %v210 = vmul.f32 %v198, %v205
  %v211 = vadd.f32 %v186, %v207
  %v212 = vadd.f32 %v187, %v208
  %v213 = vadd.f32 %v188, %v209
  %v214 = vadd.f32 %v189, %v210
  %s215 = scalar_lea.vmem %s0, 128
  %v216 = vld [vmem:[%s215] sm:$0xf]
  %v217 = vld [vmem:[%s215 + $0x4] sm:$0xf]
  %v218 = vld [vmem:[%s215 + $0x8] sm:$0xf]
  %v219 = vld [vmem:[%s215 + $0xc] sm:$0xf]
  %v220 = vunpack.c.l.bf16 %v216
  %v221 = vunpack.c.l.bf16 %v217
  %v222 = vunpack.c.l.bf16 %v218
  %v223 = vunpack.c.l.bf16 %v219
  %s224 = scalar_lea.vmem %s1, 8
  %v225 = vld [vmem:[%s224] sm:$0x1]
  %v227 = vlaneseq
  %v228 = vshrl.u32 %v227, 7
  %v229 = vsub.s32 0, %v228
  %v230 = vrot.slane %v225, %v229
  %v232 = vmul.f32 %v220, %v230
  %v233 = vmul.f32 %v221, %v230
  %v234 = vmul.f32 %v222, %v230
  %v235 = vmul.f32 %v223, %v230
  %v236 = vadd.f32 %v211, %v232
  %v237 = vadd.f32 %v212, %v233
  %v238 = vadd.f32 %v213, %v234
  %v239 = vadd.f32 %v214, %v235
  %v240 = vld [vmem:[%s2] sm:$0x1]
  %v242 = vlaneseq
  %v243 = vshrl.u32 %v242, 7
  %v244 = vsub.s32 0, %v243
  %v245 = vrot.slane %v240, %v244
  %v247 = vmul.f32 %v236, %v245
  %v248 = vmul.f32 %v237, %v245
  %v249 = vmul.f32 %v238, %v245
  %v250 = vmul.f32 %v239, %v245
  %v251 = vld [vmem:[%s3] sm:$0x1]
  %v253 = vlaneseq
  %v254 = vshrl.u32 %v253, 7
  %v255 = vsub.s32 0, %v254
  %v256 = vrot.slane %v251, %v255
  %v258 = vadd.f32 %v247, %v256
  %v259 = vadd.f32 %v248, %v256
  %v260 = vadd.f32 %v249, %v256
  %v261 = vadd.f32 %v250, %v256
  %v262 = vpack.c.bf16 %v259, %v258
  %v263 = vpack.c.bf16 %v261, %v260
  %v264 = vld [vmem:[%s4] sm:$0xf]
  %v265 = vld [vmem:[%s4 + $0x4] sm:$0xf]
  %v266 = vld [vmem:[%s4 + $0x8] sm:$0xf]
  %v267 = vld [vmem:[%s4 + $0xc] sm:$0xf]
  %v272 = vunpack.c.l.b16 %v264
  %v273 = vunpack.c.l.b16 %v265
  %v274 = vunpack.c.l.b16 %v266
  %v275 = vunpack.c.l.b16 %v267
  %v276 = vpack.c.b16 %v273, %v272
  %v277 = vpack.c.b16 %v275, %v274
  %vm280 = vcmask 261120
  %v282 = vsel %vm280, %v262, 0
  %v285 = vsel %vm280, %v263, 0
  %287 = vmatprep.subr.bf16.mxu0 0
  %288 = vmatpush1.bf16.msra.mxu0 %v276
  %289 = vmatprep.subr.bf16.mxu0 0
  %290 = vmatpush1.bf16.msra.mxu0 %v277
  %291 = vmatprep.subr.bf16.mxu0 0
  %292 = vmatpush1.bf16.msra.mxu0 0
  %293 = vmatprep.subr.bf16.mxu0 0
  %294 = vmatpush1.bf16.msra.mxu0 0
  %295 = vmatprep.subr.bf16.mxu0 0
  %296 = vmatpush1.bf16.msra.mxu0 0
  %297 = vmatprep.subr.bf16.mxu0 0
  %298 = vmatpush1.bf16.msra.mxu0 0
  %299 = vmatprep.subr.bf16.mxu0 0
  %300 = vmatpush1.bf16.msra.mxu0 0
  %301 = vmatprep.subr.bf16.mxu0 0
  %302 = vmatpush1.bf16.msra.mxu0 0
  %303 = vmatprep.subr.bf16.mxu0 0
  %304 = vmatpush1.bf16.msra.mxu0 0
  %305 = vmatprep.subr.bf16.mxu0 0
  %306 = vmatpush1.bf16.msra.mxu0 0
  %307 = vmatprep.subr.bf16.mxu0 0
  %308 = vmatpush1.bf16.msra.mxu0 0
  %309 = vmatprep.subr.bf16.mxu0 0
  %310 = vmatpush1.bf16.msra.mxu0 0
  %311 = vmatprep.subr.bf16.mxu0 0
  %312 = vmatpush1.bf16.msra.mxu0 0
  %313 = vmatprep.subr.bf16.mxu0 0
  %314 = vmatpush1.bf16.msra.mxu0 0
  %315 = vmatprep.subr.bf16.mxu0 0
  %316 = vmatpush1.bf16.msra.mxu0 0
  %317 = vmatprep.subr.bf16.mxu0 0
  %318 = vmatpush1.bf16.msra.mxu0 0
  %319 = vmatprep.mubr.bf16.mxu0 0
  %320 = vmatmul.mubr.bf16.gmra.mrb[0].mxu0 %v282
  %v321 = vpop.f32.mrb[0].mxu0
  %v322 = vadd.f32 0.0, %v321
  %v323 = vpop.f32.mrb[0].mxu0
  %v324 = vpop.f32.mrb[0].mxu0
  %v325 = vadd.f32 0.0, %v324
  %v326 = vpop.f32.mrb[0].mxu0
  %327 = vmatprep.mubr.bf16.mxu0 0
  %328 = vmatmul.mubr.bf16.gmra.mrb[0].mxu0 %v285
  %v329 = vpop.f32.mrb[0].mxu0
  %v330 = vadd.f32 0.0, %v329
  %v331 = vpop.f32.mrb[0].mxu0
  %v332 = vpop.f32.mrb[0].mxu0
  %v333 = vadd.f32 0.0, %v332
  %v334 = vpop.f32.mrb[0].mxu0
  %335 = vdwg.mxu0
  %s336 = scalar_lea.vmem %s1, 9
  %v337 = vld [vmem:[%s336] sm:$0x1]
  %v339 = vlaneseq
  %v340 = vshrl.u32 %v339, 7
  %v341 = vsub.s32 0, %v340
  %v342 = vrot.slane %v337, %v341
  %v344 = vmul.f32 %v25, %v342
  %v345 = vmul.f32 %v26, %v342
  %v346 = vmul.f32 %v27, %v342
  %v347 = vmul.f32 %v28, %v342
  %s348 = scalar_lea.vmem %s1, 10
  %v349 = vld [vmem:[%s348] sm:$0x1]
  %v351 = vlaneseq
  %v352 = vshrl.u32 %v351, 7
  %v353 = vsub.s32 0, %v352
  %v354 = vrot.slane %v349, %v353
  %v356 = vmul.f32 %v45, %v354
  %v357 = vmul.f32 %v46, %v354
  %v358 = vmul.f32 %v47, %v354
  %v359 = vmul.f32 %v48, %v354
  %v360 = vadd.f32 %v344, %v356
  %v361 = vadd.f32 %v345, %v357
  %v362 = vadd.f32 %v346, %v358
  %v363 = vadd.f32 %v347, %v359
  %s364 = scalar_lea.vmem %s1, 11
  %v365 = vld [vmem:[%s364] sm:$0x1]
  %v367 = vlaneseq
  %v368 = vshrl.u32 %v367, 7
  %v369 = vsub.s32 0, %v368
  %v370 = vrot.slane %v365, %v369
  %v372 = vmul.f32 %v70, %v370
  %v373 = vmul.f32 %v71, %v370
  %v374 = vmul.f32 %v72, %v370
  %v375 = vmul.f32 %v73, %v370
  %v376 = vadd.f32 %v360, %v372
  %v377 = vadd.f32 %v361, %v373
  %v378 = vadd.f32 %v362, %v374
  %v379 = vadd.f32 %v363, %v375
  %s380 = scalar_lea.vmem %s1, 12
  %v381 = vld [vmem:[%s380] sm:$0x1]
  %v383 = vlaneseq
  %v384 = vshrl.u32 %v383, 7
  %v385 = vsub.s32 0, %v384
  %v386 = vrot.slane %v381, %v385
  %v388 = vmul.f32 %v95, %v386
  %v389 = vmul.f32 %v96, %v386
  %v390 = vmul.f32 %v97, %v386
  %v391 = vmul.f32 %v98, %v386
  %v392 = vadd.f32 %v376, %v388
  %v393 = vadd.f32 %v377, %v389
  %v394 = vadd.f32 %v378, %v390
  %v395 = vadd.f32 %v379, %v391
  %s396 = scalar_lea.vmem %s1, 13
  %v397 = vld [vmem:[%s396] sm:$0x1]
  %v399 = vlaneseq
  %v400 = vshrl.u32 %v399, 7
  %v401 = vsub.s32 0, %v400
  %v402 = vrot.slane %v397, %v401
  %v404 = vmul.f32 %v120, %v402
  %v405 = vmul.f32 %v121, %v402
  %v406 = vmul.f32 %v122, %v402
  %v407 = vmul.f32 %v123, %v402
  %v408 = vadd.f32 %v392, %v404
  %v409 = vadd.f32 %v393, %v405
  %v410 = vadd.f32 %v394, %v406
  %v411 = vadd.f32 %v395, %v407
  %s412 = scalar_lea.vmem %s1, 14
  %v413 = vld [vmem:[%s412] sm:$0x1]
  %v415 = vlaneseq
  %v416 = vshrl.u32 %v415, 7
  %v417 = vsub.s32 0, %v416
  %v418 = vrot.slane %v413, %v417
  %v420 = vmul.f32 %v145, %v418
  %v421 = vmul.f32 %v146, %v418
  %v422 = vmul.f32 %v147, %v418
  %v423 = vmul.f32 %v148, %v418
  %v424 = vadd.f32 %v408, %v420
  %v425 = vadd.f32 %v409, %v421
  %v426 = vadd.f32 %v410, %v422
  %v427 = vadd.f32 %v411, %v423
  %s428 = scalar_lea.vmem %s1, 15
  %v429 = vld [vmem:[%s428] sm:$0x1]
  %v431 = vlaneseq
  %v432 = vshrl.u32 %v431, 7
  %v433 = vsub.s32 0, %v432
  %v434 = vrot.slane %v429, %v433
  %v436 = vmul.f32 %v170, %v434
  %v437 = vmul.f32 %v171, %v434
  %v438 = vmul.f32 %v172, %v434
  %v439 = vmul.f32 %v173, %v434
  %v440 = vadd.f32 %v424, %v436
  %v441 = vadd.f32 %v425, %v437
  %v442 = vadd.f32 %v426, %v438
  %v443 = vadd.f32 %v427, %v439
  %s444 = scalar_lea.vmem %s1, 16
  %v445 = vld [vmem:[%s444] sm:$0x1]
  %v447 = vlaneseq
  %v448 = vshrl.u32 %v447, 7
  %v449 = vsub.s32 0, %v448
  %v450 = vrot.slane %v445, %v449
  %v452 = vmul.f32 %v195, %v450
  %v453 = vmul.f32 %v196, %v450
  %v454 = vmul.f32 %v197, %v450
  %v455 = vmul.f32 %v198, %v450
  %v456 = vadd.f32 %v440, %v452
  %v457 = vadd.f32 %v441, %v453
  %v458 = vadd.f32 %v442, %v454
  %v459 = vadd.f32 %v443, %v455
  %s460 = scalar_lea.vmem %s1, 17
  %v461 = vld [vmem:[%s460] sm:$0x1]
  %v463 = vlaneseq
  %v464 = vshrl.u32 %v463, 7
  %v465 = vsub.s32 0, %v464
  %v466 = vrot.slane %v461, %v465
  %v468 = vmul.f32 %v220, %v466
  %v469 = vmul.f32 %v221, %v466
  %v470 = vmul.f32 %v222, %v466
  %v471 = vmul.f32 %v223, %v466
  %v472 = vadd.f32 %v456, %v468
  %v473 = vadd.f32 %v457, %v469
  %v474 = vadd.f32 %v458, %v470
  %v475 = vadd.f32 %v459, %v471
  %s476 = scalar_lea.vmem %s2, 1
  %v477 = vld [vmem:[%s476] sm:$0x1]
  %v479 = vlaneseq
  %v480 = vshrl.u32 %v479, 7
  %v481 = vsub.s32 0, %v480
  %v482 = vrot.slane %v477, %v481
  %v484 = vmul.f32 %v472, %v482
  %v485 = vmul.f32 %v473, %v482
  %v486 = vmul.f32 %v474, %v482
  %v487 = vmul.f32 %v475, %v482
  %s488 = scalar_lea.vmem %s3, 1
  %v489 = vld [vmem:[%s488] sm:$0x1]
  %v491 = vlaneseq
  %v492 = vshrl.u32 %v491, 7
  %v493 = vsub.s32 0, %v492
  %v494 = vrot.slane %v489, %v493
  %v496 = vadd.f32 %v484, %v494
  %v497 = vadd.f32 %v485, %v494
  %v498 = vadd.f32 %v486, %v494
  %v499 = vadd.f32 %v487, %v494
  %v500 = vpack.c.bf16 %v497, %v496
  %v501 = vpack.c.bf16 %v499, %v498
  %s502 = scalar_lea.vmem %s4, 16
  %v503 = vld [vmem:[%s502] sm:$0xf]
  %v504 = vld [vmem:[%s502 + $0x4] sm:$0xf]
  %v505 = vld [vmem:[%s502 + $0x8] sm:$0xf]
  %v506 = vld [vmem:[%s502 + $0xc] sm:$0xf]
  %v511 = vunpack.c.l.b16 %v503
  %v512 = vunpack.c.l.b16 %v504
  %v513 = vunpack.c.l.b16 %v505
  %v514 = vunpack.c.l.b16 %v506
  %v515 = vpack.c.b16 %v512, %v511
  %v516 = vpack.c.b16 %v514, %v513
  %v520 = vsel %vm280, %v500, 0
  %v523 = vsel %vm280, %v501, 0
  %525 = vmatprep.subr.bf16.mxu0 0
  %526 = vmatpush1.bf16.msra.mxu0 %v515
  %527 = vmatprep.subr.bf16.mxu0 0
  %528 = vmatpush1.bf16.msra.mxu0 %v516
  %529 = vmatprep.subr.bf16.mxu0 0
  %530 = vmatpush1.bf16.msra.mxu0 0
  %531 = vmatprep.subr.bf16.mxu0 0
  %532 = vmatpush1.bf16.msra.mxu0 0
  %533 = vmatprep.subr.bf16.mxu0 0
  %534 = vmatpush1.bf16.msra.mxu0 0
  %535 = vmatprep.subr.bf16.mxu0 0
  %536 = vmatpush1.bf16.msra.mxu0 0
  %537 = vmatprep.subr.bf16.mxu0 0
  %538 = vmatpush1.bf16.msra.mxu0 0
  %539 = vmatprep.subr.bf16.mxu0 0
  %540 = vmatpush1.bf16.msra.mxu0 0
  %541 = vmatprep.subr.bf16.mxu0 0
  %542 = vmatpush1.bf16.msra.mxu0 0
  %543 = vmatprep.subr.bf16.mxu0 0
  %544 = vmatpush1.bf16.msra.mxu0 0
  %545 = vmatprep.subr.bf16.mxu0 0
  %546 = vmatpush1.bf16.msra.mxu0 0
  %547 = vmatprep.subr.bf16.mxu0 0
  %548 = vmatpush1.bf16.msra.mxu0 0
  %549 = vmatprep.subr.bf16.mxu0 0
  %550 = vmatpush1.bf16.msra.mxu0 0
  %551 = vmatprep.subr.bf16.mxu0 0
  %552 = vmatpush1.bf16.msra.mxu0 0
  %553 = vmatprep.subr.bf16.mxu0 0
  %554 = vmatpush1.bf16.msra.mxu0 0
  %555 = vmatprep.subr.bf16.mxu0 0
  %556 = vmatpush1.bf16.msra.mxu0 0
  %557 = vmatprep.mubr.bf16.mxu0 0
  %558 = vmatmul.mubr.bf16.gmra.mrb[0].mxu0 %v520
  %v559 = vpop.f32.mrb[0].mxu0
  %v560 = vadd.f32 0.0, %v559
  %v561 = vpop.f32.mrb[0].mxu0
  %v562 = vpop.f32.mrb[0].mxu0
  %v563 = vadd.f32 0.0, %v562
  %v564 = vpop.f32.mrb[0].mxu0
  %565 = vmatprep.mubr.bf16.mxu0 0
  %566 = vmatmul.mubr.bf16.gmra.mrb[0].mxu0 %v523
  %v567 = vpop.f32.mrb[0].mxu0
  %v568 = vadd.f32 0.0, %v567
  %v569 = vpop.f32.mrb[0].mxu0
  %v570 = vpop.f32.mrb[0].mxu0
  %v571 = vadd.f32 0.0, %v570
  %v572 = vpop.f32.mrb[0].mxu0
  %573 = vdwg.mxu0
  %s574 = scalar_lea.vmem %s1, 18
  %v575 = vld [vmem:[%s574] sm:$0x1]
  %v577 = vlaneseq
  %v578 = vshrl.u32 %v577, 7
  %v579 = vsub.s32 0, %v578
  %v580 = vrot.slane %v575, %v579
  %v582 = vmul.f32 %v25, %v580
  %v583 = vmul.f32 %v26, %v580
  %v584 = vmul.f32 %v27, %v580
  %v585 = vmul.f32 %v28, %v580
  %s586 = scalar_lea.vmem %s1, 19
  %v587 = vld [vmem:[%s586] sm:$0x1]
  %v589 = vlaneseq
  %v590 = vshrl.u32 %v589, 7
  %v591 = vsub.s32 0, %v590
  %v592 = vrot.slane %v587, %v591
  %v594 = vmul.f32 %v45, %v592
  %v595 = vmul.f32 %v46, %v592
  %v596 = vmul.f32 %v47, %v592
  %v597 = vmul.f32 %v48, %v592
  %v598 = vadd.f32 %v582, %v594
  %v599 = vadd.f32 %v583, %v595
  %v600 = vadd.f32 %v584, %v596
  %v601 = vadd.f32 %v585, %v597
  %s602 = scalar_lea.vmem %s1, 20
  %v603 = vld [vmem:[%s602] sm:$0x1]
  %v605 = vlaneseq
  %v606 = vshrl.u32 %v605, 7
  %v607 = vsub.s32 0, %v606
  %v608 = vrot.slane %v603, %v607
  %v610 = vmul.f32 %v70, %v608
  %v611 = vmul.f32 %v71, %v608
  %v612 = vmul.f32 %v72, %v608
  %v613 = vmul.f32 %v73, %v608
  %v614 = vadd.f32 %v598, %v610
  %v615 = vadd.f32 %v599, %v611
  %v616 = vadd.f32 %v600, %v612
  %v617 = vadd.f32 %v601, %v613
  %s618 = scalar_lea.vmem %s1, 21
  %v619 = vld [vmem:[%s618] sm:$0x1]
  %v621 = vlaneseq
  %v622 = vshrl.u32 %v621, 7
  %v623 = vsub.s32 0, %v622
  %v624 = vrot.slane %v619, %v623
  %v626 = vmul.f32 %v95, %v624
  %v627 = vmul.f32 %v96, %v624
  %v628 = vmul.f32 %v97, %v624
  %v629 = vmul.f32 %v98, %v624
  %v630 = vadd.f32 %v614, %v626
  %v631 = vadd.f32 %v615, %v627
  %v632 = vadd.f32 %v616, %v628
  %v633 = vadd.f32 %v617, %v629
  %s634 = scalar_lea.vmem %s1, 22
  %v635 = vld [vmem:[%s634] sm:$0x1]
  %v637 = vlaneseq
  %v638 = vshrl.u32 %v637, 7
  %v639 = vsub.s32 0, %v638
  %v640 = vrot.slane %v635, %v639
  %v642 = vmul.f32 %v120, %v640
  %v643 = vmul.f32 %v121, %v640
  %v644 = vmul.f32 %v122, %v640
  %v645 = vmul.f32 %v123, %v640
  %v646 = vadd.f32 %v630, %v642
  %v647 = vadd.f32 %v631, %v643
  %v648 = vadd.f32 %v632, %v644
  %v649 = vadd.f32 %v633, %v645
  %s650 = scalar_lea.vmem %s1, 23
  %v651 = vld [vmem:[%s650] sm:$0x1]
  %v653 = vlaneseq
  %v654 = vshrl.u32 %v653, 7
  %v655 = vsub.s32 0, %v654
  %v656 = vrot.slane %v651, %v655
  %v658 = vmul.f32 %v145, %v656
  %v659 = vmul.f32 %v146, %v656
  %v660 = vmul.f32 %v147, %v656
  %v661 = vmul.f32 %v148, %v656
  %v662 = vadd.f32 %v646, %v658
  %v663 = vadd.f32 %v647, %v659
  %v664 = vadd.f32 %v648, %v660
  %v665 = vadd.f32 %v649, %v661
  %s666 = scalar_lea.vmem %s1, 24
  %v667 = vld [vmem:[%s666] sm:$0x1]
  %v669 = vlaneseq
  %v670 = vshrl.u32 %v669, 7
  %v671 = vsub.s32 0, %v670
  %v672 = vrot.slane %v667, %v671
  %v674 = vmul.f32 %v170, %v672
  %v675 = vmul.f32 %v171, %v672
  %v676 = vmul.f32 %v172, %v672
  %v677 = vmul.f32 %v173, %v672
  %v678 = vadd.f32 %v662, %v674
  %v679 = vadd.f32 %v663, %v675
  %v680 = vadd.f32 %v664, %v676
  %v681 = vadd.f32 %v665, %v677
  %s682 = scalar_lea.vmem %s1, 25
  %v683 = vld [vmem:[%s682] sm:$0x1]
  %v685 = vlaneseq
  %v686 = vshrl.u32 %v685, 7
  %v687 = vsub.s32 0, %v686
  %v688 = vrot.slane %v683, %v687
  %v690 = vmul.f32 %v195, %v688
  %v691 = vmul.f32 %v196, %v688
  %v692 = vmul.f32 %v197, %v688
  %v693 = vmul.f32 %v198, %v688
  %v694 = vadd.f32 %v678, %v690
  %v695 = vadd.f32 %v679, %v691
  %v696 = vadd.f32 %v680, %v692
  %v697 = vadd.f32 %v681, %v693
  %s698 = scalar_lea.vmem %s1, 26
  %v699 = vld [vmem:[%s698] sm:$0x1]
  %v701 = vlaneseq
  %v702 = vshrl.u32 %v701, 7
  %v703 = vsub.s32 0, %v702
  %v704 = vrot.slane %v699, %v703
  %v706 = vmul.f32 %v220, %v704
  %v707 = vmul.f32 %v221, %v704
  %v708 = vmul.f32 %v222, %v704
  %v709 = vmul.f32 %v223, %v704
  %v710 = vadd.f32 %v694, %v706
  %v711 = vadd.f32 %v695, %v707
  %v712 = vadd.f32 %v696, %v708
  %v713 = vadd.f32 %v697, %v709
  %s714 = scalar_lea.vmem %s2, 2
  %v715 = vld [vmem:[%s714] sm:$0x1]
  %v717 = vlaneseq
  %v718 = vshrl.u32 %v717, 7
  %v719 = vsub.s32 0, %v718
  %v720 = vrot.slane %v715, %v719
  %v722 = vmul.f32 %v710, %v720
  %v723 = vmul.f32 %v711, %v720
  %v724 = vmul.f32 %v712, %v720
  %v725 = vmul.f32 %v713, %v720
  %s726 = scalar_lea.vmem %s3, 2
  %v727 = vld [vmem:[%s726] sm:$0x1]
  %v729 = vlaneseq
  %v730 = vshrl.u32 %v729, 7
  %v731 = vsub.s32 0, %v730
  %v732 = vrot.slane %v727, %v731
  %v734 = vadd.f32 %v722, %v732
  %v735 = vadd.f32 %v723, %v732
  %v736 = vadd.f32 %v724, %v732
  %v737 = vadd.f32 %v725, %v732
  %v738 = vpack.c.bf16 %v735, %v734
  %v739 = vpack.c.bf16 %v737, %v736
  %s740 = scalar_lea.vmem %s4, 32
  %v741 = vld [vmem:[%s740] sm:$0xf]
  %v742 = vld [vmem:[%s740 + $0x4] sm:$0xf]
  %v743 = vld [vmem:[%s740 + $0x8] sm:$0xf]
  %v744 = vld [vmem:[%s740 + $0xc] sm:$0xf]
  %v749 = vunpack.c.l.b16 %v741
  %v750 = vunpack.c.l.b16 %v742
  %v751 = vunpack.c.l.b16 %v743
  %v752 = vunpack.c.l.b16 %v744
  %v753 = vpack.c.b16 %v750, %v749
  %v754 = vpack.c.b16 %v752, %v751
  %v758 = vsel %vm280, %v738, 0
  %v761 = vsel %vm280, %v739, 0
  %763 = vmatprep.subr.bf16.mxu0 0
  %764 = vmatpush1.bf16.msra.mxu0 %v753
  %765 = vmatprep.subr.bf16.mxu0 0
  %766 = vmatpush1.bf16.msra.mxu0 %v754
  %767 = vmatprep.subr.bf16.mxu0 0
  %768 = vmatpush1.bf16.msra.mxu0 0
  %769 = vmatprep.subr.bf16.mxu0 0
  %770 = vmatpush1.bf16.msra.mxu0 0
  %771 = vmatprep.subr.bf16.mxu0 0
  %772 = vmatpush1.bf16.msra.mxu0 0
  %773 = vmatprep.subr.bf16.mxu0 0
  %774 = vmatpush1.bf16.msra.mxu0 0
  %775 = vmatprep.subr.bf16.mxu0 0
  %776 = vmatpush1.bf16.msra.mxu0 0
  %777 = vmatprep.subr.bf16.mxu0 0
  %778 = vmatpush1.bf16.msra.mxu0 0
  %779 = vmatprep.subr.bf16.mxu0 0
  %780 = vmatpush1.bf16.msra.mxu0 0
  %781 = vmatprep.subr.bf16.mxu0 0
  %782 = vmatpush1.bf16.msra.mxu0 0
  %783 = vmatprep.subr.bf16.mxu0 0
  %784 = vmatpush1.bf16.msra.mxu0 0
  %785 = vmatprep.subr.bf16.mxu0 0
  %786 = vmatpush1.bf16.msra.mxu0 0
  %787 = vmatprep.subr.bf16.mxu0 0
  %788 = vmatpush1.bf16.msra.mxu0 0
  %789 = vmatprep.subr.bf16.mxu0 0
  %790 = vmatpush1.bf16.msra.mxu0 0
  %791 = vmatprep.subr.bf16.mxu0 0
  %792 = vmatpush1.bf16.msra.mxu0 0
  %793 = vmatprep.subr.bf16.mxu0 0
  %794 = vmatpush1.bf16.msra.mxu0 0
  %795 = vmatprep.mubr.bf16.mxu0 0
  %796 = vmatmul.mubr.bf16.gmra.mrb[0].mxu0 %v758
  %v797 = vpop.f32.mrb[0].mxu0
  %v798 = vadd.f32 0.0, %v797
  %v799 = vpop.f32.mrb[0].mxu0
  %v800 = vpop.f32.mrb[0].mxu0
  %v801 = vadd.f32 0.0, %v800
  %v802 = vpop.f32.mrb[0].mxu0
  %803 = vmatprep.mubr.bf16.mxu0 0
  %804 = vmatmul.mubr.bf16.gmra.mrb[0].mxu0 %v761
  %v805 = vpop.f32.mrb[0].mxu0
  %v806 = vadd.f32 0.0, %v805
  %v807 = vpop.f32.mrb[0].mxu0
  %v808 = vpop.f32.mrb[0].mxu0
  %v809 = vadd.f32 0.0, %v808
  %v810 = vpop.f32.mrb[0].mxu0
  %811 = vdwg.mxu0
  %816 = vrot.lane.b32.xlu0 %v560, 32
  %v817 = vpop.permute.xlu0 %816
  %818 = vrot.lane.b32.xlu0 %v563, 32
  %v819 = vpop.permute.xlu0 %818
  %820 = vrot.lane.b32.xlu0 %v568, 32
  %v821 = vpop.permute.xlu0 %820
  %822 = vrot.lane.b32.xlu0 %v571, 32
  %v823 = vpop.permute.xlu0 %822
  %832 = vrot.lane.b32.xlu0 %v798, 64
  %v833 = vpop.permute.xlu0 %832
  %834 = vrot.lane.b32.xlu0 %v801, 64
  %v835 = vpop.permute.xlu0 %834
  %836 = vrot.lane.b32.xlu0 %v806, 64
  %v837 = vpop.permute.xlu0 %836
  %838 = vrot.lane.b32.xlu0 %v809, 64
  %v839 = vpop.permute.xlu0 %838
  %v844 = vsel %vm280, %v322, %v817
  %v845 = vsel %vm280, %v325, %v819
  %v846 = vsel %vm280, %v330, %v821
  %v847 = vsel %vm280, %v333, %v823
  %vm848 = vcmask 523264
  %v849 = vsel %vm848, %v844, %v833
  %v850 = vsel %vm848, %v845, %v835
  %v851 = vsel %vm848, %v846, %v837
  %v852 = vsel %vm848, %v847, %v839
  %v853 = vpack.c.bf16 %v850, %v849
  %v854 = vpack.c.bf16 %v852, %v851
  %v857 = vunpack.c.l.b16 %v853
  %v858 = vunpack.c.h.b16 %v853
  %v859 = vunpack.c.l.b16 %v854
  %v860 = vunpack.c.h.b16 %v854
  %v861 = vpack.c.b16 %v857, %v857
  %v862 = vpack.c.b16 %v858, %v858
  %v863 = vpack.c.b16 %v859, %v859
  %v864 = vpack.c.b16 %v860, %v860
  %vm869 = vcmask 781312
  %870 = vst.msk [vmem:[%s5] sm:$0xf] %vm869, %v861
  %871 = vst.msk [vmem:[%s5 + $0x4] sm:$0xf] %vm869, %v862
  %872 = vst.msk [vmem:[%s5 + $0x8] sm:$0xf] %vm869, %v863
  %873 = vst.msk [vmem:[%s5 + $0xc] sm:$0xf] %vm869, %v864
  // Predicated region
  $region22: #{block_forward.5} parent=0 // pred_check
    _
  $region23: #{block_forward.5} parent=0 // pred_check_branch
    %875 = sbr.rel (0) target = $region25
  $region24: #{block_forward.5} parent=0 // pred_region
    _
  $region25: #{block_forward.5} parent=0 // pred_fallthru
    _
  // Predicated region
  $region26: #{block_forward.5} parent=0 // pred_check
    _
  $region27: #{block_forward.5} parent=0 // pred_check_branch
    %877 = sbr.rel (0) target = $region29
  $region28: #{block_forward.5} parent=0 // pred_region
    _
  $region29: #{block_forward.5} parent=0 // pred_fallthru
    _

</llo_original>
